<compile_context>
chip_gen: v7x
topology: tpu7x:2x2x1
jax: 0.10.0
libtpu: 0.0.40
codegen_flags: <defaults>
</compile_context>

<pallas_src>
import jax
import jax.numpy as jnp
from jax.experimental import pallas as pl
from jax.experimental.pallas import tpu as pltpu

KSIZE, STRIDE, PAD = 4, 3, 1
CIN_PAD = 8          # pad the 3 input channels to a full sublane group
NTAPS = 4            # sub-pixel shifts (dh, dw) in {0,1}^2


def _phase_taps(r):
    """(k, shift) taps that hit real input for output residue r (mod STRIDE)."""
    if r < STRIDE - 1:
        return [(r + PAD, 0)]               # k = r + 1, same input row/col
    return [(KSIZE - 1, 0), (0, 1)]          # k = 3 (same) and k = 0 (next)


def fused_convt_kernel(x_ref, w_ref, b_ref, o_ref):
    # x_ref: (1, NTAPS*CIN_PAD, HW)  shifted input copies, channel-first, lane-dense
    # w_ref: (9*Cout, NTAPS*CIN_PAD) folded (conv1x1 o conv_transpose) phase weights
    # b_ref: (9*Cout, 1)             folded bias (b_t + per-phase b1 contribution)
    # o_ref: (1, 9*Cout, HW)         sigmoid(all 9 phase outputs), lane-dense store
    acc = jnp.dot(w_ref[...], x_ref[0], preferred_element_type=jnp.float32)
    o_ref[0] = jax.nn.sigmoid(acc + b_ref[...])


def _fold_params(w1, b1, wt, bt):
    """Fold Conv2d(1x1) into the phase-decomposed ConvTranspose2d weights."""
    C1, Cin = w1.shape[0], w1.shape[1]
    Cout = wt.shape[1]
    nphase = STRIDE * STRIDE
    w1m = w1[:, :, 0, 0]                                          # (C1, Cin)
    hi = jax.lax.Precision.HIGHEST
    # fold_all[co, kh, kw, c3] = sum_ci wt[ci, co, kh, kw] * w1[ci, c3]
    fold_all = jnp.einsum('iokl,ic->oklc', wt, w1m, precision=hi)  # (Cout,K,K,Cin)
    # bias_all[co, kh, kw] = sum_ci wt[ci, co, kh, kw] * b1[ci]
    bias_all = jnp.einsum('iokl,i->okl', wt, b1, precision=hi)     # (Cout,K,K)

    w_fold = jnp.zeros((nphase * Cout, NTAPS * CIN_PAD), jnp.float32)
    b_fold = jnp.tile(bt, nphase)                                  # (nphase*Cout,)
    for rh in range(STRIDE):
        for rw in range(STRIDE):
            row0 = (rh * STRIDE + rw) * Cout
            for kh, dh in _phase_taps(rh):
                for kw, dw in _phase_taps(rw):
                    col0 = (dh * 2 + dw) * CIN_PAD
                    w_fold = w_fold.at[row0:row0 + Cout,
                                       col0:col0 + Cin].set(fold_all[:, kh, kw, :])
                    b_fold = b_fold.at[row0:row0 + Cout].add(bias_all[:, kh, kw])
    return w_fold, b_fold.reshape(nphase * Cout, 1)


def _shifted_inputs(x_nchw):
    """Channel-first lane-dense (N, NTAPS*CIN_PAD, H*W) with the 4 sub-pixel
    shifts (0, +1 col, +1 row, +1 row&col) stacked along the contracting dim."""
    N, Cin, H, W = x_nchw.shape
    HW = H * W
    x3 = x_nchw.reshape(N, Cin, HW)
    taps = []
    for off in (0, 1, W, W + 1):
        xs = x3 if off == 0 else jnp.pad(x3[:, :, off:], ((0, 0), (0, 0), (0, off)))
        taps.append(jnp.pad(xs, ((0, 0), (0, CIN_PAD - Cin), (0, 0))))
    return jnp.concatenate(taps, axis=1)                           # (N, 32, HW)


@jax.jit
def model_forward(x_nchw, w1, b1, wt, bt):
    N, Cin, H, W = x_nchw.shape
    HW = H * W
    Cout = wt.shape[1]
    nphase = STRIDE * STRIDE
    Ho = (H - 1) * STRIDE - 2 * PAD + KSIZE
    Wo = (W - 1) * STRIDE - 2 * PAD + KSIZE

    w_fold, b_fold = _fold_params(w1, b1, wt, bt)
    x_cat = _shifted_inputs(x_nchw)

    out_phases = pl.pallas_call(
        fused_convt_kernel,
        out_shape=jax.ShapeDtypeStruct((N, nphase * Cout, HW), jnp.float32),
        grid=(N,),
        in_specs=[
            pl.BlockSpec((1, NTAPS * CIN_PAD, HW), lambda n: (n, 0, 0)),
            pl.BlockSpec((nphase * Cout, NTAPS * CIN_PAD), lambda n: (0, 0)),
            pl.BlockSpec((nphase * Cout, 1), lambda n: (0, 0)),
        ],
        out_specs=pl.BlockSpec((1, nphase * Cout, HW), lambda n: (n, 0, 0)),
        compiler_params=pltpu.CompilerParams(dimension_semantics=("parallel",)),
    )(x_cat, w_fold, b_fold)

    # Interleave the 9 sub-pixel phases into NCHW: one small XLA transpose.
    out = out_phases.reshape(N, STRIDE, STRIDE, Cout, H, W)   # (n, rh, rw, co, qh, qw)
    out = out.transpose(0, 3, 4, 1, 5, 2)                     # (n, co, qh, rh, qw, rw)
    out = out.reshape(N, Cout, H * STRIDE, W * STRIDE)
    return out[:, :, :Ho, :Wo]                                # (N, Cout, Ho, Wo) NCHW


def reference(x_nchw, w1, b1, wt, bt):
    # Independent pure-JAX reference of the PyTorch forward pass.
    v1 = jnp.einsum('nchw,oc->nohw', x_nchw, w1[:, :, 0, 0]) + b1[None, :, None, None]
    w_rot = jnp.flip(wt, (2, 3)).transpose(1, 0, 2, 3)        # (Cout, Cin, K, K) OIHW
    v2 = jax.lax.conv_general_dilated(
        v1, w_rot, window_strides=(1, 1),
        padding=[(KSIZE - 1 - PAD,) * 2] * 2,
        lhs_dilation=(STRIDE, STRIDE),
        dimension_numbers=('NCHW', 'OIHW', 'NCHW'))
    return jax.nn.sigmoid(v2 + bt[None, :, None, None])


if __name__ == "__main__":
    key = jax.random.PRNGKey(0)
    k1, k2, k3, k4, k5 = jax.random.split(key, 5)
    N, Cin, H, W = 2, 3, 32, 32          # module spec is (1,3,32,32); batch=2 exercises the batch grid axis
    C1 = Cout = 32
    x = jax.random.normal(k1, (N, Cin, H, W), jnp.float32)
    # Deterministic synthetic parameters (shapes from the module's __init__).
    w1 = jax.random.normal(k2, (C1, Cin, 1, 1), jnp.float32) / jnp.sqrt(Cin)
    b1 = jax.random.normal(k3, (C1,), jnp.float32) * 0.1
    wt = jax.random.normal(k4, (C1, Cout, KSIZE, KSIZE), jnp.float32) / jnp.sqrt(C1 * KSIZE * KSIZE)
    bt = jax.random.normal(k5, (Cout,), jnp.float32) * 0.1

    out = jax.block_until_ready(model_forward(x, w1, b1, wt, bt))

    Ho = (H - 1) * STRIDE - 2 * PAD + KSIZE
    Wo = (W - 1) * STRIDE - 2 * PAD + KSIZE
    assert out.shape == (N, Cout, Ho, Wo), out.shape

    ref = reference(x, w1, b1, wt, bt)
    err = float(jnp.max(jnp.abs(out - ref)))
    assert err < 1e-3, f"max abs err {err}"
    print("KERNEL_OK")
</pallas_src>

<mosaic_0001>
module attributes {stable_mosaic.version = 11 : i64} {
  func.func @fused_convt_kernel(%arg0: i32, %arg1: memref<1x32x1024xf32, #tpu.memory_space<vmem>>, %arg2: memref<288x32xf32, #tpu.memory_space<vmem>>, %arg3: memref<288x1xf32, #tpu.memory_space<vmem>>, %arg4: memref<1x288x1024xf32, #tpu.memory_space<vmem>>) attributes {dimension_semantics = [#tpu.dimension_semantics<parallel>], iteration_bounds = array<i64: 2>, scalar_prefetch = 0 : i64, scratch_operands = 0 : i64, tpu.core_type = #tpu.core_type<tc>, window_params = [{transform_indices = @transform_0, window_bounds = array<i64: 1, 32, 1024>}, {pipeline_mode = #tpu.pipeline_mode<synchronous>, transform_indices = @transform_1, window_bounds = array<i64: 288, 32>}, {pipeline_mode = #tpu.pipeline_mode<synchronous>, transform_indices = @transform_2, window_bounds = array<i64: 288, 1>}, {transform_indices = @transform_3, window_bounds = array<i64: 1, 288, 1024>}]} {
    %c0 = arith.constant 0 : index
    %c0_0 = arith.constant 0 : index
    %0 = vector.load %arg2[%c0, %c0_0] : memref<288x32xf32, #tpu.memory_space<vmem>>, vector<288x32xf32>
    %c0_1 = arith.constant 0 : index
    %c0_2 = arith.constant 0 : index
    %c0_3 = arith.constant 0 : index
    %1 = vector.load %arg1[%c0_1, %c0_2, %c0_3] : memref<1x32x1024xf32, #tpu.memory_space<vmem>>, vector<1x32x1024xf32>
    %2 = vector.shape_cast %1 : vector<1x32x1024xf32> to vector<32x1024xf32>
    %cst = arith.constant dense<0.000000e+00> : vector<288x1024xf32>
    %3 = tpu.matmul %0, %2, %cst {dimension_numbers = #tpu.dot_dimension_numbers<[1], [0], [0], [1], [0, 0, 1, 1], [], []>} : vector<288x32xf32>, vector<32x1024xf32>, vector<288x1024xf32> -> vector<288x1024xf32>
    %c0_4 = arith.constant 0 : index
    %c0_5 = arith.constant 0 : index
    %4 = vector.load %arg3[%c0_4, %c0_5] : memref<288x1xf32, #tpu.memory_space<vmem>>, vector<288x1xf32>
    %5 = vector.broadcast %4 : vector<288x1xf32> to vector<288x1024xf32>
    %6 = arith.addf %3, %5 : vector<288x1024xf32>
    %7 = arith.negf %6 : vector<288x1024xf32>
    %8 = math.exp %7 : vector<288x1024xf32>
    %cst_6 = arith.constant 1.000000e+00 : f32
    %9 = vector.broadcast %cst_6 : f32 to vector<288x1024xf32>
    %10 = arith.addf %9, %8 : vector<288x1024xf32>
    %11 = arith.divf %9, %10 : vector<288x1024xf32>
    %c0_7 = arith.constant 0 : index
    %c0_8 = arith.constant 0 : index
    %c0_9 = arith.constant 0 : index
    %12 = vector.load %arg4[%c0_7, %c0_8, %c0_9] : memref<1x288x1024xf32, #tpu.memory_space<vmem>>, vector<1x288x1024xf32>
    %13 = vector.shape_cast %12 : vector<1x288x1024xf32> to vector<288x1024xf32>
    %14 = vector.shape_cast %11 : vector<288x1024xf32> to vector<1x288x1024xf32>
    tpu.vector_store %arg4[%c0_7, %c0_8, %c0_9], %14 {strides = array<i32>} : memref<1x288x1024xf32, #tpu.memory_space<vmem>>, vector<1x288x1024xf32>,
    return
  }
  func.func @transform_0(%arg0: i32) -> (i32, i32, i32) {
    %c0_i32 = arith.constant 0 : i32
    %c0_i32_0 = arith.constant 0 : i32
    %c0_i32_1 = arith.constant 0 : i32
    return %arg0, %c0_i32, %c0_i32_0 : i32, i32, i32
  }
  func.func @transform_1(%arg0: i32) -> (i32, i32) {
    %c0_i32 = arith.constant 0 : i32
    %c0_i32_0 = arith.constant 0 : i32
    %c0_i32_1 = arith.constant 0 : i32
    return %c0_i32, %c0_i32_0 : i32, i32
  }
  func.func @transform_2(%arg0: i32) -> (i32, i32) {
    %c0_i32 = arith.constant 0 : i32
    %c0_i32_0 = arith.constant 0 : i32
    %c0_i32_1 = arith.constant 0 : i32
    return %c0_i32, %c0_i32_0 : i32, i32
  }
  func.func @transform_3(%arg0: i32) -> (i32, i32, i32) {
    %c0_i32 = arith.constant 0 : i32
    %c0_i32_0 = arith.constant 0 : i32
    %c0_i32_1 = arith.constant 0 : i32
    return %arg0, %c0_i32, %c0_i32_0 : i32, i32, i32
  }
}

</mosaic_0001>

<llo_original>
// kernel: tile.9
$region0: #{tile.9}
  %s0 = inlined_call_operand.vmem [shape: f32[9,32], index: 0, kind: input, shape index: {}]
  %s1 = inlined_call_operand.vmem [shape: f32[288], index: 1, kind: output, shape index: {}]
  $region1: #{tile.9} parent=0
    #allocation0 [shape = 'u8[4096]{0}', space=vmem, size = 0x1000, scoped, tag = 'scoped mem for output reshape']
    %v2 = vld [vmem:[%s0] ss:$4 sm:$0x7]
    %vm3 = vcmask 261120
    %4 = vst.msk [vmem:[#allocation0] sm:$0x7] %vm3, %v2
    %s5 = scalar_lea.vmem %s0, 3
    %s6 = smov 3
    %v7 = vld [vmem:[%s5] ss:$4 sm:%s6]
    %8 = vrot.lane.b32.xlu0 %v7, 96
    %v9 = vpop.permute.xlu0 %8
    %vm10 = vcmask 1048320
    %11 = vst.msk [vmem:[#allocation0] sm:$0x3] %vm10, %v9
    %s12 = scalar_lea.vmem %s0, 2
    %s13 = smov 3
    %v14 = vld [vmem:[%s12] ss:$4 sm:%s13]
    %15 = vrot.lane.b32.xlu0 %v14, 64
    %v16 = vpop.permute.xlu0 %15
    %vm17 = vcmask 785920
    %18 = vst.msk [vmem:[#allocation0] sm:$0x3] %vm17, %v16
    %s19 = scalar_lea.vmem %s0, 1
    %s20 = smov 3
    %v21 = vld [vmem:[%s19] ss:$4 sm:%s20]
    %22 = vrot.lane.b32.xlu0 %v21, 32
    %v23 = vpop.permute.xlu0 %22
    %vm24 = vcmask 523520
    %25 = vst.msk [vmem:[#allocation0] sm:$0x3] %vm24, %v23
    %s27 = sshllo.u32 0, 4
    %v29 = vld [vmem:[#allocation0] sm:%s27]
    %s30 = sshllo.u32 0, 4
    %31 = vst [vmem:[%s1] sm:%s30] %v29

// kernel: tile.8
$region0: #{tile.8}
  #allocation2 [shape = 's32[1]{0}', space=sflag, size = 0x4, scoped, tag = 'scoped memory for tile.8']
  %s0 = inlined_call_operand.hbm [shape: f32[32], index: 0, kind: input, shape index: {}]
  %s1 = inlined_call_operand.vmem [shape: f32[9,32], index: 1, kind: output, shape index: {}]
  $region1: #{tile.8} parent=0
    #allocation0 [shape = 'u8[512]{0}', space=vmem, size = 0x400, scoped, tag = 'operand span for operand 0']
    #allocation1 [shape = 's32[1]{0}', space=sflag, size = 0x4, scoped, tag = 'scoped memory for tile.8']
    %2 = vsyncpa [#allocation1], 0
    // Predicated region
    $region2: #{tile.8} parent=1 // pred_check
      _
    $region3: #{tile.8} parent=1 // pred_check_branch
      %4 = sbr.rel (0) target = $region5
    $region4: #{tile.8} parent=1 // pred_region
      %s6 = ssub.s32 16, 16
      %7 = vsyncadd [#allocation1], %s6
      %s9 = sshll.u32 [#allocation0], 4
      %s10 = int_to_ptr.vmem [resolvable:$true] %s9
      %12 = dma.hbm_to_vmem [thread:$0]  %s0, 16, %s10, [#allocation1]
    $region5: #{tile.8} parent=1 // pred_fallthru
      _
    // Predicated region
    $region6: #{tile.8} parent=1 // pred_check
      _
    $region7: #{tile.8} parent=1 // pred_check_branch
      %14 = sbr.rel (0) target = $region9
    $region8: #{tile.8} parent=1 // pred_region
      %15 = dma.done [#allocation1], 16
    $region9: #{tile.8} parent=1 // pred_fallthru
      _
    %v16 = vld [vmem:[#allocation0] ss:$0 sm:$0xff]
    %17 = vst [vmem:[%s1] sm:$0xff] %v16
    %s18 = scalar_lea.vmem %s1, 8
    %19 = vst [vmem:[%s18] sm:$0xff] %v16
    %20 = vsyncpa [#allocation1], 1

// kernel: model_forward.1
$region0: #{model_forward.1}
  #allocation0 [shape = 'u32[]', space=smem, size = 0x4, offset = 0x4, fixed_abs, tag = 'smem constant byte address 0x4 - core index']
  #allocation1 [shape = 'u32[144,128]{1,0:T(1,128)}', space=vmem, size = 0x12000, scoped, tag = 'internal scratch']
  %s0 = inlined_call_operand.vmem [shape: f32[2,32,1024], index: 0, kind: input, shape index: {}]
  %s1 = inlined_call_operand.vmem [shape: f32[288,32], index: 1, kind: input, shape index: {}]
  %s2 = inlined_call_operand.vmem [shape: f32[288,1], index: 2, kind: input, shape index: {}]
  %s3 = inlined_call_operand.vmem [shape: f32[2,288,1024], index: 3, kind: output, shape index: {}]
  %s4 = sld [smem:[#allocation0]]
  $region45: #{model_forward.1} parent=0
    _
  %s6 = ssub.s32 1, %s4
  %s7 = scalar_select 0, %s6, %s4
  loop: start=0, step=1, limit=4
  $region2: #{model_forward.1} parent=0 // loop_pre_header
    _
  $region3: #{model_forward.1} parent=0 // loop_header
    %s9 = sphi 0, %s13
    %p10 = scmp.ge.s32.totalorder %s9, 4
    %s19 = sphi 0, %s21
    %s22 = sphi 0, %s19
    %s23 = sphi 0, %s22
    %s39 = sphi 0, %s23
    %s43 = sphi 0, %s43
    %s45 = sphi 0, %s43
    %s46 = sphi 0, %s45
    %s60 = sphi 0, %s46
    %s64 = sphi 0, %s64
    %s66 = sphi 0, %s64
    %s67 = sphi 0, %s66
    %s81 = sphi 0, %s67
    %s87 = sphi 0, %s89
    %s90 = sphi 0, %s87
    %s91 = sphi 0, %s90
    %s107 = sphi 0, %s91
  $region4: #{model_forward.1} parent=0 // loop_header_branch
    %12 = sbr.rel (%p10) target = $region8
  $region5: #{model_forward.1} parent=0 // loop_body
    %s14 = ssub.s32 %s9, 1
    %s15 = ssub.s32 %s9, 2
    %s16 = sadd.s32 %s9, 1
    %s17 = ssub.s32 %s9, %s16
    %p18 = scmp.eq.s32.totalorder %s17, 0
    %s20 = sadd.s32 %s19, 1
    %s21 = scalar_select %p18, %s19, %s20
    %p24 = pneg %p18
    %p25 = scmp.eq.s32.totalorder %s9, 1
    %p26 = por %p24, %p25
    %p27 = scmp.ne.s32.totalorder %s19, %s22
    %p28 = scmp.eq.s32.totalorder %s9, 0
    %p29 = por %p27, %p28
    %p30 = scmp.ne.s32.totalorder %s19, %s22
    %p31 = scmp.eq.s32.totalorder %s14, 1
    %p32 = por %p30, %p31
    %p33 = scmp.ne.s32.totalorder %s22, %s23
    %p34 = scmp.eq.s32.totalorder %s14, 0
    %p35 = por %p33, %p34
    %p36 = scmp.ne.s32.totalorder %s22, %s23
    %p37 = scmp.eq.s32.totalorder %s15, 1
    %p38 = por %p36, %p37
    %p40 = scmp.ne.s32.totalorder %s23, %s39
    %p41 = scmp.eq.s32.totalorder %s15, 0
    %p42 = por %p40, %p41
    %s44 = sadd.s32 %s43, 1
    %p47 = scmp.eq.s32.totalorder %s9, 1
    %p48 = scmp.ne.s32.totalorder %s43, %s45
    %p49 = scmp.eq.s32.totalorder %s9, 0
    %p50 = por %p48, %p49
    %p51 = scmp.ne.s32.totalorder %s43, %s45
    %p52 = scmp.eq.s32.totalorder %s14, 1
    %p53 = por %p51, %p52
    %p54 = scmp.ne.s32.totalorder %s45, %s46
    %p55 = scmp.eq.s32.totalorder %s14, 0
    %p56 = por %p54, %p55
    %p57 = scmp.ne.s32.totalorder %s45, %s46
    %p58 = scmp.eq.s32.totalorder %s15, 1
    %p59 = por %p57, %p58
    %p61 = scmp.ne.s32.totalorder %s46, %s60
    %p62 = scmp.eq.s32.totalorder %s15, 0
    %p63 = por %p61, %p62
    %s65 = sadd.s32 %s64, 1
    %p68 = scmp.eq.s32.totalorder %s9, 1
    %p69 = scmp.ne.s32.totalorder %s64, %s66
    %p70 = scmp.eq.s32.totalorder %s9, 0
    %p71 = por %p69, %p70
    %p72 = scmp.ne.s32.totalorder %s64, %s66
    %p73 = scmp.eq.s32.totalorder %s14, 1
    %p74 = por %p72, %p73
    %p75 = scmp.ne.s32.totalorder %s66, %s67
    %p76 = scmp.eq.s32.totalorder %s14, 0
    %p77 = por %p75, %p76
    %p78 = scmp.ne.s32.totalorder %s66, %s67
    %p79 = scmp.eq.s32.totalorder %s15, 1
    %p80 = por %p78, %p79
    %p82 = scmp.ne.s32.totalorder %s67, %s81
    %p83 = scmp.eq.s32.totalorder %s15, 0
    %p84 = por %p82, %p83
    %s85 = ssub.s32 %s9, %s16
    %p86 = scmp.eq.s32.totalorder %s85, 0
    %s88 = sadd.s32 %s87, 1
    %s89 = scalar_select %p86, %s87, %s88
    %p92 = pneg %p86
    %p93 = scmp.eq.s32.totalorder %s9, 1
    %p94 = por %p92, %p93
    %p95 = scmp.ne.s32.totalorder %s87, %s90
    %p96 = scmp.eq.s32.totalorder %s9, 0
    %p97 = por %p95, %p96
    %p98 = scmp.ne.s32.totalorder %s87, %s90
    %p99 = scmp.eq.s32.totalorder %s14, 1
    %p100 = por %p98, %p99
    %p101 = scmp.ne.s32.totalorder %s90, %s91
    %p102 = scmp.eq.s32.totalorder %s14, 0
    %p103 = por %p101, %p102
    %p104 = scmp.ne.s32.totalorder %s90, %s91
    %p105 = scmp.eq.s32.totalorder %s15, 1
    %p106 = por %p104, %p105
    %p108 = scmp.ne.s32.totalorder %s91, %s107
    %p109 = scmp.eq.s32.totalorder %s15, 0
    %p110 = por %p108, %p109
    %p111 = scmp.le.s32.totalorder 1, %s9
    %p112 = scmp.lt.s32.totalorder %s9, 3
    %p113 = pnand %p111, %p112
    %p114 = pneg %p113
    // Predicated region
    $region9: #{model_forward.1} parent=5 // pred_check
      _
    $region10: #{model_forward.1} parent=5 // pred_check_branch
      %116 = sbr.rel (%p113) target = $region12
    $region11: #{model_forward.1} parent=5 // pred_region
      %s117 = ssub.s32 %s9, 1
      // Predicated region
      $region13: #{model_forward.1} parent=11 // pred_check
        %p118 = pneg %p56
      $region14: #{model_forward.1} parent=11 // pred_check_branch
        %120 = sbr.rel (%p118) target = $region16
      $region15: #{model_forward.1} parent=11 // pred_region
        _
      $region16: #{model_forward.1} parent=11 // pred_fallthru
        _
      // Predicated region
      $region17: #{model_forward.1} parent=11 // pred_check
        %p121 = pneg %p77
      $region18: #{model_forward.1} parent=11 // pred_check_branch
        %123 = sbr.rel (%p121) target = $region20
      $region19: #{model_forward.1} parent=11 // pred_region
        _
      $region20: #{model_forward.1} parent=11 // pred_fallthru
        _
    $region12: #{model_forward.1} parent=5 // pred_fallthru
      _
    %p124 = scmp.lt.s32.totalorder %s9, 2
    // Predicated region
    $region21: #{model_forward.1} parent=5 // pred_check
      %p125 = pneg %p124
    $region22: #{model_forward.1} parent=5 // pred_check_branch
      %127 = sbr.rel (%p125) target = $region24
    $region23: #{model_forward.1} parent=5 // pred_region
      // Predicated region
      $region25: #{model_forward.1} parent=23 // pred_check
        %p128 = pneg %p29
      $region26: #{model_forward.1} parent=23 // pred_check_branch
        %130 = sbr.rel (%p128) target = $region28
      $region27: #{model_forward.1} parent=23 // pred_region
        %p131 = scmp.lt.s32.totalorder %s9, 1
        %s132 = scalar_select %p131, %s9, 1
        %s133 = smul.addr %s132, 32
        %s134 = smul.addr %s133, 8
        %s135 = scalar_lea.vmem %s0, %s134
      $region28: #{model_forward.1} parent=23 // pred_fallthru
        _
    $region24: #{model_forward.1} parent=5 // pred_fallthru
      _
    %p136 = scmp.le.s32.totalorder 1, %s9
    %p137 = scmp.lt.s32.totalorder %s9, 3
    %p138 = pnand %p136, %p137
    %p139 = pneg %p138
    // Predicated region
    $region29: #{model_forward.1} parent=5 // pred_check
      _
    $region30: #{model_forward.1} parent=5 // pred_check_branch
      %141 = sbr.rel (%p138) target = $region32
    $region31: #{model_forward.1} parent=5 // pred_region
      %s142 = ssub.s32 %s9, 1
      %p143 = scmp.lt.s32.totalorder %s14, 1
      %s144 = scalar_select %p143, %s14, 1
      %s145 = smul.addr %s144, 32
      %s146 = smul.addr %s145, 8
      %s147 = scalar_lea.vmem %s0, %s146
      %p148 = pneg %p35
      %p149 = pneg %p32
      %p150 = pneg %p56
      %p151 = pneg %p53
      %p152 = pneg %p77
      %p153 = pneg %p74
      %p154 = pneg %p103
      %p155 = pneg %p100
      %p156 = scmp.lt.s32.totalorder %s14, 1
      %s157 = scalar_select %p156, %s14, 1
      %s158 = smul.addr %s157, 288
      %s159 = smul.addr %s158, 8
      %s160 = scalar_lea.vmem %s3, %s159
      %p161 = scmp.lt.s32.totalorder %s14, 1
      %s162 = scalar_select %p161, %s14, 1
      %s163 = smul.addr %s162, 32
      %s164 = smul.addr %s163, 8
      %s165 = scalar_lea.vmem %s0, %s164
      %p166 = scmp.lt.s32.totalorder %s14, 1
      %s167 = scalar_select %p166, %s14, 1
      %s168 = smul.addr %s167, 288
      %s169 = smul.addr %s168, 8
      %s170 = scalar_lea.vmem %s3, %s169
      %v171 = vld [vmem:[%s1] sm:$0xff]
      %v172 = vld [vmem:[%s1 + $0x8] sm:$0xff]
      %v173 = vld [vmem:[%s1 + $0x10] sm:$0xff]
      %v174 = vld [vmem:[%s1 + $0x18] sm:$0xff]
      %v175 = vld [vmem:[%s1 + $0x20] sm:$0xff]
      %v176 = vld [vmem:[%s1 + $0x28] sm:$0xff]
      %v177 = vld [vmem:[%s1 + $0x30] sm:$0xff]
      %v178 = vld [vmem:[%s1 + $0x38] sm:$0xff]
      %v179 = vld [vmem:[%s1 + $0x40] sm:$0xff]
      %v180 = vld [vmem:[%s1 + $0x48] sm:$0xff]
      %v181 = vld [vmem:[%s1 + $0x50] sm:$0xff]
      %v182 = vld [vmem:[%s1 + $0x58] sm:$0xff]
      %v183 = vld [vmem:[%s1 + $0x60] sm:$0xff]
      %v184 = vld [vmem:[%s1 + $0x68] sm:$0xff]
      %v185 = vld [vmem:[%s1 + $0x70] sm:$0xff]
      %v186 = vld [vmem:[%s1 + $0x78] sm:$0xff]
      %v187 = vld [vmem:[%s1 + $0x80] sm:$0xff]
      %v188 = vld [vmem:[%s1 + $0x88] sm:$0xff]
      %v189 = vld [vmem:[%s1 + $0x90] sm:$0xff]
      %v190 = vld [vmem:[%s1 + $0x98] sm:$0xff]
      %v191 = vld [vmem:[%s1 + $0xa0] sm:$0xff]
      %v192 = vld [vmem:[%s1 + $0xa8] sm:$0xff]
      %v193 = vld [vmem:[%s1 + $0xb0] sm:$0xff]
      %v194 = vld [vmem:[%s1 + $0xb8] sm:$0xff]
      %v195 = vld [vmem:[%s1 + $0xc0] sm:$0xff]
      %v196 = vld [vmem:[%s1 + $0xc8] sm:$0xff]
      %v197 = vld [vmem:[%s1 + $0xd0] sm:$0xff]
      %v198 = vld [vmem:[%s1 + $0xd8] sm:$0xff]
      %v199 = vld [vmem:[%s1 + $0xe0] sm:$0xff]
      %v200 = vld [vmem:[%s1 + $0xe8] sm:$0xff]
      %v201 = vld [vmem:[%s1 + $0xf0] sm:$0xff]
      %v202 = vld [vmem:[%s1 + $0xf8] sm:$0xff]
      %v203 = vld [vmem:[%s1 + $0x100] sm:$0xff]
      %v204 = vld [vmem:[%s1 + $0x108] sm:$0xff]
      %v205 = vld [vmem:[%s1 + $0x110] sm:$0xff]
      %v206 = vld [vmem:[%s1 + $0x118] sm:$0xff]
      %v207 = vld [vmem:[%s165] sm:$0xff]
      %v208 = vld [vmem:[%s165 + $0x8] sm:$0xff]
      %v209 = vld [vmem:[%s165 + $0x10] sm:$0xff]
      %v210 = vld [vmem:[%s165 + $0x18] sm:$0xff]
      %v211 = vld [vmem:[%s165 + $0x20] sm:$0xff]
      %v212 = vld [vmem:[%s165 + $0x28] sm:$0xff]
      %v213 = vld [vmem:[%s165 + $0x30] sm:$0xff]
      %v214 = vld [vmem:[%s165 + $0x38] sm:$0xff]
      %v215 = vld [vmem:[%s165 + $0x40] sm:$0xff]
      %v216 = vld [vmem:[%s165 + $0x48] sm:$0xff]
      %v217 = vld [vmem:[%s165 + $0x50] sm:$0xff]
      %v218 = vld [vmem:[%s165 + $0x58] sm:$0xff]
      %v219 = vld [vmem:[%s165 + $0x60] sm:$0xff]
      %v220 = vld [vmem:[%s165 + $0x68] sm:$0xff]
      %v221 = vld [vmem:[%s165 + $0x70] sm:$0xff]
      %v222 = vld [vmem:[%s165 + $0x78] sm:$0xff]
      %v223 = vld [vmem:[%s165 + $0x80] sm:$0xff]
      %v224 = vld [vmem:[%s165 + $0x88] sm:$0xff]
      %v225 = vld [vmem:[%s165 + $0x90] sm:$0xff]
      %v226 = vld [vmem:[%s165 + $0x98] sm:$0xff]
      %v227 = vld [vmem:[%s165 + $0xa0] sm:$0xff]
      %v228 = vld [vmem:[%s165 + $0xa8] sm:$0xff]
      %v229 = vld [vmem:[%s165 + $0xb0] sm:$0xff]
      %v230 = vld [vmem:[%s165 + $0xb8] sm:$0xff]
      %v231 = vld [vmem:[%s165 + $0xc0] sm:$0xff]
      %v232 = vld [vmem:[%s165 + $0xc8] sm:$0xff]
      %v233 = vld [vmem:[%s165 + $0xd0] sm:$0xff]
      %v234 = vld [vmem:[%s165 + $0xd8] sm:$0xff]
      %v235 = vld [vmem:[%s165 + $0xe0] sm:$0xff]
      %v236 = vld [vmem:[%s165 + $0xe8] sm:$0xff]
      %v237 = vld [vmem:[%s165 + $0xf0] sm:$0xff]
      %v238 = vld [vmem:[%s165 + $0xf8] sm:$0xff]
      %v239 = vld [vmem:[%s2] sm:$0xff]
      %v240 = vld [vmem:[%s2 + $0x8] sm:$0xff]
      %v241 = vld [vmem:[%s2 + $0x10] sm:$0xff]
      %v242 = vld [vmem:[%s2 + $0x18] sm:$0xff]
      %v243 = vld [vmem:[%s2 + $0x20] sm:$0xff]
      %v244 = vld [vmem:[%s2 + $0x28] sm:$0xff]
      %v245 = vld [vmem:[%s2 + $0x30] sm:$0xff]
      %v246 = vld [vmem:[%s2 + $0x38] sm:$0xff]
      %v247 = vld [vmem:[%s2 + $0x40] sm:$0xff]
      %v248 = vld [vmem:[%s2 + $0x48] sm:$0xff]
      %v249 = vld [vmem:[%s2 + $0x50] sm:$0xff]
      %v250 = vld [vmem:[%s2 + $0x58] sm:$0xff]
      %v251 = vld [vmem:[%s2 + $0x60] sm:$0xff]
      %v252 = vld [vmem:[%s2 + $0x68] sm:$0xff]
      %v253 = vld [vmem:[%s2 + $0x70] sm:$0xff]
      %v254 = vld [vmem:[%s2 + $0x78] sm:$0xff]
      %v255 = vld [vmem:[%s2 + $0x80] sm:$0xff]
      %v256 = vld [vmem:[%s2 + $0x88] sm:$0xff]
      %v257 = vld [vmem:[%s2 + $0x90] sm:$0xff]
      %v258 = vld [vmem:[%s2 + $0x98] sm:$0xff]
      %v259 = vld [vmem:[%s2 + $0xa0] sm:$0xff]
      %v260 = vld [vmem:[%s2 + $0xa8] sm:$0xff]
      %v261 = vld [vmem:[%s2 + $0xb0] sm:$0xff]
      %v262 = vld [vmem:[%s2 + $0xb8] sm:$0xff]
      %v263 = vld [vmem:[%s2 + $0xc0] sm:$0xff]
      %v264 = vld [vmem:[%s2 + $0xc8] sm:$0xff]
      %v265 = vld [vmem:[%s2 + $0xd0] sm:$0xff]
      %v266 = vld [vmem:[%s2 + $0xd8] sm:$0xff]
      %v267 = vld [vmem:[%s2 + $0xe0] sm:$0xff]
      %v268 = vld [vmem:[%s2 + $0xe8] sm:$0xff]
      %v269 = vld [vmem:[%s2 + $0xf0] sm:$0xff]
      %v270 = vld [vmem:[%s2 + $0xf8] sm:$0xff]
      %v271 = vld [vmem:[%s2 + $0x100] sm:$0xff]
      %v272 = vld [vmem:[%s2 + $0x108] sm:$0xff]
      %v273 = vld [vmem:[%s2 + $0x110] sm:$0xff]
      %v274 = vld [vmem:[%s2 + $0x118] sm:$0xff]
      %276 = vset.pattern.permute.xlu0 0
      %277 = vperm.xlu0 %276, %v239
      %v278 = vpop.permute.xlu0 %277
      %281 = vset.pattern.permute.xlu0 0
      %282 = vperm.xlu0 %281, %v240
      %v283 = vpop.permute.xlu0 %282
      %286 = vset.pattern.permute.xlu0 0
      %287 = vperm.xlu0 %286, %v241
      %v288 = vpop.permute.xlu0 %287
      %291 = vset.pattern.permute.xlu0 0
      %292 = vperm.xlu0 %291, %v242
      %v293 = vpop.permute.xlu0 %292
      %296 = vset.pattern.permute.xlu0 0
      %297 = vperm.xlu0 %296, %v243
      %v298 = vpop.permute.xlu0 %297
      %301 = vset.pattern.permute.xlu0 0
      %302 = vperm.xlu0 %301, %v244
      %v303 = vpop.permute.xlu0 %302
      %306 = vset.pattern.permute.xlu0 0
      %307 = vperm.xlu0 %306, %v245
      %v308 = vpop.permute.xlu0 %307
      %311 = vset.pattern.permute.xlu0 0
      %312 = vperm.xlu0 %311, %v246
      %v313 = vpop.permute.xlu0 %312
      %316 = vset.pattern.permute.xlu0 0
      %317 = vperm.xlu0 %316, %v247
      %v318 = vpop.permute.xlu0 %317
      %321 = vset.pattern.permute.xlu0 0
      %322 = vperm.xlu0 %321, %v248
      %v323 = vpop.permute.xlu0 %322
      %326 = vset.pattern.permute.xlu0 0
      %327 = vperm.xlu0 %326, %v249
      %v328 = vpop.permute.xlu0 %327
      %331 = vset.pattern.permute.xlu0 0
      %332 = vperm.xlu0 %331, %v250
      %v333 = vpop.permute.xlu0 %332
      %336 = vset.pattern.permute.xlu0 0
      %337 = vperm.xlu0 %336, %v251
      %v338 = vpop.permute.xlu0 %337
      %341 = vset.pattern.permute.xlu0 0
      %342 = vperm.xlu0 %341, %v252
      %v343 = vpop.permute.xlu0 %342
      %346 = vset.pattern.permute.xlu0 0
      %347 = vperm.xlu0 %346, %v253
      %v348 = vpop.permute.xlu0 %347
      %351 = vset.pattern.permute.xlu0 0
      %352 = vperm.xlu0 %351, %v254
      %v353 = vpop.permute.xlu0 %352
      %356 = vset.pattern.permute.xlu0 0
      %357 = vperm.xlu0 %356, %v255
      %v358 = vpop.permute.xlu0 %357
      %361 = vset.pattern.permute.xlu0 0
      %362 = vperm.xlu0 %361, %v256
      %v363 = vpop.permute.xlu0 %362
      %366 = vset.pattern.permute.xlu0 0
      %367 = vperm.xlu0 %366, %v257
      %v368 = vpop.permute.xlu0 %367
      %371 = vset.pattern.permute.xlu0 0
      %372 = vperm.xlu0 %371, %v258
      %v373 = vpop.permute.xlu0 %372
      %376 = vset.pattern.permute.xlu0 0
      %377 = vperm.xlu0 %376, %v259
      %v378 = vpop.permute.xlu0 %377
      %381 = vset.pattern.permute.xlu0 0
      %382 = vperm.xlu0 %381, %v260
      %v383 = vpop.permute.xlu0 %382
      %386 = vset.pattern.permute.xlu0 0
      %387 = vperm.xlu0 %386, %v261
      %v388 = vpop.permute.xlu0 %387
      %391 = vset.pattern.permute.xlu0 0
      %392 = vperm.xlu0 %391, %v262
      %v393 = vpop.permute.xlu0 %392
      %396 = vset.pattern.permute.xlu0 0
      %397 = vperm.xlu0 %396, %v263
      %v398 = vpop.permute.xlu0 %397
      %401 = vset.pattern.permute.xlu0 0
      %402 = vperm.xlu0 %401, %v264
      %v403 = vpop.permute.xlu0 %402
      %406 = vset.pattern.permute.xlu0 0
      %407 = vperm.xlu0 %406, %v265
      %v408 = vpop.permute.xlu0 %407
      %411 = vset.pattern.permute.xlu0 0
      %412 = vperm.xlu0 %411, %v266
      %v413 = vpop.permute.xlu0 %412
      %416 = vset.pattern.permute.xlu0 0
      %417 = vperm.xlu0 %416, %v267
      %v418 = vpop.permute.xlu0 %417
      %421 = vset.pattern.permute.xlu0 0
      %422 = vperm.xlu0 %421, %v268
      %v423 = vpop.permute.xlu0 %422
      %426 = vset.pattern.permute.xlu0 0
      %427 = vperm.xlu0 %426, %v269
      %v428 = vpop.permute.xlu0 %427
      %431 = vset.pattern.permute.xlu0 0
      %432 = vperm.xlu0 %431, %v270
      %v433 = vpop.permute.xlu0 %432
      %436 = vset.pattern.permute.xlu0 0
      %437 = vperm.xlu0 %436, %v271
      %v438 = vpop.permute.xlu0 %437
      %441 = vset.pattern.permute.xlu0 0
      %442 = vperm.xlu0 %441, %v272
      %v443 = vpop.permute.xlu0 %442
      %446 = vset.pattern.permute.xlu0 0
      %447 = vperm.xlu0 %446, %v273
      %v448 = vpop.permute.xlu0 %447
      %451 = vset.pattern.permute.xlu0 0
      %452 = vperm.xlu0 %451, %v274
      %v453 = vpop.permute.xlu0 %452
      %vm455 = vcmask 261120
      %v457 = vsel %vm455, %v171, 0
      %v460 = vsel %vm455, %v172, 0
      %v463 = vsel %vm455, %v173, 0
      %v466 = vsel %vm455, %v174, 0
      %v469 = vsel %vm455, %v175, 0
      %v472 = vsel %vm455, %v176, 0
      %v475 = vsel %vm455, %v177, 0
      %v478 = vsel %vm455, %v178, 0
      %v481 = vsel %vm455, %v179, 0
      %v484 = vsel %vm455, %v180, 0
      %v487 = vsel %vm455, %v181, 0
      %v490 = vsel %vm455, %v182, 0
      %v493 = vsel %vm455, %v183, 0
      %v496 = vsel %vm455, %v184, 0
      %v499 = vsel %vm455, %v185, 0
      %v502 = vsel %vm455, %v186, 0
      %v505 = vsel %vm455, %v187, 0
      %v508 = vsel %vm455, %v188, 0
      %v511 = vsel %vm455, %v189, 0
      %v514 = vsel %vm455, %v190, 0
      %v517 = vsel %vm455, %v191, 0
      %v520 = vsel %vm455, %v192, 0
      %v523 = vsel %vm455, %v193, 0
      %v526 = vsel %vm455, %v194, 0
      %v529 = vsel %vm455, %v195, 0
      %v532 = vsel %vm455, %v196, 0
      %v535 = vsel %vm455, %v197, 0
      %v538 = vsel %vm455, %v198, 0
      %v541 = vsel %vm455, %v199, 0
      %v544 = vsel %vm455, %v200, 0
      %v547 = vsel %vm455, %v201, 0
      %v550 = vsel %vm455, %v202, 0
      %v553 = vsel %vm455, %v203, 0
      %v556 = vsel %vm455, %v204, 0
      %v559 = vsel %vm455, %v205, 0
      %v562 = vsel %vm455, %v206, 0
      %564 = vmatprep.subr.mxu0 %v208
      %565 = vmatpush1.msra.mxu0 %v207
      %566 = vmatprep.subr.mxu0 %v216
      %567 = vmatpush1.msra.mxu0 %v215
      %568 = vmatprep.subr.mxu0 %v224
      %569 = vmatpush1.msra.mxu0 %v223
      %570 = vmatprep.subr.mxu0 %v232
      %571 = vmatpush1.msra.mxu0 %v231
      %572 = vmatprep.subr.mxu0 0.0
      %573 = vmatpush1.msra.mxu0 0.0
      %574 = vmatprep.subr.mxu0 0.0
      %575 = vmatpush1.msra.mxu0 0.0
      %576 = vmatprep.subr.mxu0 0.0
      %577 = vmatpush1.msra.mxu0 0.0
      %578 = vmatprep.subr.mxu0 0.0
      %579 = vmatpush1.msra.mxu0 0.0
      %580 = vmatprep.subr.mxu0 0.0
      %581 = vmatpush1.msra.mxu0 0.0
      %582 = vmatprep.subr.mxu0 0.0
      %583 = vmatpush1.msra.mxu0 0.0
      %584 = vmatprep.subr.mxu0 0.0
      %585 = vmatpush1.msra.mxu0 0.0
      %586 = vmatprep.subr.mxu0 0.0
      %587 = vmatpush1.msra.mxu0 0.0
      %588 = vmatprep.subr.mxu0 0.0
      %589 = vmatpush1.msra.mxu0 0.0
      %590 = vmatprep.subr.mxu0 0.0
      %591 = vmatpush1.msra.mxu0 0.0
      %592 = vmatprep.subr.mxu0 0.0
      %593 = vmatpush1.msra.mxu0 0.0
      %594 = vmatprep.subr.mxu0 0.0
      %595 = vmatpush1.msra.mxu0 0.0
      %596 = vmatprep.subr.mxu0 0.0
      %597 = vmatpush1.msra.mxu0 0.0
      %598 = vmatprep.subr.mxu0 0.0
      %599 = vmatpush1.msra.mxu0 0.0
      %600 = vmatprep.subr.mxu0 0.0
      %601 = vmatpush1.msra.mxu0 0.0
      %602 = vmatprep.subr.mxu0 0.0
      %603 = vmatpush1.msra.mxu0 0.0
      %604 = vmatprep.subr.mxu0 0.0
      %605 = vmatpush1.msra.mxu0 0.0
      %606 = vmatprep.subr.mxu0 0.0
      %607 = vmatpush1.msra.mxu0 0.0
      %608 = vmatprep.subr.mxu0 0.0
      %609 = vmatpush1.msra.mxu0 0.0
      %610 = vmatprep.subr.mxu0 0.0
      %611 = vmatpush1.msra.mxu0 0.0
      %612 = vmatprep.subr.mxu0 0.0
      %613 = vmatpush1.msra.mxu0 0.0
      %614 = vmatprep.subr.mxu0 0.0
      %615 = vmatpush1.msra.mxu0 0.0
      %616 = vmatprep.subr.mxu0 0.0
      %617 = vmatpush1.msra.mxu0 0.0
      %618 = vmatprep.subr.mxu0 0.0
      %619 = vmatpush1.msra.mxu0 0.0
      %620 = vmatprep.subr.mxu0 0.0
      %621 = vmatpush1.msra.mxu0 0.0
      %622 = vmatprep.subr.mxu0 0.0
      %623 = vmatpush1.msra.mxu0 0.0
      %624 = vmatprep.subr.mxu0 0.0
      %625 = vmatpush1.msra.mxu0 0.0
      %626 = vmatprep.subr.mxu0 0.0
      %627 = vmatpush1.msra.mxu0 0.0
      %628 = vmatprep.mubr.f32.mxu0 0.0
      %629 = vmatmul.mubr.f32.gmra.mrb[0].mxu0 %v457
      %v630 = vpop.f32.mrb[0].mxu0
      %v631 = vadd.f32 %v278, %v630
      %v632 = vpop.f32.mrb[0].mxu0
      %v633 = vadd.f32 %v278, %v632
      %634 = vmatprep.mubr.f32.mxu0 0.0
      %635 = vmatmul.mubr.f32.gmra.mrb[0].mxu0 %v460
      %v636 = vpop.f32.mrb[0].mxu0
      %v637 = vadd.f32 %v283, %v636
      %v638 = vpop.f32.mrb[0].mxu0
      %v639 = vadd.f32 %v283, %v638
      %640 = vmatprep.mubr.f32.mxu0 0.0
      %641 = vmatmul.mubr.f32.gmra.mrb[0].mxu0 %v463
      %v642 = vpop.f32.mrb[0].mxu0
      %v643 = vadd.f32 %v288, %v642
      %v644 = vpop.f32.mrb[0].mxu0
      %v645 = vadd.f32 %v288, %v644
      %646 = vmatprep.mubr.f32.mxu0 0.0
      %647 = vmatmul.mubr.f32.gmra.mrb[0].mxu0 %v466
      %v648 = vpop.f32.mrb[0].mxu0
      %v649 = vadd.f32 %v293, %v648
      %v650 = vpop.f32.mrb[0].mxu0
      %v651 = vadd.f32 %v293, %v650
      %652 = vmatprep.mubr.f32.mxu0 0.0
      %653 = vmatmul.mubr.f32.gmra.mrb[0].mxu0 %v469
      %v654 = vpop.f32.mrb[0].mxu0
      %v655 = vadd.f32 %v298, %v654
      %v656 = vpop.f32.mrb[0].mxu0
      %v657 = vadd.f32 %v298, %v656
      %658 = vmatprep.mubr.f32.mxu0 0.0
      %659 = vmatmul.mubr.f32.gmra.mrb[0].mxu0 %v472
      %v660 = vpop.f32.mrb[0].mxu0
      %v661 = vadd.f32 %v303, %v660
      %v662 = vpop.f32.mrb[0].mxu0
      %v663 = vadd.f32 %v303, %v662
      %664 = vmatprep.mubr.f32.mxu0 0.0
      %665 = vmatmul.mubr.f32.gmra.mrb[0].mxu0 %v475
      %v666 = vpop.f32.mrb[0].mxu0
      %v667 = vadd.f32 %v308, %v666
      %v668 = vpop.f32.mrb[0].mxu0
      %v669 = vadd.f32 %v308, %v668
      %670 = vmatprep.mubr.f32.mxu0 0.0
      %671 = vmatmul.mubr.f32.gmra.mrb[0].mxu0 %v478
      %v672 = vpop.f32.mrb[0].mxu0
      %v673 = vadd.f32 %v313, %v672
      %v674 = vpop.f32.mrb[0].mxu0
      %v675 = vadd.f32 %v313, %v674
      %676 = vmatprep.mubr.f32.mxu0 0.0
      %677 = vmatmul.mubr.f32.gmra.mrb[0].mxu0 %v481
      %v678 = vpop.f32.mrb[0].mxu0
      %v679 = vadd.f32 %v318, %v678
      %v680 = vpop.f32.mrb[0].mxu0
      %v681 = vadd.f32 %v318, %v680
      %682 = vmatprep.mubr.f32.mxu0 0.0
      %683 = vmatmul.mubr.f32.gmra.mrb[0].mxu0 %v484
      %v684 = vpop.f32.mrb[0].mxu0
      %v685 = vadd.f32 %v323, %v684
      %v686 = vpop.f32.mrb[0].mxu0
      %v687 = vadd.f32 %v323, %v686
      %688 = vmatprep.mubr.f32.mxu0 0.0
      %689 = vmatmul.mubr.f32.gmra.mrb[0].mxu0 %v487
      %v690 = vpop.f32.mrb[0].mxu0
      %v691 = vadd.f32 %v328, %v690
      %v692 = vpop.f32.mrb[0].mxu0
      %v693 = vadd.f32 %v328, %v692
      %694 = vmatprep.mubr.f32.mxu0 0.0
      %695 = vmatmul.mubr.f32.gmra.mrb[0].mxu0 %v490
      %v696 = vpop.f32.mrb[0].mxu0
      %v697 = vadd.f32 %v333, %v696
      %v698 = vpop.f32.mrb[0].mxu0
      %v699 = vadd.f32 %v333, %v698
      %700 = vmatprep.mubr.f32.mxu0 0.0
      %701 = vmatmul.mubr.f32.gmra.mrb[0].mxu0 %v493
      %v702 = vpop.f32.mrb[0].mxu0
      %v703 = vadd.f32 %v338, %v702
      %v704 = vpop.f32.mrb[0].mxu0
      %v705 = vadd.f32 %v338, %v704
      %706 = vmatprep.mubr.f32.mxu0 0.0
      %707 = vmatmul.mubr.f32.gmra.mrb[0].mxu0 %v496
      %v708 = vpop.f32.mrb[0].mxu0
      %v709 = vadd.f32 %v343, %v708
      %v710 = vpop.f32.mrb[0].mxu0
      %v711 = vadd.f32 %v343, %v710
      %712 = vmatprep.mubr.f32.mxu0 0.0
      %713 = vmatmul.mubr.f32.gmra.mrb[0].mxu0 %v499
      %v714 = vpop.f32.mrb[0].mxu0
      %v715 = vadd.f32 %v348, %v714
      %v716 = vpop.f32.mrb[0].mxu0
      %v717 = vadd.f32 %v348, %v716
      %718 = vmatprep.mubr.f32.mxu0 0.0
      %719 = vmatmul.mubr.f32.gmra.mrb[0].mxu0 %v502
      %v720 = vpop.f32.mrb[0].mxu0
      %v721 = vadd.f32 %v353, %v720
      %v722 = vpop.f32.mrb[0].mxu0
      %v723 = vadd.f32 %v353, %v722
      %724 = vmatprep.mubr.f32.mxu0 0.0
      %725 = vmatmul.mubr.f32.gmra.mrb[0].mxu0 %v505
      %v726 = vpop.f32.mrb[0].mxu0
      %v727 = vadd.f32 %v358, %v726
      %v728 = vpop.f32.mrb[0].mxu0
      %v729 = vadd.f32 %v358, %v728
      %730 = vmatprep.mubr.f32.mxu0 0.0
      %731 = vmatmul.mubr.f32.gmra.mrb[0].mxu0 %v508
      %v732 = vpop.f32.mrb[0].mxu0
      %v733 = vadd.f32 %v363, %v732
      %v734 = vpop.f32.mrb[0].mxu0
      %v735 = vadd.f32 %v363, %v734
      %736 = vmatprep.mubr.f32.mxu0 0.0
      %737 = vmatmul.mubr.f32.gmra.mrb[0].mxu0 %v511
      %v738 = vpop.f32.mrb[0].mxu0
      %v739 = vadd.f32 %v368, %v738
      %v740 = vpop.f32.mrb[0].mxu0
      %v741 = vadd.f32 %v368, %v740
      %742 = vmatprep.mubr.f32.mxu0 0.0
      %743 = vmatmul.mubr.f32.gmra.mrb[0].mxu0 %v514
      %v744 = vpop.f32.mrb[0].mxu0
      %v745 = vadd.f32 %v373, %v744
      %v746 = vpop.f32.mrb[0].mxu0
      %v747 = vadd.f32 %v373, %v746
      %748 = vmatprep.mubr.f32.mxu0 0.0
      %749 = vmatmul.mubr.f32.gmra.mrb[0].mxu0 %v517
      %v750 = vpop.f32.mrb[0].mxu0
      %v751 = vadd.f32 %v378, %v750
      %v752 = vpop.f32.mrb[0].mxu0
      %v753 = vadd.f32 %v378, %v752
      %754 = vmatprep.mubr.f32.mxu0 0.0
      %755 = vmatmul.mubr.f32.gmra.mrb[0].mxu0 %v520
      %v756 = vpop.f32.mrb[0].mxu0
      %v757 = vadd.f32 %v383, %v756
      %v758 = vpop.f32.mrb[0].mxu0
      %v759 = vadd.f32 %v383, %v758
      %760 = vmatprep.mubr.f32.mxu0 0.0
      %761 = vmatmul.mubr.f32.gmra.mrb[0].mxu0 %v523
      %v762 = vpop.f32.mrb[0].mxu0
      %v763 = vadd.f32 %v388, %v762
      %v764 = vpop.f32.mrb[0].mxu0
      %v765 = vadd.f32 %v388, %v764
      %766 = vmatprep.mubr.f32.mxu0 0.0
      %767 = vmatmul.mubr.f32.gmra.mrb[0].mxu0 %v526
      %v768 = vpop.f32.mrb[0].mxu0
      %v769 = vadd.f32 %v393, %v768
      %v770 = vpop.f32.mrb[0].mxu0
      %v771 = vadd.f32 %v393, %v770
      %772 = vmatprep.mubr.f32.mxu0 0.0
      %773 = vmatmul.mubr.f32.gmra.mrb[0].mxu0 %v529
      %v774 = vpop.f32.mrb[0].mxu0
      %v775 = vadd.f32 %v398, %v774
      %v776 = vpop.f32.mrb[0].mxu0
      %v777 = vadd.f32 %v398, %v776
      %778 = vmatprep.mubr.f32.mxu0 0.0
      %779 = vmatmul.mubr.f32.gmra.mrb[0].mxu0 %v532
      %v780 = vpop.f32.mrb[0].mxu0
      %v781 = vadd.f32 %v403, %v780
      %v782 = vpop.f32.mrb[0].mxu0
      %v783 = vadd.f32 %v403, %v782
      %784 = vmatprep.mubr.f32.mxu0 0.0
      %785 = vmatmul.mubr.f32.gmra.mrb[0].mxu0 %v535
      %v786 = vpop.f32.mrb[0].mxu0
      %v787 = vadd.f32 %v408, %v786
      %v788 = vpop.f32.mrb[0].mxu0
      %v789 = vadd.f32 %v408, %v788
      %790 = vmatprep.mubr.f32.mxu0 0.0
      %791 = vmatmul.mubr.f32.gmra.mrb[0].mxu0 %v538
      %v792 = vpop.f32.mrb[0].mxu0
      %v793 = vadd.f32 %v413, %v792
      %v794 = vpop.f32.mrb[0].mxu0
      %v795 = vadd.f32 %v413, %v794
      %796 = vmatprep.mubr.f32.mxu0 0.0
      %797 = vmatmul.mubr.f32.gmra.mrb[0].mxu0 %v541
      %v798 = vpop.f32.mrb[0].mxu0
      %v799 = vadd.f32 %v418, %v798
      %v800 = vpop.f32.mrb[0].mxu0
      %v801 = vadd.f32 %v418, %v800
      %802 = vmatprep.mubr.f32.mxu0 0.0
      %803 = vmatmul.mubr.f32.gmra.mrb[0].mxu0 %v544
      %v804 = vpop.f32.mrb[0].mxu0
      %v805 = vadd.f32 %v423, %v804
      %v806 = vpop.f32.mrb[0].mxu0
      %v807 = vadd.f32 %v423, %v806
      %808 = vmatprep.mubr.f32.mxu0 0.0
      %809 = vmatmul.mubr.f32.gmra.mrb[0].mxu0 %v547
      %v810 = vpop.f32.mrb[0].mxu0
      %v811 = vadd.f32 %v428, %v810
      %v812 = vpop.f32.mrb[0].mxu0
      %v813 = vadd.f32 %v428, %v812
      %814 = vmatprep.mubr.f32.mxu0 0.0
      %815 = vmatmul.mubr.f32.gmra.mrb[0].mxu0 %v550
      %v816 = vpop.f32.mrb[0].mxu0
      %v817 = vadd.f32 %v433, %v816
      %v818 = vpop.f32.mrb[0].mxu0
      %v819 = vadd.f32 %v433, %v818
      %820 = vmatprep.mubr.f32.mxu0 0.0
      %821 = vmatmul.mubr.f32.gmra.mrb[0].mxu0 %v553
      %v822 = vpop.f32.mrb[0].mxu0
      %v823 = vadd.f32 %v438, %v822
      %v824 = vpop.f32.mrb[0].mxu0
      %v825 = vadd.f32 %v438, %v824
      %826 = vmatprep.mubr.f32.mxu0 0.0
      %827 = vmatmul.mubr.f32.gmra.mrb[0].mxu0 %v556
      %v828 = vpop.f32.mrb[0].mxu0
      %v829 = vadd.f32 %v443, %v828
      %v830 = vpop.f32.mrb[0].mxu0
      %v831 = vadd.f32 %v443, %v830
      %832 = vmatprep.mubr.f32.mxu0 0.0
      %833 = vmatmul.mubr.f32.gmra.mrb[0].mxu0 %v559
      %v834 = vpop.f32.mrb[0].mxu0
      %v835 = vadd.f32 %v448, %v834
      %v836 = vpop.f32.mrb[0].mxu0
      %v837 = vadd.f32 %v448, %v836
      %838 = vmatprep.mubr.f32.mxu0 0.0
      %839 = vmatmul.mubr.f32.gmra.mrb[0].mxu0 %v562
      %v840 = vpop.f32.mrb[0].mxu0
      %v841 = vadd.f32 %v453, %v840
      %v842 = vpop.f32.mrb[0].mxu0
      %v843 = vadd.f32 %v453, %v842
      %844 = vdwg.mxu0
      %845 = vmatprep.subr.mxu0 %v210
      %846 = vmatpush1.msra.mxu0 %v209
      %847 = vmatprep.subr.mxu0 %v218
      %848 = vmatpush1.msra.mxu0 %v217
      %849 = vmatprep.subr.mxu0 %v226
      %850 = vmatpush1.msra.mxu0 %v225
      %851 = vmatprep.subr.mxu0 %v234
      %852 = vmatpush1.msra.mxu0 %v233
      %853 = vmatprep.subr.mxu0 0.0
      %854 = vmatpush1.msra.mxu0 0.0
      %855 = vmatprep.subr.mxu0 0.0
      %856 = vmatpush1.msra.mxu0 0.0
      %857 = vmatprep.subr.mxu0 0.0
      %858 = vmatpush1.msra.mxu0 0.0
      %859 = vmatprep.subr.mxu0 0.0
      %860 = vmatpush1.msra.mxu0 0.0
      %861 = vmatprep.subr.mxu0 0.0
      %862 = vmatpush1.msra.mxu0 0.0
      %863 = vmatprep.subr.mxu0 0.0
      %864 = vmatpush1.msra.mxu0 0.0
      %865 = vmatprep.subr.mxu0 0.0
      %866 = vmatpush1.msra.mxu0 0.0
      %867 = vmatprep.subr.mxu0 0.0
      %868 = vmatpush1.msra.mxu0 0.0
      %869 = vmatprep.subr.mxu0 0.0
      %870 = vmatpush1.msra.mxu0 0.0
      %871 = vmatprep.subr.mxu0 0.0
      %872 = vmatpush1.msra.mxu0 0.0
      %873 = vmatprep.subr.mxu0 0.0
      %874 = vmatpush1.msra.mxu0 0.0
      %875 = vmatprep.subr.mxu0 0.0
      %876 = vmatpush1.msra.mxu0 0.0
      %877 = vmatprep.subr.mxu0 0.0
      %878 = vmatpush1.msra.mxu0 0.0
      %879 = vmatprep.subr.mxu0 0.0
      %880 = vmatpush1.msra.mxu0 0.0
      %881 = vmatprep.subr.mxu0 0.0
      %882 = vmatpush1.msra.mxu0 0.0
      %883 = vmatprep.subr.mxu0 0.0
      %884 = vmatpush1.msra.mxu0 0.0
      %885 = vmatprep.subr.mxu0 0.0
      %886 = vmatpush1.msra.mxu0 0.0
      %887 = vmatprep.subr.mxu0 0.0
      %888 = vmatpush1.msra.mxu0 0.0
      %889 = vmatprep.subr.mxu0 0.0
      %890 = vmatpush1.msra.mxu0 0.0
      %891 = vmatprep.subr.mxu0 0.0
      %892 = vmatpush1.msra.mxu0 0.0
      %893 = vmatprep.subr.mxu0 0.0
      %894 = vmatpush1.msra.mxu0 0.0
      %895 = vmatprep.subr.mxu0 0.0
      %896 = vmatpush1.msra.mxu0 0.0
      %897 = vmatprep.subr.mxu0 0.0
      %898 = vmatpush1.msra.mxu0 0.0
      %899 = vmatprep.subr.mxu0 0.0
      %900 = vmatpush1.msra.mxu0 0.0
      %901 = vmatprep.subr.mxu0 0.0
      %902 = vmatpush1.msra.mxu0 0.0
      %903 = vmatprep.subr.mxu0 0.0
      %904 = vmatpush1.msra.mxu0 0.0
      %905 = vmatprep.subr.mxu0 0.0
      %906 = vmatpush1.msra.mxu0 0.0
      %907 = vmatprep.subr.mxu0 0.0
      %908 = vmatpush1.msra.mxu0 0.0
      %909 = vmatprep.mubr.f32.mxu0 0.0
      %910 = vmatmul.mubr.f32.gmra.mrb[0].mxu0 %v457
      %v911 = vpop.f32.mrb[0].mxu0
      %v912 = vadd.f32 %v278, %v911
      %v913 = vpop.f32.mrb[0].mxu0
      %v914 = vadd.f32 %v278, %v913
      %915 = vmatprep.mubr.f32.mxu0 0.0
      %916 = vmatmul.mubr.f32.gmra.mrb[0].mxu0 %v460
      %v917 = vpop.f32.mrb[0].mxu0
      %v918 = vadd.f32 %v283, %v917
      %v919 = vpop.f32.mrb[0].mxu0
      %v920 = vadd.f32 %v283, %v919
      %921 = vmatprep.mubr.f32.mxu0 0.0
      %922 = vmatmul.mubr.f32.gmra.mrb[0].mxu0 %v463
      %v923 = vpop.f32.mrb[0].mxu0
      %v924 = vadd.f32 %v288, %v923
      %v925 = vpop.f32.mrb[0].mxu0
      %v926 = vadd.f32 %v288, %v925
      %927 = vmatprep.mubr.f32.mxu0 0.0
      %928 = vmatmul.mubr.f32.gmra.mrb[0].mxu0 %v466
      %v929 = vpop.f32.mrb[0].mxu0
      %v930 = vadd.f32 %v293, %v929
      %v931 = vpop.f32.mrb[0].mxu0
      %v932 = vadd.f32 %v293, %v931
      %933 = vmatprep.mubr.f32.mxu0 0.0
      %934 = vmatmul.mubr.f32.gmra.mrb[0].mxu0 %v469
      %v935 = vpop.f32.mrb[0].mxu0
      %v936 = vadd.f32 %v298, %v935
      %v937 = vpop.f32.mrb[0].mxu0
      %v938 = vadd.f32 %v298, %v937
      %939 = vmatprep.mubr.f32.mxu0 0.0
      %940 = vmatmul.mubr.f32.gmra.mrb[0].mxu0 %v472
      %v941 = vpop.f32.mrb[0].mxu0
      %v942 = vadd.f32 %v303, %v941
      %v943 = vpop.f32.mrb[0].mxu0
      %v944 = vadd.f32 %v303, %v943
      %945 = vmatprep.mubr.f32.mxu0 0.0
      %946 = vmatmul.mubr.f32.gmra.mrb[0].mxu0 %v475
      %v947 = vpop.f32.mrb[0].mxu0
      %v948 = vadd.f32 %v308, %v947
      %v949 = vpop.f32.mrb[0].mxu0
      %v950 = vadd.f32 %v308, %v949
      %951 = vmatprep.mubr.f32.mxu0 0.0
      %952 = vmatmul.mubr.f32.gmra.mrb[0].mxu0 %v478
      %v953 = vpop.f32.mrb[0].mxu0
      %v954 = vadd.f32 %v313, %v953
      %v955 = vpop.f32.mrb[0].mxu0
      %v956 = vadd.f32 %v313, %v955
      %957 = vmatprep.mubr.f32.mxu0 0.0
      %958 = vmatmul.mubr.f32.gmra.mrb[0].mxu0 %v481
      %v959 = vpop.f32.mrb[0].mxu0
      %v960 = vadd.f32 %v318, %v959
      %v961 = vpop.f32.mrb[0].mxu0
      %v962 = vadd.f32 %v318, %v961
      %963 = vmatprep.mubr.f32.mxu0 0.0
      %964 = vmatmul.mubr.f32.gmra.mrb[0].mxu0 %v484
      %v965 = vpop.f32.mrb[0].mxu0
      %v966 = vadd.f32 %v323, %v965
      %v967 = vpop.f32.mrb[0].mxu0
      %v968 = vadd.f32 %v323, %v967
      %969 = vmatprep.mubr.f32.mxu0 0.0
      %970 = vmatmul.mubr.f32.gmra.mrb[0].mxu0 %v487
      %v971 = vpop.f32.mrb[0].mxu0
      %v972 = vadd.f32 %v328, %v971
      %v973 = vpop.f32.mrb[0].mxu0
      %v974 = vadd.f32 %v328, %v973
      %975 = vmatprep.mubr.f32.mxu0 0.0
      %976 = vmatmul.mubr.f32.gmra.mrb[0].mxu0 %v490
      %v977 = vpop.f32.mrb[0].mxu0
      %v978 = vadd.f32 %v333, %v977
      %v979 = vpop.f32.mrb[0].mxu0
      %v980 = vadd.f32 %v333, %v979
      %981 = vmatprep.mubr.f32.mxu0 0.0
      %982 = vmatmul.mubr.f32.gmra.mrb[0].mxu0 %v493
      %v983 = vpop.f32.mrb[0].mxu0
      %v984 = vadd.f32 %v338, %v983
      %v985 = vpop.f32.mrb[0].mxu0
      %v986 = vadd.f32 %v338, %v985
      %987 = vmatprep.mubr.f32.mxu0 0.0
      %988 = vmatmul.mubr.f32.gmra.mrb[0].mxu0 %v496
      %v989 = vpop.f32.mrb[0].mxu0
      %v990 = vadd.f32 %v343, %v989
      %v991 = vpop.f32.mrb[0].mxu0
      %v992 = vadd.f32 %v343, %v991
      %993 = vmatprep.mubr.f32.mxu0 0.0
      %994 = vmatmul.mubr.f32.gmra.mrb[0].mxu0 %v499
      %v995 = vpop.f32.mrb[0].mxu0
      %v996 = vadd.f32 %v348, %v995
      %v997 = vpop.f32.mrb[0].mxu0
      %v998 = vadd.f32 %v348, %v997
      %999 = vmatprep.mubr.f32.mxu0 0.0
      %1000 = vmatmul.mubr.f32.gmra.mrb[0].mxu0 %v502
      %v1001 = vpop.f32.mrb[0].mxu0
      %v1002 = vadd.f32 %v353, %v1001
      %v1003 = vpop.f32.mrb[0].mxu0
      %v1004 = vadd.f32 %v353, %v1003
      %1005 = vmatprep.mubr.f32.mxu0 0.0
      %1006 = vmatmul.mubr.f32.gmra.mrb[0].mxu0 %v505
      %v1007 = vpop.f32.mrb[0].mxu0
      %v1008 = vadd.f32 %v358, %v1007
      %v1009 = vpop.f32.mrb[0].mxu0
      %v1010 = vadd.f32 %v358, %v1009
      %1011 = vmatprep.mubr.f32.mxu0 0.0
      %1012 = vmatmul.mubr.f32.gmra.mrb[0].mxu0 %v508
      %v1013 = vpop.f32.mrb[0].mxu0
      %v1014 = vadd.f32 %v363, %v1013
      %v1015 = vpop.f32.mrb[0].mxu0
      %v1016 = vadd.f32 %v363, %v1015
      %1017 = vmatprep.mubr.f32.mxu0 0.0
      %1018 = vmatmul.mubr.f32.gmra.mrb[0].mxu0 %v511
      %v1019 = vpop.f32.mrb[0].mxu0
      %v1020 = vadd.f32 %v368, %v1019
      %v1021 = vpop.f32.mrb[0].mxu0
      %v1022 = vadd.f32 %v368, %v1021
      %1023 = vmatprep.mubr.f32.mxu0 0.0
      %1024 = vmatmul.mubr.f32.gmra.mrb[0].mxu0 %v514
      %v1025 = vpop.f32.mrb[0].mxu0
      %v1026 = vadd.f32 %v373, %v1025
      %v1027 = vpop.f32.mrb[0].mxu0
      %v1028 = vadd.f32 %v373, %v1027
      %1029 = vmatprep.mubr.f32.mxu0 0.0
      %1030 = vmatmul.mubr.f32.gmra.mrb[0].mxu0 %v517
      %v1031 = vpop.f32.mrb[0].mxu0
      %v1032 = vadd.f32 %v378, %v1031
      %v1033 = vpop.f32.mrb[0].mxu0
      %v1034 = vadd.f32 %v378, %v1033
      %1035 = vmatprep.mubr.f32.mxu0 0.0
      %1036 = vmatmul.mubr.f32.gmra.mrb[0].mxu0 %v520
      %v1037 = vpop.f32.mrb[0].mxu0
      %v1038 = vadd.f32 %v383, %v1037
      %v1039 = vpop.f32.mrb[0].mxu0
      %v1040 = vadd.f32 %v383, %v1039
      %1041 = vmatprep.mubr.f32.mxu0 0.0
      %1042 = vmatmul.mubr.f32.gmra.mrb[0].mxu0 %v523
      %v1043 = vpop.f32.mrb[0].mxu0
      %v1044 = vadd.f32 %v388, %v1043
      %v1045 = vpop.f32.mrb[0].mxu0
      %v1046 = vadd.f32 %v388, %v1045
      %1047 = vmatprep.mubr.f32.mxu0 0.0
      %1048 = vmatmul.mubr.f32.gmra.mrb[0].mxu0 %v526
      %v1049 = vpop.f32.mrb[0].mxu0
      %v1050 = vadd.f32 %v393, %v1049
      %v1051 = vpop.f32.mrb[0].mxu0
      %v1052 = vadd.f32 %v393, %v1051
      %1053 = vmatprep.mubr.f32.mxu0 0.0
      %1054 = vmatmul.mubr.f32.gmra.mrb[0].mxu0 %v529
      %v1055 = vpop.f32.mrb[0].mxu0
      %v1056 = vadd.f32 %v398, %v1055
      %v1057 = vpop.f32.mrb[0].mxu0
      %v1058 = vadd.f32 %v398, %v1057
      %1059 = vmatprep.mubr.f32.mxu0 0.0
      %1060 = vmatmul.mubr.f32.gmra.mrb[0].mxu0 %v532
      %v1061 = vpop.f32.mrb[0].mxu0
      %v1062 = vadd.f32 %v403, %v1061
      %v1063 = vpop.f32.mrb[0].mxu0
      %v1064 = vadd.f32 %v403, %v1063
      %1065 = vmatprep.mubr.f32.mxu0 0.0
      %1066 = vmatmul.mubr.f32.gmra.mrb[0].mxu0 %v535
      %v1067 = vpop.f32.mrb[0].mxu0
      %v1068 = vadd.f32 %v408, %v1067
      %v1069 = vpop.f32.mrb[0].mxu0
      %v1070 = vadd.f32 %v408, %v1069
      %1071 = vmatprep.mubr.f32.mxu0 0.0
      %1072 = vmatmul.mubr.f32.gmra.mrb[0].mxu0 %v538
      %v1073 = vpop.f32.mrb[0].mxu0
      %v1074 = vadd.f32 %v413, %v1073
      %v1075 = vpop.f32.mrb[0].mxu0
      %v1076 = vadd.f32 %v413, %v1075
      %1077 = vmatprep.mubr.f32.mxu0 0.0
      %1078 = vmatmul.mubr.f32.gmra.mrb[0].mxu0 %v541
      %v1079 = vpop.f32.mrb[0].mxu0
      %v1080 = vadd.f32 %v418, %v1079
      %v1081 = vpop.f32.mrb[0].mxu0
      %v1082 = vadd.f32 %v418, %v1081
      %1083 = vmatprep.mubr.f32.mxu0 0.0
      %1084 = vmatmul.mubr.f32.gmra.mrb[0].mxu0 %v544
      %v1085 = vpop.f32.mrb[0].mxu0
      %v1086 = vadd.f32 %v423, %v1085
      %v1087 = vpop.f32.mrb[0].mxu0
      %v1088 = vadd.f32 %v423, %v1087
      %1089 = vmatprep.mubr.f32.mxu0 0.0
      %1090 = vmatmul.mubr.f32.gmra.mrb[0].mxu0 %v547
      %v1091 = vpop.f32.mrb[0].mxu0
      %v1092 = vadd.f32 %v428, %v1091
      %v1093 = vpop.f32.mrb[0].mxu0
      %v1094 = vadd.f32 %v428, %v1093
      %1095 = vmatprep.mubr.f32.mxu0 0.0
      %1096 = vmatmul.mubr.f32.gmra.mrb[0].mxu0 %v550
      %v1097 = vpop.f32.mrb[0].mxu0
      %v1098 = vadd.f32 %v433, %v1097
      %v1099 = vpop.f32.mrb[0].mxu0
      %v1100 = vadd.f32 %v433, %v1099
      %1101 = vmatprep.mubr.f32.mxu0 0.0
      %1102 = vmatmul.mubr.f32.gmra.mrb[0].mxu0 %v553
      %v1103 = vpop.f32.mrb[0].mxu0
      %v1104 = vadd.f32 %v438, %v1103
      %v1105 = vpop.f32.mrb[0].mxu0
      %v1106 = vadd.f32 %v438, %v1105
      %1107 = vmatprep.mubr.f32.mxu0 0.0
      %1108 = vmatmul.mubr.f32.gmra.mrb[0].mxu0 %v556
      %v1109 = vpop.f32.mrb[0].mxu0
      %v1110 = vadd.f32 %v443, %v1109
      %v1111 = vpop.f32.mrb[0].mxu0
      %v1112 = vadd.f32 %v443, %v1111
      %1113 = vmatprep.mubr.f32.mxu0 0.0
      %1114 = vmatmul.mubr.f32.gmra.mrb[0].mxu0 %v559
      %v1115 = vpop.f32.mrb[0].mxu0
      %v1116 = vadd.f32 %v448, %v1115
      %v1117 = vpop.f32.mrb[0].mxu0
      %v1118 = vadd.f32 %v448, %v1117
      %1119 = vmatprep.mubr.f32.mxu0 0.0
      %1120 = vmatmul.mubr.f32.gmra.mrb[0].mxu0 %v562
      %v1121 = vpop.f32.mrb[0].mxu0
      %v1122 = vadd.f32 %v453, %v1121
      %v1123 = vpop.f32.mrb[0].mxu0
      %v1124 = vadd.f32 %v453, %v1123
      %1125 = vdwg.mxu0
      %1126 = vmatprep.subr.mxu0 %v212
      %1127 = vmatpush1.msra.mxu0 %v211
      %1128 = vmatprep.subr.mxu0 %v220
      %1129 = vmatpush1.msra.mxu0 %v219
      %1130 = vmatprep.subr.mxu0 %v228
      %1131 = vmatpush1.msra.mxu0 %v227
      %1132 = vmatprep.subr.mxu0 %v236
      %1133 = vmatpush1.msra.mxu0 %v235
      %1134 = vmatprep.subr.mxu0 0.0
      %1135 = vmatpush1.msra.mxu0 0.0
      %1136 = vmatprep.subr.mxu0 0.0
      %1137 = vmatpush1.msra.mxu0 0.0
      %1138 = vmatprep.subr.mxu0 0.0
      %1139 = vmatpush1.msra.mxu0 0.0
      %1140 = vmatprep.subr.mxu0 0.0
      %1141 = vmatpush1.msra.mxu0 0.0
      %1142 = vmatprep.subr.mxu0 0.0
      %1143 = vmatpush1.msra.mxu0 0.0
      %1144 = vmatprep.subr.mxu0 0.0
      %1145 = vmatpush1.msra.mxu0 0.0
      %1146 = vmatprep.subr.mxu0 0.0
      %1147 = vmatpush1.msra.mxu0 0.0
      %1148 = vmatprep.subr.mxu0 0.0
      %1149 = vmatpush1.msra.mxu0 0.0
      %1150 = vmatprep.subr.mxu0 0.0
      %1151 = vmatpush1.msra.mxu0 0.0
      %1152 = vmatprep.subr.mxu0 0.0
      %1153 = vmatpush1.msra.mxu0 0.0
      %1154 = vmatprep.subr.mxu0 0.0
      %1155 = vmatpush1.msra.mxu0 0.0
      %1156 = vmatprep.subr.mxu0 0.0
      %1157 = vmatpush1.msra.mxu0 0.0
      %1158 = vmatprep.subr.mxu0 0.0
      %1159 = vmatpush1.msra.mxu0 0.0
      %1160 = vmatprep.subr.mxu0 0.0
      %1161 = vmatpush1.msra.mxu0 0.0
      %1162 = vmatprep.subr.mxu0 0.0
      %1163 = vmatpush1.msra.mxu0 0.0
      %1164 = vmatprep.subr.mxu0 0.0
      %1165 = vmatpush1.msra.mxu0 0.0
      %1166 = vmatprep.subr.mxu0 0.0
      %1167 = vmatpush1.msra.mxu0 0.0
      %1168 = vmatprep.subr.mxu0 0.0
      %1169 = vmatpush1.msra.mxu0 0.0
      %1170 = vmatprep.subr.mxu0 0.0
      %1171 = vmatpush1.msra.mxu0 0.0
      %1172 = vmatprep.subr.mxu0 0.0
      %1173 = vmatpush1.msra.mxu0 0.0
      %1174 = vmatprep.subr.mxu0 0.0
      %1175 = vmatpush1.msra.mxu0 0.0
      %1176 = vmatprep.subr.mxu0 0.0
      %1177 = vmatpush1.msra.mxu0 0.0
      %1178 = vmatprep.subr.mxu0 0.0
      %1179 = vmatpush1.msra.mxu0 0.0
      %1180 = vmatprep.subr.mxu0 0.0
      %1181 = vmatpush1.msra.mxu0 0.0
      %1182 = vmatprep.subr.mxu0 0.0
      %1183 = vmatpush1.msra.mxu0 0.0
      %1184 = vmatprep.subr.mxu0 0.0
      %1185 = vmatpush1.msra.mxu0 0.0
      %1186 = vmatprep.subr.mxu0 0.0
      %1187 = vmatpush1.msra.mxu0 0.0
      %1188 = vmatprep.subr.mxu0 0.0
      %1189 = vmatpush1.msra.mxu0 0.0
      %1190 = vmatprep.mubr.f32.mxu0 0.0
      %1191 = vmatmul.mubr.f32.gmra.mrb[0].mxu0 %v457
      %v1192 = vpop.f32.mrb[0].mxu0
      %v1193 = vadd.f32 %v278, %v1192
      %v1194 = vpop.f32.mrb[0].mxu0
      %v1195 = vadd.f32 %v278, %v1194
      %1196 = vmatprep.mubr.f32.mxu0 0.0
      %1197 = vmatmul.mubr.f32.gmra.mrb[0].mxu0 %v460
      %v1198 = vpop.f32.mrb[0].mxu0
      %v1199 = vadd.f32 %v283, %v1198
      %v1200 = vpop.f32.mrb[0].mxu0
      %v1201 = vadd.f32 %v283, %v1200
      %1202 = vmatprep.mubr.f32.mxu0 0.0
      %1203 = vmatmul.mubr.f32.gmra.mrb[0].mxu0 %v463
      %v1204 = vpop.f32.mrb[0].mxu0
      %v1205 = vadd.f32 %v288, %v1204
      %v1206 = vpop.f32.mrb[0].mxu0
      %v1207 = vadd.f32 %v288, %v1206
      %1208 = vmatprep.mubr.f32.mxu0 0.0
      %1209 = vmatmul.mubr.f32.gmra.mrb[0].mxu0 %v466
      %v1210 = vpop.f32.mrb[0].mxu0
      %v1211 = vadd.f32 %v293, %v1210
      %v1212 = vpop.f32.mrb[0].mxu0
      %v1213 = vadd.f32 %v293, %v1212
      %1214 = vmatprep.mubr.f32.mxu0 0.0
      %1215 = vmatmul.mubr.f32.gmra.mrb[0].mxu0 %v469
      %v1216 = vpop.f32.mrb[0].mxu0
      %v1217 = vadd.f32 %v298, %v1216
      %v1218 = vpop.f32.mrb[0].mxu0
      %v1219 = vadd.f32 %v298, %v1218
      %1220 = vmatprep.mubr.f32.mxu0 0.0
      %1221 = vmatmul.mubr.f32.gmra.mrb[0].mxu0 %v472
      %v1222 = vpop.f32.mrb[0].mxu0
      %v1223 = vadd.f32 %v303, %v1222
      %v1224 = vpop.f32.mrb[0].mxu0
      %v1225 = vadd.f32 %v303, %v1224
      %1226 = vmatprep.mubr.f32.mxu0 0.0
      %1227 = vmatmul.mubr.f32.gmra.mrb[0].mxu0 %v475
      %v1228 = vpop.f32.mrb[0].mxu0
      %v1229 = vadd.f32 %v308, %v1228
      %v1230 = vpop.f32.mrb[0].mxu0
      %v1231 = vadd.f32 %v308, %v1230
      %1232 = vmatprep.mubr.f32.mxu0 0.0
      %1233 = vmatmul.mubr.f32.gmra.mrb[0].mxu0 %v478
      %v1234 = vpop.f32.mrb[0].mxu0
      %v1235 = vadd.f32 %v313, %v1234
      %v1236 = vpop.f32.mrb[0].mxu0
      %v1237 = vadd.f32 %v313, %v1236
      %1238 = vmatprep.mubr.f32.mxu0 0.0
      %1239 = vmatmul.mubr.f32.gmra.mrb[0].mxu0 %v481
      %v1240 = vpop.f32.mrb[0].mxu0
      %v1241 = vadd.f32 %v318, %v1240
      %v1242 = vpop.f32.mrb[0].mxu0
      %v1243 = vadd.f32 %v318, %v1242
      %1244 = vmatprep.mubr.f32.mxu0 0.0
      %1245 = vmatmul.mubr.f32.gmra.mrb[0].mxu0 %v484
      %v1246 = vpop.f32.mrb[0].mxu0
      %v1247 = vadd.f32 %v323, %v1246
      %v1248 = vpop.f32.mrb[0].mxu0
      %v1249 = vadd.f32 %v323, %v1248
      %1250 = vmatprep.mubr.f32.mxu0 0.0
      %1251 = vmatmul.mubr.f32.gmra.mrb[0].mxu0 %v487
      %v1252 = vpop.f32.mrb[0].mxu0
      %v1253 = vadd.f32 %v328, %v1252
      %v1254 = vpop.f32.mrb[0].mxu0
      %v1255 = vadd.f32 %v328, %v1254
      %1256 = vmatprep.mubr.f32.mxu0 0.0
      %1257 = vmatmul.mubr.f32.gmra.mrb[0].mxu0 %v490
      %v1258 = vpop.f32.mrb[0].mxu0
      %v1259 = vadd.f32 %v333, %v1258
      %v1260 = vpop.f32.mrb[0].mxu0
      %v1261 = vadd.f32 %v333, %v1260
      %1262 = vmatprep.mubr.f32.mxu0 0.0
      %1263 = vmatmul.mubr.f32.gmra.mrb[0].mxu0 %v493
      %v1264 = vpop.f32.mrb[0].mxu0
      %v1265 = vadd.f32 %v338, %v1264
      %v1266 = vpop.f32.mrb[0].mxu0
      %v1267 = vadd.f32 %v338, %v1266
      %1268 = vmatprep.mubr.f32.mxu0 0.0
      %1269 = vmatmul.mubr.f32.gmra.mrb[0].mxu0 %v496
      %v1270 = vpop.f32.mrb[0].mxu0
      %v1271 = vadd.f32 %v343, %v1270
      %v1272 = vpop.f32.mrb[0].mxu0
      %v1273 = vadd.f32 %v343, %v1272
      %1274 = vmatprep.mubr.f32.mxu0 0.0
      %1275 = vmatmul.mubr.f32.gmra.mrb[0].mxu0 %v499
      %v1276 = vpop.f32.mrb[0].mxu0
      %v1277 = vadd.f32 %v348, %v1276
      %v1278 = vpop.f32.mrb[0].mxu0
      %v1279 = vadd.f32 %v348, %v1278
      %1280 = vmatprep.mubr.f32.mxu0 0.0
      %1281 = vmatmul.mubr.f32.gmra.mrb[0].mxu0 %v502
      %v1282 = vpop.f32.mrb[0].mxu0
      %v1283 = vadd.f32 %v353, %v1282
      %v1284 = vpop.f32.mrb[0].mxu0
      %v1285 = vadd.f32 %v353, %v1284
      %1286 = vmatprep.mubr.f32.mxu0 0.0
      %1287 = vmatmul.mubr.f32.gmra.mrb[0].mxu0 %v505
      %v1288 = vpop.f32.mrb[0].mxu0
      %v1289 = vadd.f32 %v358, %v1288
      %v1290 = vpop.f32.mrb[0].mxu0
      %v1291 = vadd.f32 %v358, %v1290
      %1292 = vmatprep.mubr.f32.mxu0 0.0
      %1293 = vmatmul.mubr.f32.gmra.mrb[0].mxu0 %v508
      %v1294 = vpop.f32.mrb[0].mxu0
      %v1295 = vadd.f32 %v363, %v1294
      %v1296 = vpop.f32.mrb[0].mxu0
      %v1297 = vadd.f32 %v363, %v1296
      %1298 = vmatprep.mubr.f32.mxu0 0.0
      %1299 = vmatmul.mubr.f32.gmra.mrb[0].mxu0 %v511
      %v1300 = vpop.f32.mrb[0].mxu0
      %v1301 = vadd.f32 %v368, %v1300
      %v1302 = vpop.f32.mrb[0].mxu0
      %v1303 = vadd.f32 %v368, %v1302
      %1304 = vmatprep.mubr.f32.mxu0 0.0
      %1305 = vmatmul.mubr.f32.gmra.mrb[0].mxu0 %v514
      %v1306 = vpop.f32.mrb[0].mxu0
      %v1307 = vadd.f32 %v373, %v1306
      %v1308 = vpop.f32.mrb[0].mxu0
      %v1309 = vadd.f32 %v373, %v1308
      %1310 = vmatprep.mubr.f32.mxu0 0.0
      %1311 = vmatmul.mubr.f32.gmra.mrb[0].mxu0 %v517
      %v1312 = vpop.f32.mrb[0].mxu0
      %v1313 = vadd.f32 %v378, %v1312
      %v1314 = vpop.f32.mrb[0].mxu0
      %v1315 = vadd.f32 %v378, %v1314
      %1316 = vmatprep.mubr.f32.mxu0 0.0
      %1317 = vmatmul.mubr.f32.gmra.mrb[0].mxu0 %v520
      %v1318 = vpop.f32.mrb[0].mxu0
      %v1319 = vadd.f32 %v383, %v1318
      %v1320 = vpop.f32.mrb[0].mxu0
      %v1321 = vadd.f32 %v383, %v1320
      %1322 = vmatprep.mubr.f32.mxu0 0.0
      %1323 = vmatmul.mubr.f32.gmra.mrb[0].mxu0 %v523
      %v1324 = vpop.f32.mrb[0].mxu0
      %v1325 = vadd.f32 %v388, %v1324
      %v1326 = vpop.f32.mrb[0].mxu0
      %v1327 = vadd.f32 %v388, %v1326
      %1328 = vmatprep.mubr.f32.mxu0 0.0
      %1329 = vmatmul.mubr.f32.gmra.mrb[0].mxu0 %v526
      %v1330 = vpop.f32.mrb[0].mxu0
      %v1331 = vadd.f32 %v393, %v1330
      %v1332 = vpop.f32.mrb[0].mxu0
      %v1333 = vadd.f32 %v393, %v1332
      %1334 = vmatprep.mubr.f32.mxu0 0.0
      %1335 = vmatmul.mubr.f32.gmra.mrb[0].mxu0 %v529
      %v1336 = vpop.f32.mrb[0].mxu0
      %v1337 = vadd.f32 %v398, %v1336
      %v1338 = vpop.f32.mrb[0].mxu0
      %v1339 = vadd.f32 %v398, %v1338
      %1340 = vmatprep.mubr.f32.mxu0 0.0
      %1341 = vmatmul.mubr.f32.gmra.mrb[0].mxu0 %v532
      %v1342 = vpop.f32.mrb[0].mxu0
      %v1343 = vadd.f32 %v403, %v1342
      %v1344 = vpop.f32.mrb[0].mxu0
      %v1345 = vadd.f32 %v403, %v1344
      %1346 = vmatprep.mubr.f32.mxu0 0.0
      %1347 = vmatmul.mubr.f32.gmra.mrb[0].mxu0 %v535
      %v1348 = vpop.f32.mrb[0].mxu0
      %v1349 = vadd.f32 %v408, %v1348
      %v1350 = vpop.f32.mrb[0].mxu0
      %v1351 = vadd.f32 %v408, %v1350
      %1352 = vmatprep.mubr.f32.mxu0 0.0
      %1353 = vmatmul.mubr.f32.gmra.mrb[0].mxu0 %v538
      %v1354 = vpop.f32.mrb[0].mxu0
      %v1355 = vadd.f32 %v413, %v1354
      %v1356 = vpop.f32.mrb[0].mxu0
      %v1357 = vadd.f32 %v413, %v1356
      %1358 = vmatprep.mubr.f32.mxu0 0.0
      %1359 = vmatmul.mubr.f32.gmra.mrb[0].mxu0 %v541
      %v1360 = vpop.f32.mrb[0].mxu0
      %v1361 = vadd.f32 %v418, %v1360
      %v1362 = vpop.f32.mrb[0].mxu0
      %v1363 = vadd.f32 %v418, %v1362
      %1364 = vmatprep.mubr.f32.mxu0 0.0
      %1365 = vmatmul.mubr.f32.gmra.mrb[0].mxu0 %v544
      %v1366 = vpop.f32.mrb[0].mxu0
      %v1367 = vadd.f32 %v423, %v1366
      %v1368 = vpop.f32.mrb[0].mxu0
      %v1369 = vadd.f32 %v423, %v1368
      %1370 = vmatprep.mubr.f32.mxu0 0.0
      %1371 = vmatmul.mubr.f32.gmra.mrb[0].mxu0 %v547
      %v1372 = vpop.f32.mrb[0].mxu0
      %v1373 = vadd.f32 %v428, %v1372
      %v1374 = vpop.f32.mrb[0].mxu0
      %v1375 = vadd.f32 %v428, %v1374
      %1376 = vmatprep.mubr.f32.mxu0 0.0
      %1377 = vmatmul.mubr.f32.gmra.mrb[0].mxu0 %v550
      %v1378 = vpop.f32.mrb[0].mxu0
      %v1379 = vadd.f32 %v433, %v1378
      %v1380 = vpop.f32.mrb[0].mxu0
      %v1381 = vadd.f32 %v433, %v1380
      %1382 = vmatprep.mubr.f32.mxu0 0.0
      %1383 = vmatmul.mubr.f32.gmra.mrb[0].mxu0 %v553
      %v1384 = vpop.f32.mrb[0].mxu0
      %v1385 = vadd.f32 %v438, %v1384
      %v1386 = vpop.f32.mrb[0].mxu0
      %v1387 = vadd.f32 %v438, %v1386
      %1388 = vmatprep.mubr.f32.mxu0 0.0
      %1389 = vmatmul.mubr.f32.gmra.mrb[0].mxu0 %v556
      %v1390 = vpop.f32.mrb[0].mxu0
      %v1391 = vadd.f32 %v443, %v1390
      %v1392 = vpop.f32.mrb[0].mxu0
      %v1393 = vadd.f32 %v443, %v1392
      %1394 = vmatprep.mubr.f32.mxu0 0.0
      %1395 = vmatmul.mubr.f32.gmra.mrb[0].mxu0 %v559
      %v1396 = vpop.f32.mrb[0].mxu0
      %v1397 = vadd.f32 %v448, %v1396
      %v1398 = vpop.f32.mrb[0].mxu0
      %v1399 = vadd.f32 %v448, %v1398
      %1400 = vmatprep.mubr.f32.mxu0 0.0
      %1401 = vmatmul.mubr.f32.gmra.mrb[0].mxu0 %v562
      %v1402 = vpop.f32.mrb[0].mxu0
      %v1403 = vadd.f32 %v453, %v1402
      %v1404 = vpop.f32.mrb[0].mxu0
      %v1405 = vadd.f32 %v453, %v1404
      %1406 = vdwg.mxu0
      %1407 = vmatprep.subr.mxu0 %v214
      %1408 = vmatpush1.msra.mxu0 %v213
      %1409 = vmatprep.subr.mxu0 %v222
      %1410 = vmatpush1.msra.mxu0 %v221
      %1411 = vmatprep.subr.mxu0 %v230
      %1412 = vmatpush1.msra.mxu0 %v229
      %1413 = vmatprep.subr.mxu0 %v238
      %1414 = vmatpush1.msra.mxu0 %v237
      %1415 = vmatprep.subr.mxu0 0.0
      %1416 = vmatpush1.msra.mxu0 0.0
      %1417 = vmatprep.subr.mxu0 0.0
      %1418 = vmatpush1.msra.mxu0 0.0
      %1419 = vmatprep.subr.mxu0 0.0
      %1420 = vmatpush1.msra.mxu0 0.0
      %1421 = vmatprep.subr.mxu0 0.0
      %1422 = vmatpush1.msra.mxu0 0.0
      %1423 = vmatprep.subr.mxu0 0.0
      %1424 = vmatpush1.msra.mxu0 0.0
      %1425 = vmatprep.subr.mxu0 0.0
      %1426 = vmatpush1.msra.mxu0 0.0
      %1427 = vmatprep.subr.mxu0 0.0
      %1428 = vmatpush1.msra.mxu0 0.0
      %1429 = vmatprep.subr.mxu0 0.0
      %1430 = vmatpush1.msra.mxu0 0.0
      %1431 = vmatprep.subr.mxu0 0.0
      %1432 = vmatpush1.msra.mxu0 0.0
      %1433 = vmatprep.subr.mxu0 0.0
      %1434 = vmatpush1.msra.mxu0 0.0
      %1435 = vmatprep.subr.mxu0 0.0
      %1436 = vmatpush1.msra.mxu0 0.0
      %1437 = vmatprep.subr.mxu0 0.0
      %1438 = vmatpush1.msra.mxu0 0.0
      %1439 = vmatprep.subr.mxu0 0.0
      %1440 = vmatpush1.msra.mxu0 0.0
      %1441 = vmatprep.subr.mxu0 0.0
      %1442 = vmatpush1.msra.mxu0 0.0
      %1443 = vmatprep.subr.mxu0 0.0
      %1444 = vmatpush1.msra.mxu0 0.0
      %1445 = vmatprep.subr.mxu0 0.0
      %1446 = vmatpush1.msra.mxu0 0.0
      %1447 = vmatprep.subr.mxu0 0.0
      %1448 = vmatpush1.msra.mxu0 0.0
      %1449 = vmatprep.subr.mxu0 0.0
      %1450 = vmatpush1.msra.mxu0 0.0
      %1451 = vmatprep.subr.mxu0 0.0
      %1452 = vmatpush1.msra.mxu0 0.0
      %1453 = vmatprep.subr.mxu0 0.0
      %1454 = vmatpush1.msra.mxu0 0.0
      %1455 = vmatprep.subr.mxu0 0.0
      %1456 = vmatpush1.msra.mxu0 0.0
      %1457 = vmatprep.subr.mxu0 0.0
      %1458 = vmatpush1.msra.mxu0 0.0
      %1459 = vmatprep.subr.mxu0 0.0
      %1460 = vmatpush1.msra.mxu0 0.0
      %1461 = vmatprep.subr.mxu0 0.0
      %1462 = vmatpush1.msra.mxu0 0.0
      %1463 = vmatprep.subr.mxu0 0.0
      %1464 = vmatpush1.msra.mxu0 0.0
      %1465 = vmatprep.subr.mxu0 0.0
      %1466 = vmatpush1.msra.mxu0 0.0
      %1467 = vmatprep.subr.mxu0 0.0
      %1468 = vmatpush1.msra.mxu0 0.0
      %1469 = vmatprep.subr.mxu0 0.0
      %1470 = vmatpush1.msra.mxu0 0.0
      %1471 = vmatprep.mubr.f32.mxu0 0.0
      %1472 = vmatmul.mubr.f32.gmra.mrb[0].mxu0 %v457
      %v1473 = vpop.f32.mrb[0].mxu0
      %v1474 = vadd.f32 %v278, %v1473
      %v1475 = vpop.f32.mrb[0].mxu0
      %v1476 = vadd.f32 %v278, %v1475
      %1477 = vmatprep.mubr.f32.mxu0 0.0
      %1478 = vmatmul.mubr.f32.gmra.mrb[0].mxu0 %v460
      %v1479 = vpop.f32.mrb[0].mxu0
      %v1480 = vadd.f32 %v283, %v1479
      %v1481 = vpop.f32.mrb[0].mxu0
      %v1482 = vadd.f32 %v283, %v1481
      %1483 = vmatprep.mubr.f32.mxu0 0.0
      %1484 = vmatmul.mubr.f32.gmra.mrb[0].mxu0 %v463
      %v1485 = vpop.f32.mrb[0].mxu0
      %v1486 = vadd.f32 %v288, %v1485
      %v1487 = vpop.f32.mrb[0].mxu0
      %v1488 = vadd.f32 %v288, %v1487
      %1489 = vmatprep.mubr.f32.mxu0 0.0
      %1490 = vmatmul.mubr.f32.gmra.mrb[0].mxu0 %v466
      %v1491 = vpop.f32.mrb[0].mxu0
      %v1492 = vadd.f32 %v293, %v1491
      %v1493 = vpop.f32.mrb[0].mxu0
      %v1494 = vadd.f32 %v293, %v1493
      %1495 = vmatprep.mubr.f32.mxu0 0.0
      %1496 = vmatmul.mubr.f32.gmra.mrb[0].mxu0 %v469
      %v1497 = vpop.f32.mrb[0].mxu0
      %v1498 = vadd.f32 %v298, %v1497
      %v1499 = vpop.f32.mrb[0].mxu0
      %v1500 = vadd.f32 %v298, %v1499
      %1501 = vmatprep.mubr.f32.mxu0 0.0
      %1502 = vmatmul.mubr.f32.gmra.mrb[0].mxu0 %v472
      %v1503 = vpop.f32.mrb[0].mxu0
      %v1504 = vadd.f32 %v303, %v1503
      %v1505 = vpop.f32.mrb[0].mxu0
      %v1506 = vadd.f32 %v303, %v1505
      %1507 = vmatprep.mubr.f32.mxu0 0.0
      %1508 = vmatmul.mubr.f32.gmra.mrb[0].mxu0 %v475
      %v1509 = vpop.f32.mrb[0].mxu0
      %v1510 = vadd.f32 %v308, %v1509
      %v1511 = vpop.f32.mrb[0].mxu0
      %v1512 = vadd.f32 %v308, %v1511
      %1513 = vmatprep.mubr.f32.mxu0 0.0
      %1514 = vmatmul.mubr.f32.gmra.mrb[0].mxu0 %v478
      %v1515 = vpop.f32.mrb[0].mxu0
      %v1516 = vadd.f32 %v313, %v1515
      %v1517 = vpop.f32.mrb[0].mxu0
      %v1518 = vadd.f32 %v313, %v1517
      %1519 = vmatprep.mubr.f32.mxu0 0.0
      %1520 = vmatmul.mubr.f32.gmra.mrb[0].mxu0 %v481
      %v1521 = vpop.f32.mrb[0].mxu0
      %v1522 = vadd.f32 %v318, %v1521
      %v1523 = vpop.f32.mrb[0].mxu0
      %v1524 = vadd.f32 %v318, %v1523
      %1525 = vmatprep.mubr.f32.mxu0 0.0
      %1526 = vmatmul.mubr.f32.gmra.mrb[0].mxu0 %v484
      %v1527 = vpop.f32.mrb[0].mxu0
      %v1528 = vadd.f32 %v323, %v1527
      %v1529 = vpop.f32.mrb[0].mxu0
      %v1530 = vadd.f32 %v323, %v1529
      %1531 = vmatprep.mubr.f32.mxu0 0.0
      %1532 = vmatmul.mubr.f32.gmra.mrb[0].mxu0 %v487
      %v1533 = vpop.f32.mrb[0].mxu0
      %v1534 = vadd.f32 %v328, %v1533
      %v1535 = vpop.f32.mrb[0].mxu0
      %v1536 = vadd.f32 %v328, %v1535
      %1537 = vmatprep.mubr.f32.mxu0 0.0
      %1538 = vmatmul.mubr.f32.gmra.mrb[0].mxu0 %v490
      %v1539 = vpop.f32.mrb[0].mxu0
      %v1540 = vadd.f32 %v333, %v1539
      %v1541 = vpop.f32.mrb[0].mxu0
      %v1542 = vadd.f32 %v333, %v1541
      %1543 = vmatprep.mubr.f32.mxu0 0.0
      %1544 = vmatmul.mubr.f32.gmra.mrb[0].mxu0 %v493
      %v1545 = vpop.f32.mrb[0].mxu0
      %v1546 = vadd.f32 %v338, %v1545
      %v1547 = vpop.f32.mrb[0].mxu0
      %v1548 = vadd.f32 %v338, %v1547
      %1549 = vmatprep.mubr.f32.mxu0 0.0
      %1550 = vmatmul.mubr.f32.gmra.mrb[0].mxu0 %v496
      %v1551 = vpop.f32.mrb[0].mxu0
      %v1552 = vadd.f32 %v343, %v1551
      %v1553 = vpop.f32.mrb[0].mxu0
      %v1554 = vadd.f32 %v343, %v1553
      %1555 = vmatprep.mubr.f32.mxu0 0.0
      %1556 = vmatmul.mubr.f32.gmra.mrb[0].mxu0 %v499
      %v1557 = vpop.f32.mrb[0].mxu0
      %v1558 = vadd.f32 %v348, %v1557
      %v1559 = vpop.f32.mrb[0].mxu0
      %v1560 = vadd.f32 %v348, %v1559
      %1561 = vmatprep.mubr.f32.mxu0 0.0
      %1562 = vmatmul.mubr.f32.gmra.mrb[0].mxu0 %v502
      %v1563 = vpop.f32.mrb[0].mxu0
      %v1564 = vadd.f32 %v353, %v1563
      %v1565 = vpop.f32.mrb[0].mxu0
      %v1566 = vadd.f32 %v353, %v1565
      %1567 = vmatprep.mubr.f32.mxu0 0.0
      %1568 = vmatmul.mubr.f32.gmra.mrb[0].mxu0 %v505
      %v1569 = vpop.f32.mrb[0].mxu0
      %v1570 = vadd.f32 %v358, %v1569
      %v1571 = vpop.f32.mrb[0].mxu0
      %v1572 = vadd.f32 %v358, %v1571
      %1573 = vmatprep.mubr.f32.mxu0 0.0
      %1574 = vmatmul.mubr.f32.gmra.mrb[0].mxu0 %v508
      %v1575 = vpop.f32.mrb[0].mxu0
      %v1576 = vadd.f32 %v363, %v1575
      %v1577 = vpop.f32.mrb[0].mxu0
      %v1578 = vadd.f32 %v363, %v1577
      %1579 = vmatprep.mubr.f32.mxu0 0.0
      %1580 = vmatmul.mubr.f32.gmra.mrb[0].mxu0 %v511
      %v1581 = vpop.f32.mrb[0].mxu0
      %v1582 = vadd.f32 %v368, %v1581
      %v1583 = vpop.f32.mrb[0].mxu0
      %v1584 = vadd.f32 %v368, %v1583
      %1585 = vmatprep.mubr.f32.mxu0 0.0
      %1586 = vmatmul.mubr.f32.gmra.mrb[0].mxu0 %v514
      %v1587 = vpop.f32.mrb[0].mxu0
      %v1588 = vadd.f32 %v373, %v1587
      %v1589 = vpop.f32.mrb[0].mxu0
      %v1590 = vadd.f32 %v373, %v1589
      %1591 = vmatprep.mubr.f32.mxu0 0.0
      %1592 = vmatmul.mubr.f32.gmra.mrb[0].mxu0 %v517
      %v1593 = vpop.f32.mrb[0].mxu0
      %v1594 = vadd.f32 %v378, %v1593
      %v1595 = vpop.f32.mrb[0].mxu0
      %v1596 = vadd.f32 %v378, %v1595
      %1597 = vmatprep.mubr.f32.mxu0 0.0
      %1598 = vmatmul.mubr.f32.gmra.mrb[0].mxu0 %v520
      %v1599 = vpop.f32.mrb[0].mxu0
      %v1600 = vadd.f32 %v383, %v1599
      %v1601 = vpop.f32.mrb[0].mxu0
      %v1602 = vadd.f32 %v383, %v1601
      %1603 = vmatprep.mubr.f32.mxu0 0.0
      %1604 = vmatmul.mubr.f32.gmra.mrb[0].mxu0 %v523
      %v1605 = vpop.f32.mrb[0].mxu0
      %v1606 = vadd.f32 %v388, %v1605
      %v1607 = vpop.f32.mrb[0].mxu0
      %v1608 = vadd.f32 %v388, %v1607
      %1609 = vmatprep.mubr.f32.mxu0 0.0
      %1610 = vmatmul.mubr.f32.gmra.mrb[0].mxu0 %v526
      %v1611 = vpop.f32.mrb[0].mxu0
      %v1612 = vadd.f32 %v393, %v1611
      %v1613 = vpop.f32.mrb[0].mxu0
      %v1614 = vadd.f32 %v393, %v1613
      %1615 = vmatprep.mubr.f32.mxu0 0.0
      %1616 = vmatmul.mubr.f32.gmra.mrb[0].mxu0 %v529
      %v1617 = vpop.f32.mrb[0].mxu0
      %v1618 = vadd.f32 %v398, %v1617
      %v1619 = vpop.f32.mrb[0].mxu0
      %v1620 = vadd.f32 %v398, %v1619
      %1621 = vmatprep.mubr.f32.mxu0 0.0
      %1622 = vmatmul.mubr.f32.gmra.mrb[0].mxu0 %v532
      %v1623 = vpop.f32.mrb[0].mxu0
      %v1624 = vadd.f32 %v403, %v1623
      %v1625 = vpop.f32.mrb[0].mxu0
      %v1626 = vadd.f32 %v403, %v1625
      %1627 = vmatprep.mubr.f32.mxu0 0.0
      %1628 = vmatmul.mubr.f32.gmra.mrb[0].mxu0 %v535
      %v1629 = vpop.f32.mrb[0].mxu0
      %v1630 = vadd.f32 %v408, %v1629
      %v1631 = vpop.f32.mrb[0].mxu0
      %v1632 = vadd.f32 %v408, %v1631
      %1633 = vmatprep.mubr.f32.mxu0 0.0
      %1634 = vmatmul.mubr.f32.gmra.mrb[0].mxu0 %v538
      %v1635 = vpop.f32.mrb[0].mxu0
      %v1636 = vadd.f32 %v413, %v1635
      %v1637 = vpop.f32.mrb[0].mxu0
      %v1638 = vadd.f32 %v413, %v1637
      %1639 = vmatprep.mubr.f32.mxu0 0.0
      %1640 = vmatmul.mubr.f32.gmra.mrb[0].mxu0 %v541
      %v1641 = vpop.f32.mrb[0].mxu0
      %v1642 = vadd.f32 %v418, %v1641
      %v1643 = vpop.f32.mrb[0].mxu0
      %v1644 = vadd.f32 %v418, %v1643
      %1645 = vmatprep.mubr.f32.mxu0 0.0
      %1646 = vmatmul.mubr.f32.gmra.mrb[0].mxu0 %v544
      %v1647 = vpop.f32.mrb[0].mxu0
      %v1648 = vadd.f32 %v423, %v1647
      %v1649 = vpop.f32.mrb[0].mxu0
      %v1650 = vadd.f32 %v423, %v1649
      %1651 = vmatprep.mubr.f32.mxu0 0.0
      %1652 = vmatmul.mubr.f32.gmra.mrb[0].mxu0 %v547
      %v1653 = vpop.f32.mrb[0].mxu0
      %v1654 = vadd.f32 %v428, %v1653
      %v1655 = vpop.f32.mrb[0].mxu0
      %v1656 = vadd.f32 %v428, %v1655
      %1657 = vmatprep.mubr.f32.mxu0 0.0
      %1658 = vmatmul.mubr.f32.gmra.mrb[0].mxu0 %v550
      %v1659 = vpop.f32.mrb[0].mxu0
      %v1660 = vadd.f32 %v433, %v1659
      %v1661 = vpop.f32.mrb[0].mxu0
      %v1662 = vadd.f32 %v433, %v1661
      %1663 = vmatprep.mubr.f32.mxu0 0.0
      %1664 = vmatmul.mubr.f32.gmra.mrb[0].mxu0 %v553
      %v1665 = vpop.f32.mrb[0].mxu0
      %v1666 = vadd.f32 %v438, %v1665
      %v1667 = vpop.f32.mrb[0].mxu0
      %v1668 = vadd.f32 %v438, %v1667
      %1669 = vmatprep.mubr.f32.mxu0 0.0
      %1670 = vmatmul.mubr.f32.gmra.mrb[0].mxu0 %v556
      %v1671 = vpop.f32.mrb[0].mxu0
      %v1672 = vadd.f32 %v443, %v1671
      %v1673 = vpop.f32.mrb[0].mxu0
      %v1674 = vadd.f32 %v443, %v1673
      %1675 = vmatprep.mubr.f32.mxu0 0.0
      %1676 = vmatmul.mubr.f32.gmra.mrb[0].mxu0 %v559
      %v1677 = vpop.f32.mrb[0].mxu0
      %v1678 = vadd.f32 %v448, %v1677
      %v1679 = vpop.f32.mrb[0].mxu0
      %v1680 = vadd.f32 %v448, %v1679
      %1681 = vmatprep.mubr.f32.mxu0 0.0
      %1682 = vmatmul.mubr.f32.gmra.mrb[0].mxu0 %v562
      %v1683 = vpop.f32.mrb[0].mxu0
      %v1684 = vadd.f32 %v453, %v1683
      %v1685 = vpop.f32.mrb[0].mxu0
      %v1686 = vadd.f32 %v453, %v1685
      %1687 = vdwg.mxu0
      %v1688 = vxor.u32 %v631, 2147483648
      %v1689 = vxor.u32 %v633, 2147483648
      %v1690 = vxor.u32 %v912, 2147483648
      %v1691 = vxor.u32 %v914, 2147483648
      %v1692 = vxor.u32 %v1193, 2147483648
      %v1693 = vxor.u32 %v1195, 2147483648
      %v1694 = vxor.u32 %v1474, 2147483648
      %v1695 = vxor.u32 %v1476, 2147483648
      %v1696 = vxor.u32 %v637, 2147483648
      %v1697 = vxor.u32 %v639, 2147483648
      %v1698 = vxor.u32 %v918, 2147483648
      %v1699 = vxor.u32 %v920, 2147483648
      %v1700 = vxor.u32 %v1199, 2147483648
      %v1701 = vxor.u32 %v1201, 2147483648
      %v1702 = vxor.u32 %v1480, 2147483648
      %v1703 = vxor.u32 %v1482, 2147483648
      %v1704 = vxor.u32 %v643, 2147483648
      %v1705 = vxor.u32 %v645, 2147483648
      %v1706 = vxor.u32 %v924, 2147483648
      %v1707 = vxor.u32 %v926, 2147483648
      %v1708 = vxor.u32 %v1205, 2147483648
      %v1709 = vxor.u32 %v1207, 2147483648
      %v1710 = vxor.u32 %v1486, 2147483648
      %v1711 = vxor.u32 %v1488, 2147483648
      %v1712 = vxor.u32 %v649, 2147483648
      %v1713 = vxor.u32 %v651, 2147483648
      %v1714 = vxor.u32 %v930, 2147483648
      %v1715 = vxor.u32 %v932, 2147483648
      %v1716 = vxor.u32 %v1211, 2147483648
      %v1717 = vxor.u32 %v1213, 2147483648
      %v1718 = vxor.u32 %v1492, 2147483648
      %v1719 = vxor.u32 %v1494, 2147483648
      %v1720 = vxor.u32 %v655, 2147483648
      %v1721 = vxor.u32 %v657, 2147483648
      %v1722 = vxor.u32 %v936, 2147483648
      %v1723 = vxor.u32 %v938, 2147483648
      %v1724 = vxor.u32 %v1217, 2147483648
      %v1725 = vxor.u32 %v1219, 2147483648
      %v1726 = vxor.u32 %v1498, 2147483648
      %v1727 = vxor.u32 %v1500, 2147483648
      %v1728 = vxor.u32 %v661, 2147483648
      %v1729 = vxor.u32 %v663, 2147483648
      %v1730 = vxor.u32 %v942, 2147483648
      %v1731 = vxor.u32 %v944, 2147483648
      %v1732 = vxor.u32 %v1223, 2147483648
      %v1733 = vxor.u32 %v1225, 2147483648
      %v1734 = vxor.u32 %v1504, 2147483648
      %v1735 = vxor.u32 %v1506, 2147483648
      %v1736 = vxor.u32 %v667, 2147483648
      %v1737 = vxor.u32 %v669, 2147483648
      %v1738 = vxor.u32 %v948, 2147483648
      %v1739 = vxor.u32 %v950, 2147483648
      %v1740 = vxor.u32 %v1229, 2147483648
      %v1741 = vxor.u32 %v1231, 2147483648
      %v1742 = vxor.u32 %v1510, 2147483648
      %v1743 = vxor.u32 %v1512, 2147483648
      %v1744 = vxor.u32 %v673, 2147483648
      %v1745 = vxor.u32 %v675, 2147483648
      %v1746 = vxor.u32 %v954, 2147483648
      %v1747 = vxor.u32 %v956, 2147483648
      %v1748 = vxor.u32 %v1235, 2147483648
      %v1749 = vxor.u32 %v1237, 2147483648
      %v1750 = vxor.u32 %v1516, 2147483648
      %v1751 = vxor.u32 %v1518, 2147483648
      %v1752 = vxor.u32 %v679, 2147483648
      %v1753 = vxor.u32 %v681, 2147483648
      %v1754 = vxor.u32 %v960, 2147483648
      %v1755 = vxor.u32 %v962, 2147483648
      %v1756 = vxor.u32 %v1241, 2147483648
      %v1757 = vxor.u32 %v1243, 2147483648
      %v1758 = vxor.u32 %v1522, 2147483648
      %v1759 = vxor.u32 %v1524, 2147483648
      %v1760 = vxor.u32 %v685, 2147483648
      %v1761 = vxor.u32 %v687, 2147483648
      %v1762 = vxor.u32 %v966, 2147483648
      %v1763 = vxor.u32 %v968, 2147483648
      %v1764 = vxor.u32 %v1247, 2147483648
      %v1765 = vxor.u32 %v1249, 2147483648
      %v1766 = vxor.u32 %v1528, 2147483648
      %v1767 = vxor.u32 %v1530, 2147483648
      %v1768 = vxor.u32 %v691, 2147483648
      %v1769 = vxor.u32 %v693, 2147483648
      %v1770 = vxor.u32 %v972, 2147483648
      %v1771 = vxor.u32 %v974, 2147483648
      %v1772 = vxor.u32 %v1253, 2147483648
      %v1773 = vxor.u32 %v1255, 2147483648
      %v1774 = vxor.u32 %v1534, 2147483648
      %v1775 = vxor.u32 %v1536, 2147483648
      %v1776 = vxor.u32 %v697, 2147483648
      %v1777 = vxor.u32 %v699, 2147483648
      %v1778 = vxor.u32 %v978, 2147483648
      %v1779 = vxor.u32 %v980, 2147483648
      %v1780 = vxor.u32 %v1259, 2147483648
      %v1781 = vxor.u32 %v1261, 2147483648
      %v1782 = vxor.u32 %v1540, 2147483648
      %v1783 = vxor.u32 %v1542, 2147483648
      %v1784 = vxor.u32 %v703, 2147483648
      %v1785 = vxor.u32 %v705, 2147483648
      %v1786 = vxor.u32 %v984, 2147483648
      %v1787 = vxor.u32 %v986, 2147483648
      %v1788 = vxor.u32 %v1265, 2147483648
      %v1789 = vxor.u32 %v1267, 2147483648
      %v1790 = vxor.u32 %v1546, 2147483648
      %v1791 = vxor.u32 %v1548, 2147483648
      %v1792 = vxor.u32 %v709, 2147483648
      %v1793 = vxor.u32 %v711, 2147483648
      %v1794 = vxor.u32 %v990, 2147483648
      %v1795 = vxor.u32 %v992, 2147483648
      %v1796 = vxor.u32 %v1271, 2147483648
      %v1797 = vxor.u32 %v1273, 2147483648
      %v1798 = vxor.u32 %v1552, 2147483648
      %v1799 = vxor.u32 %v1554, 2147483648
      %v1800 = vxor.u32 %v715, 2147483648
      %v1801 = vxor.u32 %v717, 2147483648
      %v1802 = vxor.u32 %v996, 2147483648
      %v1803 = vxor.u32 %v998, 2147483648
      %v1804 = vxor.u32 %v1277, 2147483648
      %v1805 = vxor.u32 %v1279, 2147483648
      %v1806 = vxor.u32 %v1558, 2147483648
      %v1807 = vxor.u32 %v1560, 2147483648
      %v1808 = vxor.u32 %v721, 2147483648
      %v1809 = vxor.u32 %v723, 2147483648
      %v1810 = vxor.u32 %v1002, 2147483648
      %v1811 = vxor.u32 %v1004, 2147483648
      %v1812 = vxor.u32 %v1283, 2147483648
      %v1813 = vxor.u32 %v1285, 2147483648
      %v1814 = vxor.u32 %v1564, 2147483648
      %v1815 = vxor.u32 %v1566, 2147483648
      %v1816 = vxor.u32 %v727, 2147483648
      %v1817 = vxor.u32 %v729, 2147483648
      %v1818 = vxor.u32 %v1008, 2147483648
      %v1819 = vxor.u32 %v1010, 2147483648
      %v1820 = vxor.u32 %v1289, 2147483648
      %v1821 = vxor.u32 %v1291, 2147483648
      %v1822 = vxor.u32 %v1570, 2147483648
      %v1823 = vxor.u32 %v1572, 2147483648
      %v1824 = vxor.u32 %v733, 2147483648
      %v1825 = vxor.u32 %v735, 2147483648
      %v1826 = vxor.u32 %v1014, 2147483648
      %v1827 = vxor.u32 %v1016, 2147483648
      %v1828 = vxor.u32 %v1295, 2147483648
      %v1829 = vxor.u32 %v1297, 2147483648
      %v1830 = vxor.u32 %v1576, 2147483648
      %v1831 = vxor.u32 %v1578, 2147483648
      %v1832 = vxor.u32 %v739, 2147483648
      %v1833 = vxor.u32 %v741, 2147483648
      %v1834 = vxor.u32 %v1020, 2147483648
      %v1835 = vxor.u32 %v1022, 2147483648
      %v1836 = vxor.u32 %v1301, 2147483648
      %v1837 = vxor.u32 %v1303, 2147483648
      %v1838 = vxor.u32 %v1582, 2147483648
      %v1839 = vxor.u32 %v1584, 2147483648
      %v1840 = vxor.u32 %v745, 2147483648
      %v1841 = vxor.u32 %v747, 2147483648
      %v1842 = vxor.u32 %v1026, 2147483648
      %v1843 = vxor.u32 %v1028, 2147483648
      %v1844 = vxor.u32 %v1307, 2147483648
      %v1845 = vxor.u32 %v1309, 2147483648
      %v1846 = vxor.u32 %v1588, 2147483648
      %v1847 = vxor.u32 %v1590, 2147483648
      %v1848 = vxor.u32 %v751, 2147483648
      %v1849 = vxor.u32 %v753, 2147483648
      %v1850 = vxor.u32 %v1032, 2147483648
      %v1851 = vxor.u32 %v1034, 2147483648
      %v1852 = vxor.u32 %v1313, 2147483648
      %v1853 = vxor.u32 %v1315, 2147483648
      %v1854 = vxor.u32 %v1594, 2147483648
      %v1855 = vxor.u32 %v1596, 2147483648
      %v1856 = vxor.u32 %v757, 2147483648
      %v1857 = vxor.u32 %v759, 2147483648
      %v1858 = vxor.u32 %v1038, 2147483648
      %v1859 = vxor.u32 %v1040, 2147483648
      %v1860 = vxor.u32 %v1319, 2147483648
      %v1861 = vxor.u32 %v1321, 2147483648
      %v1862 = vxor.u32 %v1600, 2147483648
      %v1863 = vxor.u32 %v1602, 2147483648
      %v1864 = vxor.u32 %v763, 2147483648
      %v1865 = vxor.u32 %v765, 2147483648
      %v1866 = vxor.u32 %v1044, 2147483648
      %v1867 = vxor.u32 %v1046, 2147483648
      %v1868 = vxor.u32 %v1325, 2147483648
      %v1869 = vxor.u32 %v1327, 2147483648
      %v1870 = vxor.u32 %v1606, 2147483648
      %v1871 = vxor.u32 %v1608, 2147483648
      %v1872 = vxor.u32 %v769, 2147483648
      %v1873 = vxor.u32 %v771, 2147483648
      %v1874 = vxor.u32 %v1050, 2147483648
      %v1875 = vxor.u32 %v1052, 2147483648
      %v1876 = vxor.u32 %v1331, 2147483648
      %v1877 = vxor.u32 %v1333, 2147483648
      %v1878 = vxor.u32 %v1612, 2147483648
      %v1879 = vxor.u32 %v1614, 2147483648
      %v1880 = vxor.u32 %v775, 2147483648
      %v1881 = vxor.u32 %v777, 2147483648
      %v1882 = vxor.u32 %v1056, 2147483648
      %v1883 = vxor.u32 %v1058, 2147483648
      %v1884 = vxor.u32 %v1337, 2147483648
      %v1885 = vxor.u32 %v1339, 2147483648
      %v1886 = vxor.u32 %v1618, 2147483648
      %v1887 = vxor.u32 %v1620, 2147483648
      %v1888 = vxor.u32 %v781, 2147483648
      %v1889 = vxor.u32 %v783, 2147483648
      %v1890 = vxor.u32 %v1062, 2147483648
      %v1891 = vxor.u32 %v1064, 2147483648
      %v1892 = vxor.u32 %v1343, 2147483648
      %v1893 = vxor.u32 %v1345, 2147483648
      %v1894 = vxor.u32 %v1624, 2147483648
      %v1895 = vxor.u32 %v1626, 2147483648
      %v1896 = vxor.u32 %v787, 2147483648
      %v1897 = vxor.u32 %v789, 2147483648
      %v1898 = vxor.u32 %v1068, 2147483648
      %v1899 = vxor.u32 %v1070, 2147483648
      %v1900 = vxor.u32 %v1349, 2147483648
      %v1901 = vxor.u32 %v1351, 2147483648
      %v1902 = vxor.u32 %v1630, 2147483648
      %v1903 = vxor.u32 %v1632, 2147483648
      %v1904 = vxor.u32 %v793, 2147483648
      %v1905 = vxor.u32 %v795, 2147483648
      %v1906 = vxor.u32 %v1074, 2147483648
      %v1907 = vxor.u32 %v1076, 2147483648
      %v1908 = vxor.u32 %v1355, 2147483648
      %v1909 = vxor.u32 %v1357, 2147483648
      %v1910 = vxor.u32 %v1636, 2147483648
      %v1911 = vxor.u32 %v1638, 2147483648
      %v1912 = vxor.u32 %v799, 2147483648
      %v1913 = vxor.u32 %v801, 2147483648
      %v1914 = vxor.u32 %v1080, 2147483648
      %v1915 = vxor.u32 %v1082, 2147483648
      %v1916 = vxor.u32 %v1361, 2147483648
      %v1917 = vxor.u32 %v1363, 2147483648
      %v1918 = vxor.u32 %v1642, 2147483648
      %v1919 = vxor.u32 %v1644, 2147483648
      %v1920 = vxor.u32 %v805, 2147483648
      %v1921 = vxor.u32 %v807, 2147483648
      %v1922 = vxor.u32 %v1086, 2147483648
      %v1923 = vxor.u32 %v1088, 2147483648
      %v1924 = vxor.u32 %v1367, 2147483648
      %v1925 = vxor.u32 %v1369, 2147483648
      %v1926 = vxor.u32 %v1648, 2147483648
      %v1927 = vxor.u32 %v1650, 2147483648
      %v1928 = vxor.u32 %v811, 2147483648
      %v1929 = vxor.u32 %v813, 2147483648
      %v1930 = vxor.u32 %v1092, 2147483648
      %v1931 = vxor.u32 %v1094, 2147483648
      %v1932 = vxor.u32 %v1373, 2147483648
      %v1933 = vxor.u32 %v1375, 2147483648
      %v1934 = vxor.u32 %v1654, 2147483648
      %v1935 = vxor.u32 %v1656, 2147483648
      %v1936 = vxor.u32 %v817, 2147483648
      %v1937 = vxor.u32 %v819, 2147483648
      %v1938 = vxor.u32 %v1098, 2147483648
      %v1939 = vxor.u32 %v1100, 2147483648
      %v1940 = vxor.u32 %v1379, 2147483648
      %v1941 = vxor.u32 %v1381, 2147483648
      %v1942 = vxor.u32 %v1660, 2147483648
      %v1943 = vxor.u32 %v1662, 2147483648
      %v1944 = vxor.u32 %v823, 2147483648
      %v1945 = vxor.u32 %v825, 2147483648
      %v1946 = vxor.u32 %v1104, 2147483648
      %v1947 = vxor.u32 %v1106, 2147483648
      %v1948 = vxor.u32 %v1385, 2147483648
      %v1949 = vxor.u32 %v1387, 2147483648
      %v1950 = vxor.u32 %v1666, 2147483648
      %v1951 = vxor.u32 %v1668, 2147483648
      %v1952 = vxor.u32 %v829, 2147483648
      %v1953 = vxor.u32 %v831, 2147483648
      %v1954 = vxor.u32 %v1110, 2147483648
      %v1955 = vxor.u32 %v1112, 2147483648
      %v1956 = vxor.u32 %v1391, 2147483648
      %v1957 = vxor.u32 %v1393, 2147483648
      %v1958 = vxor.u32 %v1672, 2147483648
      %v1959 = vxor.u32 %v1674, 2147483648
      %v1960 = vxor.u32 %v835, 2147483648
      %v1961 = vxor.u32 %v837, 2147483648
      %v1962 = vxor.u32 %v1116, 2147483648
      %v1963 = vxor.u32 %v1118, 2147483648
      %v1964 = vxor.u32 %v1397, 2147483648
      %v1965 = vxor.u32 %v1399, 2147483648
      %v1966 = vxor.u32 %v1678, 2147483648
      %v1967 = vxor.u32 %v1680, 2147483648
      %v1968 = vxor.u32 %v841, 2147483648
      %v1969 = vxor.u32 %v843, 2147483648
      %v1970 = vxor.u32 %v1122, 2147483648
      %v1971 = vxor.u32 %v1124, 2147483648
      %v1972 = vxor.u32 %v1403, 2147483648
      %v1973 = vxor.u32 %v1405, 2147483648
      %v1974 = vxor.u32 %v1684, 2147483648
      %v1975 = vxor.u32 %v1686, 2147483648
      %v1976 = vmul.f32 %v1688, 1.442695
      %v1977 = vpow.pop %v1976
      %v1978 = vmul.f32 %v1689, 1.442695
      %v1979 = vpow.pop %v1978
      %v1980 = vmul.f32 %v1690, 1.442695
      %v1981 = vpow.pop %v1980
      %v1982 = vmul.f32 %v1691, 1.442695
      %v1983 = vpow.pop %v1982
      %v1984 = vmul.f32 %v1692, 1.442695
      %v1985 = vpow.pop %v1984
      %v1986 = vmul.f32 %v1693, 1.442695
      %v1987 = vpow.pop %v1986
      %v1988 = vmul.f32 %v1694, 1.442695
      %v1989 = vpow.pop %v1988
      %v1990 = vmul.f32 %v1695, 1.442695
      %v1991 = vpow.pop %v1990
      %v1992 = vmul.f32 %v1696, 1.442695
      %v1993 = vpow.pop %v1992
      %v1994 = vmul.f32 %v1697, 1.442695
      %v1995 = vpow.pop %v1994
      %v1996 = vmul.f32 %v1698, 1.442695
      %v1997 = vpow.pop %v1996
      %v1998 = vmul.f32 %v1699, 1.442695
      %v1999 = vpow.pop %v1998
      %v2000 = vmul.f32 %v1700, 1.442695
      %v2001 = vpow.pop %v2000
      %v2002 = vmul.f32 %v1701, 1.442695
      %v2003 = vpow.pop %v2002
      %v2004 = vmul.f32 %v1702, 1.442695
      %v2005 = vpow.pop %v2004
      %v2006 = vmul.f32 %v1703, 1.442695
      %v2007 = vpow.pop %v2006
      %v2008 = vmul.f32 %v1704, 1.442695
      %v2009 = vpow.pop %v2008
      %v2010 = vmul.f32 %v1705, 1.442695
      %v2011 = vpow.pop %v2010
      %v2012 = vmul.f32 %v1706, 1.442695
      %v2013 = vpow.pop %v2012
      %v2014 = vmul.f32 %v1707, 1.442695
      %v2015 = vpow.pop %v2014
      %v2016 = vmul.f32 %v1708, 1.442695
      %v2017 = vpow.pop %v2016
      %v2018 = vmul.f32 %v1709, 1.442695
      %v2019 = vpow.pop %v2018
      %v2020 = vmul.f32 %v1710, 1.442695
      %v2021 = vpow.pop %v2020
      %v2022 = vmul.f32 %v1711, 1.442695
      %v2023 = vpow.pop %v2022
      %v2024 = vmul.f32 %v1712, 1.442695
      %v2025 = vpow.pop %v2024
      %v2026 = vmul.f32 %v1713, 1.442695
      %v2027 = vpow.pop %v2026
      %v2028 = vmul.f32 %v1714, 1.442695
      %v2029 = vpow.pop %v2028
      %v2030 = vmul.f32 %v1715, 1.442695
      %v2031 = vpow.pop %v2030
      %v2032 = vmul.f32 %v1716, 1.442695
      %v2033 = vpow.pop %v2032
      %v2034 = vmul.f32 %v1717, 1.442695
      %v2035 = vpow.pop %v2034
      %v2036 = vmul.f32 %v1718, 1.442695
      %v2037 = vpow.pop %v2036
      %v2038 = vmul.f32 %v1719, 1.442695
      %v2039 = vpow.pop %v2038
      %v2040 = vmul.f32 %v1720, 1.442695
      %v2041 = vpow.pop %v2040
      %v2042 = vmul.f32 %v1721, 1.442695
      %v2043 = vpow.pop %v2042
      %v2044 = vmul.f32 %v1722, 1.442695
      %v2045 = vpow.pop %v2044
      %v2046 = vmul.f32 %v1723, 1.442695
      %v2047 = vpow.pop %v2046
      %v2048 = vmul.f32 %v1724, 1.442695
      %v2049 = vpow.pop %v2048
      %v2050 = vmul.f32 %v1725, 1.442695
      %v2051 = vpow.pop %v2050
      %v2052 = vmul.f32 %v1726, 1.442695
      %v2053 = vpow.pop %v2052
      %v2054 = vmul.f32 %v1727, 1.442695
      %v2055 = vpow.pop %v2054
      %v2056 = vmul.f32 %v1728, 1.442695
      %v2057 = vpow.pop %v2056
      %v2058 = vmul.f32 %v1729, 1.442695
      %v2059 = vpow.pop %v2058
      %v2060 = vmul.f32 %v1730, 1.442695
      %v2061 = vpow.pop %v2060
      %v2062 = vmul.f32 %v1731, 1.442695
      %v2063 = vpow.pop %v2062
      %v2064 = vmul.f32 %v1732, 1.442695
      %v2065 = vpow.pop %v2064
      %v2066 = vmul.f32 %v1733, 1.442695
      %v2067 = vpow.pop %v2066
      %v2068 = vmul.f32 %v1734, 1.442695
      %v2069 = vpow.pop %v2068
      %v2070 = vmul.f32 %v1735, 1.442695
      %v2071 = vpow.pop %v2070
      %v2072 = vmul.f32 %v1736, 1.442695
      %v2073 = vpow.pop %v2072
      %v2074 = vmul.f32 %v1737, 1.442695
      %v2075 = vpow.pop %v2074
      %v2076 = vmul.f32 %v1738, 1.442695
      %v2077 = vpow.pop %v2076
      %v2078 = vmul.f32 %v1739, 1.442695
      %v2079 = vpow.pop %v2078
      %v2080 = vmul.f32 %v1740, 1.442695
      %v2081 = vpow.pop %v2080
      %v2082 = vmul.f32 %v1741, 1.442695
      %v2083 = vpow.pop %v2082
      %v2084 = vmul.f32 %v1742, 1.442695
      %v2085 = vpow.pop %v2084
      %v2086 = vmul.f32 %v1743, 1.442695
      %v2087 = vpow.pop %v2086
      %v2088 = vmul.f32 %v1744, 1.442695
      %v2089 = vpow.pop %v2088
      %v2090 = vmul.f32 %v1745, 1.442695
      %v2091 = vpow.pop %v2090
      %v2092 = vmul.f32 %v1746, 1.442695
      %v2093 = vpow.pop %v2092
      %v2094 = vmul.f32 %v1747, 1.442695
      %v2095 = vpow.pop %v2094
      %v2096 = vmul.f32 %v1748, 1.442695
      %v2097 = vpow.pop %v2096
      %v2098 = vmul.f32 %v1749, 1.442695
      %v2099 = vpow.pop %v2098
      %v2100 = vmul.f32 %v1750, 1.442695
      %v2101 = vpow.pop %v2100
      %v2102 = vmul.f32 %v1751, 1.442695
      %v2103 = vpow.pop %v2102
      %v2104 = vmul.f32 %v1752, 1.442695
      %v2105 = vpow.pop %v2104
      %v2106 = vmul.f32 %v1753, 1.442695
      %v2107 = vpow.pop %v2106
      %v2108 = vmul.f32 %v1754, 1.442695
      %v2109 = vpow.pop %v2108
      %v2110 = vmul.f32 %v1755, 1.442695
      %v2111 = vpow.pop %v2110
      %v2112 = vmul.f32 %v1756, 1.442695
      %v2113 = vpow.pop %v2112
      %v2114 = vmul.f32 %v1757, 1.442695
      %v2115 = vpow.pop %v2114
      %v2116 = vmul.f32 %v1758, 1.442695
      %v2117 = vpow.pop %v2116
      %v2118 = vmul.f32 %v1759, 1.442695
      %v2119 = vpow.pop %v2118
      %v2120 = vmul.f32 %v1760, 1.442695
      %v2121 = vpow.pop %v2120
      %v2122 = vmul.f32 %v1761, 1.442695
      %v2123 = vpow.pop %v2122
      %v2124 = vmul.f32 %v1762, 1.442695
      %v2125 = vpow.pop %v2124
      %v2126 = vmul.f32 %v1763, 1.442695
      %v2127 = vpow.pop %v2126
      %v2128 = vmul.f32 %v1764, 1.442695
      %v2129 = vpow.pop %v2128
      %v2130 = vmul.f32 %v1765, 1.442695
      %v2131 = vpow.pop %v2130
      %v2132 = vmul.f32 %v1766, 1.442695
      %v2133 = vpow.pop %v2132
      %v2134 = vmul.f32 %v1767, 1.442695
      %v2135 = vpow.pop %v2134
      %v2136 = vmul.f32 %v1768, 1.442695
      %v2137 = vpow.pop %v2136
      %v2138 = vmul.f32 %v1769, 1.442695
      %v2139 = vpow.pop %v2138
      %v2140 = vmul.f32 %v1770, 1.442695
      %v2141 = vpow.pop %v2140
      %v2142 = vmul.f32 %v1771, 1.442695
      %v2143 = vpow.pop %v2142
      %v2144 = vmul.f32 %v1772, 1.442695
      %v2145 = vpow.pop %v2144
      %v2146 = vmul.f32 %v1773, 1.442695
      %v2147 = vpow.pop %v2146
      %v2148 = vmul.f32 %v1774, 1.442695
      %v2149 = vpow.pop %v2148
      %v2150 = vmul.f32 %v1775, 1.442695
      %v2151 = vpow.pop %v2150
      %v2152 = vmul.f32 %v1776, 1.442695
      %v2153 = vpow.pop %v2152
      %v2154 = vmul.f32 %v1777, 1.442695
      %v2155 = vpow.pop %v2154
      %v2156 = vmul.f32 %v1778, 1.442695
      %v2157 = vpow.pop %v2156
      %v2158 = vmul.f32 %v1779, 1.442695
      %v2159 = vpow.pop %v2158
      %v2160 = vmul.f32 %v1780, 1.442695
      %v2161 = vpow.pop %v2160
      %v2162 = vmul.f32 %v1781, 1.442695
      %v2163 = vpow.pop %v2162
      %v2164 = vmul.f32 %v1782, 1.442695
      %v2165 = vpow.pop %v2164
      %v2166 = vmul.f32 %v1783, 1.442695
      %v2167 = vpow.pop %v2166
      %v2168 = vmul.f32 %v1784, 1.442695
      %v2169 = vpow.pop %v2168
      %v2170 = vmul.f32 %v1785, 1.442695
      %v2171 = vpow.pop %v2170
      %v2172 = vmul.f32 %v1786, 1.442695
      %v2173 = vpow.pop %v2172
      %v2174 = vmul.f32 %v1787, 1.442695
      %v2175 = vpow.pop %v2174
      %v2176 = vmul.f32 %v1788, 1.442695
      %v2177 = vpow.pop %v2176
      %v2178 = vmul.f32 %v1789, 1.442695
      %v2179 = vpow.pop %v2178
      %v2180 = vmul.f32 %v1790, 1.442695
      %v2181 = vpow.pop %v2180
      %v2182 = vmul.f32 %v1791, 1.442695
      %v2183 = vpow.pop %v2182
      %v2184 = vmul.f32 %v1792, 1.442695
      %v2185 = vpow.pop %v2184
      %v2186 = vmul.f32 %v1793, 1.442695
      %v2187 = vpow.pop %v2186
      %v2188 = vmul.f32 %v1794, 1.442695
      %v2189 = vpow.pop %v2188
      %v2190 = vmul.f32 %v1795, 1.442695
      %v2191 = vpow.pop %v2190
      %v2192 = vmul.f32 %v1796, 1.442695
      %v2193 = vpow.pop %v2192
      %v2194 = vmul.f32 %v1797, 1.442695
      %v2195 = vpow.pop %v2194
      %v2196 = vmul.f32 %v1798, 1.442695
      %v2197 = vpow.pop %v2196
      %v2198 = vmul.f32 %v1799, 1.442695
      %v2199 = vpow.pop %v2198
      %v2200 = vmul.f32 %v1800, 1.442695
      %v2201 = vpow.pop %v2200
      %v2202 = vmul.f32 %v1801, 1.442695
      %v2203 = vpow.pop %v2202
      %v2204 = vmul.f32 %v1802, 1.442695
      %v2205 = vpow.pop %v2204
      %v2206 = vmul.f32 %v1803, 1.442695
      %v2207 = vpow.pop %v2206
      %v2208 = vmul.f32 %v1804, 1.442695
      %v2209 = vpow.pop %v2208
      %v2210 = vmul.f32 %v1805, 1.442695
      %v2211 = vpow.pop %v2210
      %v2212 = vmul.f32 %v1806, 1.442695
      %v2213 = vpow.pop %v2212
      %v2214 = vmul.f32 %v1807, 1.442695
      %v2215 = vpow.pop %v2214
      %v2216 = vmul.f32 %v1808, 1.442695
      %v2217 = vpow.pop %v2216
      %v2218 = vmul.f32 %v1809, 1.442695
      %v2219 = vpow.pop %v2218
      %v2220 = vmul.f32 %v1810, 1.442695
      %v2221 = vpow.pop %v2220
      %v2222 = vmul.f32 %v1811, 1.442695
      %v2223 = vpow.pop %v2222
      %v2224 = vmul.f32 %v1812, 1.442695
      %v2225 = vpow.pop %v2224
      %v2226 = vmul.f32 %v1813, 1.442695
      %v2227 = vpow.pop %v2226
      %v2228 = vmul.f32 %v1814, 1.442695
      %v2229 = vpow.pop %v2228
      %v2230 = vmul.f32 %v1815, 1.442695
      %v2231 = vpow.pop %v2230
      %v2232 = vmul.f32 %v1816, 1.442695
      %v2233 = vpow.pop %v2232
      %v2234 = vmul.f32 %v1817, 1.442695
      %v2235 = vpow.pop %v2234
      %v2236 = vmul.f32 %v1818, 1.442695
      %v2237 = vpow.pop %v2236
      %v2238 = vmul.f32 %v1819, 1.442695
      %v2239 = vpow.pop %v2238
      %v2240 = vmul.f32 %v1820, 1.442695
      %v2241 = vpow.pop %v2240
      %v2242 = vmul.f32 %v1821, 1.442695
      %v2243 = vpow.pop %v2242
      %v2244 = vmul.f32 %v1822, 1.442695
      %v2245 = vpow.pop %v2244
      %v2246 = vmul.f32 %v1823, 1.442695
      %v2247 = vpow.pop %v2246
      %v2248 = vmul.f32 %v1824, 1.442695
      %v2249 = vpow.pop %v2248
      %v2250 = vmul.f32 %v1825, 1.442695
      %v2251 = vpow.pop %v2250
      %v2252 = vmul.f32 %v1826, 1.442695
      %v2253 = vpow.pop %v2252
      %v2254 = vmul.f32 %v1827, 1.442695
      %v2255 = vpow.pop %v2254
      %v2256 = vmul.f32 %v1828, 1.442695
      %v2257 = vpow.pop %v2256
      %v2258 = vmul.f32 %v1829, 1.442695
      %v2259 = vpow.pop %v2258
      %v2260 = vmul.f32 %v1830, 1.442695
      %v2261 = vpow.pop %v2260
      %v2262 = vmul.f32 %v1831, 1.442695
      %v2263 = vpow.pop %v2262
      %v2264 = vmul.f32 %v1832, 1.442695
      %v2265 = vpow.pop %v2264
      %v2266 = vmul.f32 %v1833, 1.442695
      %v2267 = vpow.pop %v2266
      %v2268 = vmul.f32 %v1834, 1.442695
      %v2269 = vpow.pop %v2268
      %v2270 = vmul.f32 %v1835, 1.442695
      %v2271 = vpow.pop %v2270
      %v2272 = vmul.f32 %v1836, 1.442695
      %v2273 = vpow.pop %v2272
      %v2274 = vmul.f32 %v1837, 1.442695
      %v2275 = vpow.pop %v2274
      %v2276 = vmul.f32 %v1838, 1.442695
      %v2277 = vpow.pop %v2276
      %v2278 = vmul.f32 %v1839, 1.442695
      %v2279 = vpow.pop %v2278
      %v2280 = vmul.f32 %v1840, 1.442695
      %v2281 = vpow.pop %v2280
      %v2282 = vmul.f32 %v1841, 1.442695
      %v2283 = vpow.pop %v2282
      %v2284 = vmul.f32 %v1842, 1.442695
      %v2285 = vpow.pop %v2284
      %v2286 = vmul.f32 %v1843, 1.442695
      %v2287 = vpow.pop %v2286
      %v2288 = vmul.f32 %v1844, 1.442695
      %v2289 = vpow.pop %v2288
      %v2290 = vmul.f32 %v1845, 1.442695
      %v2291 = vpow.pop %v2290
      %v2292 = vmul.f32 %v1846, 1.442695
      %v2293 = vpow.pop %v2292
      %v2294 = vmul.f32 %v1847, 1.442695
      %v2295 = vpow.pop %v2294
      %v2296 = vmul.f32 %v1848, 1.442695
      %v2297 = vpow.pop %v2296
      %v2298 = vmul.f32 %v1849, 1.442695
      %v2299 = vpow.pop %v2298
      %v2300 = vmul.f32 %v1850, 1.442695
      %v2301 = vpow.pop %v2300
      %v2302 = vmul.f32 %v1851, 1.442695
      %v2303 = vpow.pop %v2302
      %v2304 = vmul.f32 %v1852, 1.442695
      %v2305 = vpow.pop %v2304
      %v2306 = vmul.f32 %v1853, 1.442695
      %v2307 = vpow.pop %v2306
      %v2308 = vmul.f32 %v1854, 1.442695
      %v2309 = vpow.pop %v2308
      %v2310 = vmul.f32 %v1855, 1.442695
      %v2311 = vpow.pop %v2310
      %v2312 = vmul.f32 %v1856, 1.442695
      %v2313 = vpow.pop %v2312
      %v2314 = vmul.f32 %v1857, 1.442695
      %v2315 = vpow.pop %v2314
      %v2316 = vmul.f32 %v1858, 1.442695
      %v2317 = vpow.pop %v2316
      %v2318 = vmul.f32 %v1859, 1.442695
      %v2319 = vpow.pop %v2318
      %v2320 = vmul.f32 %v1860, 1.442695
      %v2321 = vpow.pop %v2320
      %v2322 = vmul.f32 %v1861, 1.442695
      %v2323 = vpow.pop %v2322
      %v2324 = vmul.f32 %v1862, 1.442695
      %v2325 = vpow.pop %v2324
      %v2326 = vmul.f32 %v1863, 1.442695
      %v2327 = vpow.pop %v2326
      %v2328 = vmul.f32 %v1864, 1.442695
      %v2329 = vpow.pop %v2328
      %v2330 = vmul.f32 %v1865, 1.442695
      %v2331 = vpow.pop %v2330
      %v2332 = vmul.f32 %v1866, 1.442695
      %v2333 = vpow.pop %v2332
      %v2334 = vmul.f32 %v1867, 1.442695
      %v2335 = vpow.pop %v2334
      %v2336 = vmul.f32 %v1868, 1.442695
      %v2337 = vpow.pop %v2336
      %v2338 = vmul.f32 %v1869, 1.442695
      %v2339 = vpow.pop %v2338
      %v2340 = vmul.f32 %v1870, 1.442695
      %v2341 = vpow.pop %v2340
      %v2342 = vmul.f32 %v1871, 1.442695
      %v2343 = vpow.pop %v2342
      %v2344 = vmul.f32 %v1872, 1.442695
      %v2345 = vpow.pop %v2344
      %v2346 = vmul.f32 %v1873, 1.442695
      %v2347 = vpow.pop %v2346
      %v2348 = vmul.f32 %v1874, 1.442695
      %v2349 = vpow.pop %v2348
      %v2350 = vmul.f32 %v1875, 1.442695
      %v2351 = vpow.pop %v2350
      %v2352 = vmul.f32 %v1876, 1.442695
      %v2353 = vpow.pop %v2352
      %v2354 = vmul.f32 %v1877, 1.442695
      %v2355 = vpow.pop %v2354
      %v2356 = vmul.f32 %v1878, 1.442695
      %v2357 = vpow.pop %v2356
      %v2358 = vmul.f32 %v1879, 1.442695
      %v2359 = vpow.pop %v2358
      %v2360 = vmul.f32 %v1880, 1.442695
      %v2361 = vpow.pop %v2360
      %v2362 = vmul.f32 %v1881, 1.442695
      %v2363 = vpow.pop %v2362
      %v2364 = vmul.f32 %v1882, 1.442695
      %v2365 = vpow.pop %v2364
      %v2366 = vmul.f32 %v1883, 1.442695
      %v2367 = vpow.pop %v2366
      %v2368 = vmul.f32 %v1884, 1.442695
      %v2369 = vpow.pop %v2368
      %v2370 = vmul.f32 %v1885, 1.442695
      %v2371 = vpow.pop %v2370
      %v2372 = vmul.f32 %v1886, 1.442695
      %v2373 = vpow.pop %v2372
      %v2374 = vmul.f32 %v1887, 1.442695
      %v2375 = vpow.pop %v2374
      %v2376 = vmul.f32 %v1888, 1.442695
      %v2377 = vpow.pop %v2376
      %v2378 = vmul.f32 %v1889, 1.442695
      %v2379 = vpow.pop %v2378
      %v2380 = vmul.f32 %v1890, 1.442695
      %v2381 = vpow.pop %v2380
      %v2382 = vmul.f32 %v1891, 1.442695
      %v2383 = vpow.pop %v2382
      %v2384 = vmul.f32 %v1892, 1.442695
      %v2385 = vpow.pop %v2384
      %v2386 = vmul.f32 %v1893, 1.442695
      %v2387 = vpow.pop %v2386
      %v2388 = vmul.f32 %v1894, 1.442695
      %v2389 = vpow.pop %v2388
      %v2390 = vmul.f32 %v1895, 1.442695
      %v2391 = vpow.pop %v2390
      %v2392 = vmul.f32 %v1896, 1.442695
      %v2393 = vpow.pop %v2392
      %v2394 = vmul.f32 %v1897, 1.442695
      %v2395 = vpow.pop %v2394
      %v2396 = vmul.f32 %v1898, 1.442695
      %v2397 = vpow.pop %v2396
      %v2398 = vmul.f32 %v1899, 1.442695
      %v2399 = vpow.pop %v2398
      %v2400 = vmul.f32 %v1900, 1.442695
      %v2401 = vpow.pop %v2400
      %v2402 = vmul.f32 %v1901, 1.442695
      %v2403 = vpow.pop %v2402
      %v2404 = vmul.f32 %v1902, 1.442695
      %v2405 = vpow.pop %v2404
      %v2406 = vmul.f32 %v1903, 1.442695
      %v2407 = vpow.pop %v2406
      %v2408 = vmul.f32 %v1904, 1.442695
      %v2409 = vpow.pop %v2408
      %v2410 = vmul.f32 %v1905, 1.442695
      %v2411 = vpow.pop %v2410
      %v2412 = vmul.f32 %v1906, 1.442695
      %v2413 = vpow.pop %v2412
      %v2414 = vmul.f32 %v1907, 1.442695
      %v2415 = vpow.pop %v2414
      %v2416 = vmul.f32 %v1908, 1.442695
      %v2417 = vpow.pop %v2416
      %v2418 = vmul.f32 %v1909, 1.442695
      %v2419 = vpow.pop %v2418
      %v2420 = vmul.f32 %v1910, 1.442695
      %v2421 = vpow.pop %v2420
      %v2422 = vmul.f32 %v1911, 1.442695
      %v2423 = vpow.pop %v2422
      %v2424 = vmul.f32 %v1912, 1.442695
      %v2425 = vpow.pop %v2424
      %v2426 = vmul.f32 %v1913, 1.442695
      %v2427 = vpow.pop %v2426
      %v2428 = vmul.f32 %v1914, 1.442695
      %v2429 = vpow.pop %v2428
      %v2430 = vmul.f32 %v1915, 1.442695
      %v2431 = vpow.pop %v2430
      %v2432 = vmul.f32 %v1916, 1.442695
      %v2433 = vpow.pop %v2432
      %v2434 = vmul.f32 %v1917, 1.442695
      %v2435 = vpow.pop %v2434
      %v2436 = vmul.f32 %v1918, 1.442695
      %v2437 = vpow.pop %v2436
      %v2438 = vmul.f32 %v1919, 1.442695
      %v2439 = vpow.pop %v2438
      %v2440 = vmul.f32 %v1920, 1.442695
      %v2441 = vpow.pop %v2440
      %v2442 = vmul.f32 %v1921, 1.442695
      %v2443 = vpow.pop %v2442
      %v2444 = vmul.f32 %v1922, 1.442695
      %v2445 = vpow.pop %v2444
      %v2446 = vmul.f32 %v1923, 1.442695
      %v2447 = vpow.pop %v2446
      %v2448 = vmul.f32 %v1924, 1.442695
      %v2449 = vpow.pop %v2448
      %v2450 = vmul.f32 %v1925, 1.442695
      %v2451 = vpow.pop %v2450
      %v2452 = vmul.f32 %v1926, 1.442695
      %v2453 = vpow.pop %v2452
      %v2454 = vmul.f32 %v1927, 1.442695
      %v2455 = vpow.pop %v2454
      %v2456 = vmul.f32 %v1928, 1.442695
      %v2457 = vpow.pop %v2456
      %v2458 = vmul.f32 %v1929, 1.442695
      %v2459 = vpow.pop %v2458
      %v2460 = vmul.f32 %v1930, 1.442695
      %v2461 = vpow.pop %v2460
      %v2462 = vmul.f32 %v1931, 1.442695
      %v2463 = vpow.pop %v2462
      %v2464 = vmul.f32 %v1932, 1.442695
      %v2465 = vpow.pop %v2464
      %v2466 = vmul.f32 %v1933, 1.442695
      %v2467 = vpow.pop %v2466
      %v2468 = vmul.f32 %v1934, 1.442695
      %v2469 = vpow.pop %v2468
      %v2470 = vmul.f32 %v1935, 1.442695
      %v2471 = vpow.pop %v2470
      %v2472 = vmul.f32 %v1936, 1.442695
      %v2473 = vpow.pop %v2472
      %v2474 = vmul.f32 %v1937, 1.442695
      %v2475 = vpow.pop %v2474
      %v2476 = vmul.f32 %v1938, 1.442695
      %v2477 = vpow.pop %v2476
      %v2478 = vmul.f32 %v1939, 1.442695
      %v2479 = vpow.pop %v2478
      %v2480 = vmul.f32 %v1940, 1.442695
      %v2481 = vpow.pop %v2480
      %v2482 = vmul.f32 %v1941, 1.442695
      %v2483 = vpow.pop %v2482
      %v2484 = vmul.f32 %v1942, 1.442695
      %v2485 = vpow.pop %v2484
      %v2486 = vmul.f32 %v1943, 1.442695
      %v2487 = vpow.pop %v2486
      %v2488 = vmul.f32 %v1944, 1.442695
      %v2489 = vpow.pop %v2488
      %v2490 = vmul.f32 %v1945, 1.442695
      %v2491 = vpow.pop %v2490
      %v2492 = vmul.f32 %v1946, 1.442695
      %v2493 = vpow.pop %v2492
      %v2494 = vmul.f32 %v1947, 1.442695
      %v2495 = vpow.pop %v2494
      %v2496 = vmul.f32 %v1948, 1.442695
      %v2497 = vpow.pop %v2496
      %v2498 = vmul.f32 %v1949, 1.442695
      %v2499 = vpow.pop %v2498
      %v2500 = vmul.f32 %v1950, 1.442695
      %v2501 = vpow.pop %v2500
      %v2502 = vmul.f32 %v1951, 1.442695
      %v2503 = vpow.pop %v2502
      %v2504 = vmul.f32 %v1952, 1.442695
      %v2505 = vpow.pop %v2504
      %v2506 = vmul.f32 %v1953, 1.442695
      %v2507 = vpow.pop %v2506
      %v2508 = vmul.f32 %v1954, 1.442695
      %v2509 = vpow.pop %v2508
      %v2510 = vmul.f32 %v1955, 1.442695
      %v2511 = vpow.pop %v2510
      %v2512 = vmul.f32 %v1956, 1.442695
      %v2513 = vpow.pop %v2512
      %v2514 = vmul.f32 %v1957, 1.442695
      %v2515 = vpow.pop %v2514
      %v2516 = vmul.f32 %v1958, 1.442695
      %v2517 = vpow.pop %v2516
      %v2518 = vmul.f32 %v1959, 1.442695
      %v2519 = vpow.pop %v2518
      %v2520 = vmul.f32 %v1960, 1.442695
      %v2521 = vpow.pop %v2520
      %v2522 = vmul.f32 %v1961, 1.442695
      %v2523 = vpow.pop %v2522
      %v2524 = vmul.f32 %v1962, 1.442695
      %v2525 = vpow.pop %v2524
      %v2526 = vmul.f32 %v1963, 1.442695
      %v2527 = vpow.pop %v2526
      %v2528 = vmul.f32 %v1964, 1.442695
      %v2529 = vpow.pop %v2528
      %v2530 = vmul.f32 %v1965, 1.442695
      %v2531 = vpow.pop %v2530
      %v2532 = vmul.f32 %v1966, 1.442695
      %v2533 = vpow.pop %v2532
      %v2534 = vmul.f32 %v1967, 1.442695
      %v2535 = vpow.pop %v2534
      %v2536 = vmul.f32 %v1968, 1.442695
      %v2537 = vpow.pop %v2536
      %v2538 = vmul.f32 %v1969, 1.442695
      %v2539 = vpow.pop %v2538
      %v2540 = vmul.f32 %v1970, 1.442695
      %v2541 = vpow.pop %v2540
      %v2542 = vmul.f32 %v1971, 1.442695
      %v2543 = vpow.pop %v2542
      %v2544 = vmul.f32 %v1972, 1.442695
      %v2545 = vpow.pop %v2544
      %v2546 = vmul.f32 %v1973, 1.442695
      %v2547 = vpow.pop %v2546
      %v2548 = vmul.f32 %v1974, 1.442695
      %v2549 = vpow.pop %v2548
      %v2550 = vmul.f32 %v1975, 1.442695
      %v2551 = vpow.pop %v2550
      %v2552 = vadd.f32 %v1977, 1.0
      %v2553 = vadd.f32 %v1979, 1.0
      %v2554 = vadd.f32 %v1981, 1.0
      %v2555 = vadd.f32 %v1983, 1.0
      %v2556 = vadd.f32 %v1985, 1.0
      %v2557 = vadd.f32 %v1987, 1.0
      %v2558 = vadd.f32 %v1989, 1.0
      %v2559 = vadd.f32 %v1991, 1.0
      %v2560 = vadd.f32 %v1993, 1.0
      %v2561 = vadd.f32 %v1995, 1.0
      %v2562 = vadd.f32 %v1997, 1.0
      %v2563 = vadd.f32 %v1999, 1.0
      %v2564 = vadd.f32 %v2001, 1.0
      %v2565 = vadd.f32 %v2003, 1.0
      %v2566 = vadd.f32 %v2005, 1.0
      %v2567 = vadd.f32 %v2007, 1.0
      %v2568 = vadd.f32 %v2009, 1.0
      %v2569 = vadd.f32 %v2011, 1.0
      %v2570 = vadd.f32 %v2013, 1.0
      %v2571 = vadd.f32 %v2015, 1.0
      %v2572 = vadd.f32 %v2017, 1.0
      %v2573 = vadd.f32 %v2019, 1.0
      %v2574 = vadd.f32 %v2021, 1.0
      %v2575 = vadd.f32 %v2023, 1.0
      %v2576 = vadd.f32 %v2025, 1.0
      %v2577 = vadd.f32 %v2027, 1.0
      %v2578 = vadd.f32 %v2029, 1.0
      %v2579 = vadd.f32 %v2031, 1.0
      %v2580 = vadd.f32 %v2033, 1.0
      %v2581 = vadd.f32 %v2035, 1.0
      %v2582 = vadd.f32 %v2037, 1.0
      %v2583 = vadd.f32 %v2039, 1.0
      %v2584 = vadd.f32 %v2041, 1.0
      %v2585 = vadd.f32 %v2043, 1.0
      %v2586 = vadd.f32 %v2045, 1.0
      %v2587 = vadd.f32 %v2047, 1.0
      %v2588 = vadd.f32 %v2049, 1.0
      %v2589 = vadd.f32 %v2051, 1.0
      %v2590 = vadd.f32 %v2053, 1.0
      %v2591 = vadd.f32 %v2055, 1.0
      %v2592 = vadd.f32 %v2057, 1.0
      %v2593 = vadd.f32 %v2059, 1.0
      %v2594 = vadd.f32 %v2061, 1.0
      %v2595 = vadd.f32 %v2063, 1.0
      %v2596 = vadd.f32 %v2065, 1.0
      %v2597 = vadd.f32 %v2067, 1.0
      %v2598 = vadd.f32 %v2069, 1.0
      %v2599 = vadd.f32 %v2071, 1.0
      %v2600 = vadd.f32 %v2073, 1.0
      %v2601 = vadd.f32 %v2075, 1.0
      %v2602 = vadd.f32 %v2077, 1.0
      %v2603 = vadd.f32 %v2079, 1.0
      %v2604 = vadd.f32 %v2081, 1.0
      %v2605 = vadd.f32 %v2083, 1.0
      %v2606 = vadd.f32 %v2085, 1.0
      %v2607 = vadd.f32 %v2087, 1.0
      %v2608 = vadd.f32 %v2089, 1.0
      %v2609 = vadd.f32 %v2091, 1.0
      %v2610 = vadd.f32 %v2093, 1.0
      %v2611 = vadd.f32 %v2095, 1.0
      %v2612 = vadd.f32 %v2097, 1.0
      %v2613 = vadd.f32 %v2099, 1.0
      %v2614 = vadd.f32 %v2101, 1.0
      %v2615 = vadd.f32 %v2103, 1.0
      %v2616 = vadd.f32 %v2105, 1.0
      %v2617 = vadd.f32 %v2107, 1.0
      %v2618 = vadd.f32 %v2109, 1.0
      %v2619 = vadd.f32 %v2111, 1.0
      %v2620 = vadd.f32 %v2113, 1.0
      %v2621 = vadd.f32 %v2115, 1.0
      %v2622 = vadd.f32 %v2117, 1.0
      %v2623 = vadd.f32 %v2119, 1.0
      %v2624 = vadd.f32 %v2121, 1.0
      %v2625 = vadd.f32 %v2123, 1.0
      %v2626 = vadd.f32 %v2125, 1.0
      %v2627 = vadd.f32 %v2127, 1.0
      %v2628 = vadd.f32 %v2129, 1.0
      %v2629 = vadd.f32 %v2131, 1.0
      %v2630 = vadd.f32 %v2133, 1.0
      %v2631 = vadd.f32 %v2135, 1.0
      %v2632 = vadd.f32 %v2137, 1.0
      %v2633 = vadd.f32 %v2139, 1.0
      %v2634 = vadd.f32 %v2141, 1.0
      %v2635 = vadd.f32 %v2143, 1.0
      %v2636 = vadd.f32 %v2145, 1.0
      %v2637 = vadd.f32 %v2147, 1.0
      %v2638 = vadd.f32 %v2149, 1.0
      %v2639 = vadd.f32 %v2151, 1.0
      %v2640 = vadd.f32 %v2153, 1.0
      %v2641 = vadd.f32 %v2155, 1.0
      %v2642 = vadd.f32 %v2157, 1.0
      %v2643 = vadd.f32 %v2159, 1.0
      %v2644 = vadd.f32 %v2161, 1.0
      %v2645 = vadd.f32 %v2163, 1.0
      %v2646 = vadd.f32 %v2165, 1.0
      %v2647 = vadd.f32 %v2167, 1.0
      %v2648 = vadd.f32 %v2169, 1.0
      %v2649 = vadd.f32 %v2171, 1.0
      %v2650 = vadd.f32 %v2173, 1.0
      %v2651 = vadd.f32 %v2175, 1.0
      %v2652 = vadd.f32 %v2177, 1.0
      %v2653 = vadd.f32 %v2179, 1.0
      %v2654 = vadd.f32 %v2181, 1.0
      %v2655 = vadd.f32 %v2183, 1.0
      %v2656 = vadd.f32 %v2185, 1.0
      %v2657 = vadd.f32 %v2187, 1.0
      %v2658 = vadd.f32 %v2189, 1.0
      %v2659 = vadd.f32 %v2191, 1.0
      %v2660 = vadd.f32 %v2193, 1.0
      %v2661 = vadd.f32 %v2195, 1.0
      %v2662 = vadd.f32 %v2197, 1.0
      %v2663 = vadd.f32 %v2199, 1.0
      %v2664 = vadd.f32 %v2201, 1.0
      %v2665 = vadd.f32 %v2203, 1.0
      %v2666 = vadd.f32 %v2205, 1.0
      %v2667 = vadd.f32 %v2207, 1.0
      %v2668 = vadd.f32 %v2209, 1.0
      %v2669 = vadd.f32 %v2211, 1.0
      %v2670 = vadd.f32 %v2213, 1.0
      %v2671 = vadd.f32 %v2215, 1.0
      %v2672 = vadd.f32 %v2217, 1.0
      %v2673 = vadd.f32 %v2219, 1.0
      %v2674 = vadd.f32 %v2221, 1.0
      %v2675 = vadd.f32 %v2223, 1.0
      %v2676 = vadd.f32 %v2225, 1.0
      %v2677 = vadd.f32 %v2227, 1.0
      %v2678 = vadd.f32 %v2229, 1.0
      %v2679 = vadd.f32 %v2231, 1.0
      %v2680 = vadd.f32 %v2233, 1.0
      %v2681 = vadd.f32 %v2235, 1.0
      %v2682 = vadd.f32 %v2237, 1.0
      %v2683 = vadd.f32 %v2239, 1.0
      %v2684 = vadd.f32 %v2241, 1.0
      %v2685 = vadd.f32 %v2243, 1.0
      %v2686 = vadd.f32 %v2245, 1.0
      %v2687 = vadd.f32 %v2247, 1.0
      %v2688 = vadd.f32 %v2249, 1.0
      %v2689 = vadd.f32 %v2251, 1.0
      %v2690 = vadd.f32 %v2253, 1.0
      %v2691 = vadd.f32 %v2255, 1.0
      %v2692 = vadd.f32 %v2257, 1.0
      %v2693 = vadd.f32 %v2259, 1.0
      %v2694 = vadd.f32 %v2261, 1.0
      %v2695 = vadd.f32 %v2263, 1.0
      %v2696 = vadd.f32 %v2265, 1.0
      %v2697 = vadd.f32 %v2267, 1.0
      %v2698 = vadd.f32 %v2269, 1.0
      %v2699 = vadd.f32 %v2271, 1.0
      %v2700 = vadd.f32 %v2273, 1.0
      %v2701 = vadd.f32 %v2275, 1.0
      %v2702 = vadd.f32 %v2277, 1.0
      %v2703 = vadd.f32 %v2279, 1.0
      %v2704 = vadd.f32 %v2281, 1.0
      %v2705 = vadd.f32 %v2283, 1.0
      %v2706 = vadd.f32 %v2285, 1.0
      %v2707 = vadd.f32 %v2287, 1.0
      %v2708 = vadd.f32 %v2289, 1.0
      %v2709 = vadd.f32 %v2291, 1.0
      %v2710 = vadd.f32 %v2293, 1.0
      %v2711 = vadd.f32 %v2295, 1.0
      %v2712 = vadd.f32 %v2297, 1.0
      %v2713 = vadd.f32 %v2299, 1.0
      %v2714 = vadd.f32 %v2301, 1.0
      %v2715 = vadd.f32 %v2303, 1.0
      %v2716 = vadd.f32 %v2305, 1.0
      %v2717 = vadd.f32 %v2307, 1.0
      %v2718 = vadd.f32 %v2309, 1.0
      %v2719 = vadd.f32 %v2311, 1.0
      %v2720 = vadd.f32 %v2313, 1.0
      %v2721 = vadd.f32 %v2315, 1.0
      %v2722 = vadd.f32 %v2317, 1.0
      %v2723 = vadd.f32 %v2319, 1.0
      %v2724 = vadd.f32 %v2321, 1.0
      %v2725 = vadd.f32 %v2323, 1.0
      %v2726 = vadd.f32 %v2325, 1.0
      %v2727 = vadd.f32 %v2327, 1.0
      %v2728 = vadd.f32 %v2329, 1.0
      %v2729 = vadd.f32 %v2331, 1.0
      %v2730 = vadd.f32 %v2333, 1.0
      %v2731 = vadd.f32 %v2335, 1.0
      %v2732 = vadd.f32 %v2337, 1.0
      %v2733 = vadd.f32 %v2339, 1.0
      %v2734 = vadd.f32 %v2341, 1.0
      %v2735 = vadd.f32 %v2343, 1.0
      %v2736 = vadd.f32 %v2345, 1.0
      %v2737 = vadd.f32 %v2347, 1.0
      %v2738 = vadd.f32 %v2349, 1.0
      %v2739 = vadd.f32 %v2351, 1.0
      %v2740 = vadd.f32 %v2353, 1.0
      %v2741 = vadd.f32 %v2355, 1.0
      %v2742 = vadd.f32 %v2357, 1.0
      %v2743 = vadd.f32 %v2359, 1.0
      %v2744 = vadd.f32 %v2361, 1.0
      %v2745 = vadd.f32 %v2363, 1.0
      %v2746 = vadd.f32 %v2365, 1.0
      %v2747 = vadd.f32 %v2367, 1.0
      %v2748 = vadd.f32 %v2369, 1.0
      %v2749 = vadd.f32 %v2371, 1.0
      %v2750 = vadd.f32 %v2373, 1.0
      %v2751 = vadd.f32 %v2375, 1.0
      %v2752 = vadd.f32 %v2377, 1.0
      %v2753 = vadd.f32 %v2379, 1.0
      %v2754 = vadd.f32 %v2381, 1.0
      %v2755 = vadd.f32 %v2383, 1.0
      %v2756 = vadd.f32 %v2385, 1.0
      %v2757 = vadd.f32 %v2387, 1.0
      %v2758 = vadd.f32 %v2389, 1.0
      %v2759 = vadd.f32 %v2391, 1.0
      %v2760 = vadd.f32 %v2393, 1.0
      %v2761 = vadd.f32 %v2395, 1.0
      %v2762 = vadd.f32 %v2397, 1.0
      %v2763 = vadd.f32 %v2399, 1.0
      %v2764 = vadd.f32 %v2401, 1.0
      %v2765 = vadd.f32 %v2403, 1.0
      %v2766 = vadd.f32 %v2405, 1.0
      %v2767 = vadd.f32 %v2407, 1.0
      %v2768 = vadd.f32 %v2409, 1.0
      %v2769 = vadd.f32 %v2411, 1.0
      %v2770 = vadd.f32 %v2413, 1.0
      %v2771 = vadd.f32 %v2415, 1.0
      %v2772 = vadd.f32 %v2417, 1.0
      %v2773 = vadd.f32 %v2419, 1.0
      %v2774 = vadd.f32 %v2421, 1.0
      %v2775 = vadd.f32 %v2423, 1.0
      %v2776 = vadd.f32 %v2425, 1.0
      %v2777 = vadd.f32 %v2427, 1.0
      %v2778 = vadd.f32 %v2429, 1.0
      %v2779 = vadd.f32 %v2431, 1.0
      %v2780 = vadd.f32 %v2433, 1.0
      %v2781 = vadd.f32 %v2435, 1.0
      %v2782 = vadd.f32 %v2437, 1.0
      %v2783 = vadd.f32 %v2439, 1.0
      %v2784 = vadd.f32 %v2441, 1.0
      %v2785 = vadd.f32 %v2443, 1.0
      %v2786 = vadd.f32 %v2445, 1.0
      %v2787 = vadd.f32 %v2447, 1.0
      %v2788 = vadd.f32 %v2449, 1.0
      %v2789 = vadd.f32 %v2451, 1.0
      %v2790 = vadd.f32 %v2453, 1.0
      %v2791 = vadd.f32 %v2455, 1.0
      %v2792 = vadd.f32 %v2457, 1.0
      %v2793 = vadd.f32 %v2459, 1.0
      %v2794 = vadd.f32 %v2461, 1.0
      %v2795 = vadd.f32 %v2463, 1.0
      %v2796 = vadd.f32 %v2465, 1.0
      %v2797 = vadd.f32 %v2467, 1.0
      %v2798 = vadd.f32 %v2469, 1.0
      %v2799 = vadd.f32 %v2471, 1.0
      %v2800 = vadd.f32 %v2473, 1.0
      %v2801 = vadd.f32 %v2475, 1.0
      %v2802 = vadd.f32 %v2477, 1.0
      %v2803 = vadd.f32 %v2479, 1.0
      %v2804 = vadd.f32 %v2481, 1.0
      %v2805 = vadd.f32 %v2483, 1.0
      %v2806 = vadd.f32 %v2485, 1.0
      %v2807 = vadd.f32 %v2487, 1.0
      %v2808 = vadd.f32 %v2489, 1.0
      %v2809 = vadd.f32 %v2491, 1.0
      %v2810 = vadd.f32 %v2493, 1.0
      %v2811 = vadd.f32 %v2495, 1.0
      %v2812 = vadd.f32 %v2497, 1.0
      %v2813 = vadd.f32 %v2499, 1.0
      %v2814 = vadd.f32 %v2501, 1.0
      %v2815 = vadd.f32 %v2503, 1.0
      %v2816 = vadd.f32 %v2505, 1.0
      %v2817 = vadd.f32 %v2507, 1.0
      %v2818 = vadd.f32 %v2509, 1.0
      %v2819 = vadd.f32 %v2511, 1.0
      %v2820 = vadd.f32 %v2513, 1.0
      %v2821 = vadd.f32 %v2515, 1.0
      %v2822 = vadd.f32 %v2517, 1.0
      %v2823 = vadd.f32 %v2519, 1.0
      %v2824 = vadd.f32 %v2521, 1.0
      %v2825 = vadd.f32 %v2523, 1.0
      %v2826 = vadd.f32 %v2525, 1.0
      %v2827 = vadd.f32 %v2527, 1.0
      %v2828 = vadd.f32 %v2529, 1.0
      %v2829 = vadd.f32 %v2531, 1.0
      %v2830 = vadd.f32 %v2533, 1.0
      %v2831 = vadd.f32 %v2535, 1.0
      %v2832 = vadd.f32 %v2537, 1.0
      %v2833 = vadd.f32 %v2539, 1.0
      %v2834 = vadd.f32 %v2541, 1.0
      %v2835 = vadd.f32 %v2543, 1.0
      %v2836 = vadd.f32 %v2545, 1.0
      %v2837 = vadd.f32 %v2547, 1.0
      %v2838 = vadd.f32 %v2549, 1.0
      %v2839 = vadd.f32 %v2551, 1.0
      %v2840 = vrcp.pop %v2552
      %v2841 = vmul.f32 1.0, %v2840
      %v2842 = vrcp.pop %v2553
      %v2843 = vmul.f32 1.0, %v2842
      %v2844 = vrcp.pop %v2554
      %v2845 = vmul.f32 1.0, %v2844
      %v2846 = vrcp.pop %v2555
      %v2847 = vmul.f32 1.0, %v2846
      %v2848 = vrcp.pop %v2556
      %v2849 = vmul.f32 1.0, %v2848
      %v2850 = vrcp.pop %v2557
      %v2851 = vmul.f32 1.0, %v2850
      %v2852 = vrcp.pop %v2558
      %v2853 = vmul.f32 1.0, %v2852
      %v2854 = vrcp.pop %v2559
      %v2855 = vmul.f32 1.0, %v2854
      %v2856 = vrcp.pop %v2560
      %v2857 = vmul.f32 1.0, %v2856
      %v2858 = vrcp.pop %v2561
      %v2859 = vmul.f32 1.0, %v2858
      %v2860 = vrcp.pop %v2562
      %v2861 = vmul.f32 1.0, %v2860
      %v2862 = vrcp.pop %v2563
      %v2863 = vmul.f32 1.0, %v2862
      %v2864 = vrcp.pop %v2564
      %v2865 = vmul.f32 1.0, %v2864
      %v2866 = vrcp.pop %v2565
      %v2867 = vmul.f32 1.0, %v2866
      %v2868 = vrcp.pop %v2566
      %v2869 = vmul.f32 1.0, %v2868
      %v2870 = vrcp.pop %v2567
      %v2871 = vmul.f32 1.0, %v2870
      %v2872 = vrcp.pop %v2568
      %v2873 = vmul.f32 1.0, %v2872
      %v2874 = vrcp.pop %v2569
      %v2875 = vmul.f32 1.0, %v2874
      %v2876 = vrcp.pop %v2570
      %v2877 = vmul.f32 1.0, %v2876
      %v2878 = vrcp.pop %v2571
      %v2879 = vmul.f32 1.0, %v2878
      %v2880 = vrcp.pop %v2572
      %v2881 = vmul.f32 1.0, %v2880
      %v2882 = vrcp.pop %v2573
      %v2883 = vmul.f32 1.0, %v2882
      %v2884 = vrcp.pop %v2574
      %v2885 = vmul.f32 1.0, %v2884
      %v2886 = vrcp.pop %v2575
      %v2887 = vmul.f32 1.0, %v2886
      %v2888 = vrcp.pop %v2576
      %v2889 = vmul.f32 1.0, %v2888
      %v2890 = vrcp.pop %v2577
      %v2891 = vmul.f32 1.0, %v2890
      %v2892 = vrcp.pop %v2578
      %v2893 = vmul.f32 1.0, %v2892
      %v2894 = vrcp.pop %v2579
      %v2895 = vmul.f32 1.0, %v2894
      %v2896 = vrcp.pop %v2580
      %v2897 = vmul.f32 1.0, %v2896
      %v2898 = vrcp.pop %v2581
      %v2899 = vmul.f32 1.0, %v2898
      %v2900 = vrcp.pop %v2582
      %v2901 = vmul.f32 1.0, %v2900
      %v2902 = vrcp.pop %v2583
      %v2903 = vmul.f32 1.0, %v2902
      %v2904 = vrcp.pop %v2584
      %v2905 = vmul.f32 1.0, %v2904
      %v2906 = vrcp.pop %v2585
      %v2907 = vmul.f32 1.0, %v2906
      %v2908 = vrcp.pop %v2586
      %v2909 = vmul.f32 1.0, %v2908
      %v2910 = vrcp.pop %v2587
      %v2911 = vmul.f32 1.0, %v2910
      %v2912 = vrcp.pop %v2588
      %v2913 = vmul.f32 1.0, %v2912
      %v2914 = vrcp.pop %v2589
      %v2915 = vmul.f32 1.0, %v2914
      %v2916 = vrcp.pop %v2590
      %v2917 = vmul.f32 1.0, %v2916
      %v2918 = vrcp.pop %v2591
      %v2919 = vmul.f32 1.0, %v2918
      %v2920 = vrcp.pop %v2592
      %v2921 = vmul.f32 1.0, %v2920
      %v2922 = vrcp.pop %v2593
      %v2923 = vmul.f32 1.0, %v2922
      %v2924 = vrcp.pop %v2594
      %v2925 = vmul.f32 1.0, %v2924
      %v2926 = vrcp.pop %v2595
      %v2927 = vmul.f32 1.0, %v2926
      %v2928 = vrcp.pop %v2596
      %v2929 = vmul.f32 1.0, %v2928
      %v2930 = vrcp.pop %v2597
      %v2931 = vmul.f32 1.0, %v2930
      %v2932 = vrcp.pop %v2598
      %v2933 = vmul.f32 1.0, %v2932
      %v2934 = vrcp.pop %v2599
      %v2935 = vmul.f32 1.0, %v2934
      %v2936 = vrcp.pop %v2600
      %v2937 = vmul.f32 1.0, %v2936
      %v2938 = vrcp.pop %v2601
      %v2939 = vmul.f32 1.0, %v2938
      %v2940 = vrcp.pop %v2602
      %v2941 = vmul.f32 1.0, %v2940
      %v2942 = vrcp.pop %v2603
      %v2943 = vmul.f32 1.0, %v2942
      %v2944 = vrcp.pop %v2604
      %v2945 = vmul.f32 1.0, %v2944
      %v2946 = vrcp.pop %v2605
      %v2947 = vmul.f32 1.0, %v2946
      %v2948 = vrcp.pop %v2606
      %v2949 = vmul.f32 1.0, %v2948
      %v2950 = vrcp.pop %v2607
      %v2951 = vmul.f32 1.0, %v2950
      %v2952 = vrcp.pop %v2608
      %v2953 = vmul.f32 1.0, %v2952
      %v2954 = vrcp.pop %v2609
      %v2955 = vmul.f32 1.0, %v2954
      %v2956 = vrcp.pop %v2610
      %v2957 = vmul.f32 1.0, %v2956
      %v2958 = vrcp.pop %v2611
      %v2959 = vmul.f32 1.0, %v2958
      %v2960 = vrcp.pop %v2612
      %v2961 = vmul.f32 1.0, %v2960
      %v2962 = vrcp.pop %v2613
      %v2963 = vmul.f32 1.0, %v2962
      %v2964 = vrcp.pop %v2614
      %v2965 = vmul.f32 1.0, %v2964
      %v2966 = vrcp.pop %v2615
      %v2967 = vmul.f32 1.0, %v2966
      %v2968 = vrcp.pop %v2616
      %v2969 = vmul.f32 1.0, %v2968
      %v2970 = vrcp.pop %v2617
      %v2971 = vmul.f32 1.0, %v2970
      %v2972 = vrcp.pop %v2618
      %v2973 = vmul.f32 1.0, %v2972
      %v2974 = vrcp.pop %v2619
      %v2975 = vmul.f32 1.0, %v2974
      %v2976 = vrcp.pop %v2620
      %v2977 = vmul.f32 1.0, %v2976
      %v2978 = vrcp.pop %v2621
      %v2979 = vmul.f32 1.0, %v2978
      %v2980 = vrcp.pop %v2622
      %v2981 = vmul.f32 1.0, %v2980
      %v2982 = vrcp.pop %v2623
      %v2983 = vmul.f32 1.0, %v2982
      %v2984 = vrcp.pop %v2624
      %v2985 = vmul.f32 1.0, %v2984
      %v2986 = vrcp.pop %v2625
      %v2987 = vmul.f32 1.0, %v2986
      %v2988 = vrcp.pop %v2626
      %v2989 = vmul.f32 1.0, %v2988
      %v2990 = vrcp.pop %v2627
      %v2991 = vmul.f32 1.0, %v2990
      %v2992 = vrcp.pop %v2628
      %v2993 = vmul.f32 1.0, %v2992
      %v2994 = vrcp.pop %v2629
      %v2995 = vmul.f32 1.0, %v2994
      %v2996 = vrcp.pop %v2630
      %v2997 = vmul.f32 1.0, %v2996
      %v2998 = vrcp.pop %v2631
      %v2999 = vmul.f32 1.0, %v2998
      %v3000 = vrcp.pop %v2632
      %v3001 = vmul.f32 1.0, %v3000
      %v3002 = vrcp.pop %v2633
      %v3003 = vmul.f32 1.0, %v3002
      %v3004 = vrcp.pop %v2634
      %v3005 = vmul.f32 1.0, %v3004
      %v3006 = vrcp.pop %v2635
      %v3007 = vmul.f32 1.0, %v3006
      %v3008 = vrcp.pop %v2636
      %v3009 = vmul.f32 1.0, %v3008
      %v3010 = vrcp.pop %v2637
      %v3011 = vmul.f32 1.0, %v3010
      %v3012 = vrcp.pop %v2638
      %v3013 = vmul.f32 1.0, %v3012
      %v3014 = vrcp.pop %v2639
      %v3015 = vmul.f32 1.0, %v3014
      %v3016 = vrcp.pop %v2640
      %v3017 = vmul.f32 1.0, %v3016
      %v3018 = vrcp.pop %v2641
      %v3019 = vmul.f32 1.0, %v3018
      %v3020 = vrcp.pop %v2642
      %v3021 = vmul.f32 1.0, %v3020
      %v3022 = vrcp.pop %v2643
      %v3023 = vmul.f32 1.0, %v3022
      %v3024 = vrcp.pop %v2644
      %v3025 = vmul.f32 1.0, %v3024
      %v3026 = vrcp.pop %v2645
      %v3027 = vmul.f32 1.0, %v3026
      %v3028 = vrcp.pop %v2646
      %v3029 = vmul.f32 1.0, %v3028
      %v3030 = vrcp.pop %v2647
      %v3031 = vmul.f32 1.0, %v3030
      %v3032 = vrcp.pop %v2648
      %v3033 = vmul.f32 1.0, %v3032
      %v3034 = vrcp.pop %v2649
      %v3035 = vmul.f32 1.0, %v3034
      %v3036 = vrcp.pop %v2650
      %v3037 = vmul.f32 1.0, %v3036
      %v3038 = vrcp.pop %v2651
      %v3039 = vmul.f32 1.0, %v3038
      %v3040 = vrcp.pop %v2652
      %v3041 = vmul.f32 1.0, %v3040
      %v3042 = vrcp.pop %v2653
      %v3043 = vmul.f32 1.0, %v3042
      %v3044 = vrcp.pop %v2654
      %v3045 = vmul.f32 1.0, %v3044
      %v3046 = vrcp.pop %v2655
      %v3047 = vmul.f32 1.0, %v3046
      %v3048 = vrcp.pop %v2656
      %v3049 = vmul.f32 1.0, %v3048
      %v3050 = vrcp.pop %v2657
      %v3051 = vmul.f32 1.0, %v3050
      %v3052 = vrcp.pop %v2658
      %v3053 = vmul.f32 1.0, %v3052
      %v3054 = vrcp.pop %v2659
      %v3055 = vmul.f32 1.0, %v3054
      %v3056 = vrcp.pop %v2660
      %v3057 = vmul.f32 1.0, %v3056
      %v3058 = vrcp.pop %v2661
      %v3059 = vmul.f32 1.0, %v3058
      %v3060 = vrcp.pop %v2662
      %v3061 = vmul.f32 1.0, %v3060
      %v3062 = vrcp.pop %v2663
      %v3063 = vmul.f32 1.0, %v3062
      %v3064 = vrcp.pop %v2664
      %v3065 = vmul.f32 1.0, %v3064
      %v3066 = vrcp.pop %v2665
      %v3067 = vmul.f32 1.0, %v3066
      %v3068 = vrcp.pop %v2666
      %v3069 = vmul.f32 1.0, %v3068
      %v3070 = vrcp.pop %v2667
      %v3071 = vmul.f32 1.0, %v3070
      %v3072 = vrcp.pop %v2668
      %v3073 = vmul.f32 1.0, %v3072
      %v3074 = vrcp.pop %v2669
      %v3075 = vmul.f32 1.0, %v3074
      %v3076 = vrcp.pop %v2670
      %v3077 = vmul.f32 1.0, %v3076
      %v3078 = vrcp.pop %v2671
      %v3079 = vmul.f32 1.0, %v3078
      %v3080 = vrcp.pop %v2672
      %v3081 = vmul.f32 1.0, %v3080
      %v3082 = vrcp.pop %v2673
      %v3083 = vmul.f32 1.0, %v3082
      %v3084 = vrcp.pop %v2674
      %v3085 = vmul.f32 1.0, %v3084
      %v3086 = vrcp.pop %v2675
      %v3087 = vmul.f32 1.0, %v3086
      %v3088 = vrcp.pop %v2676
      %v3089 = vmul.f32 1.0, %v3088
      %v3090 = vrcp.pop %v2677
      %v3091 = vmul.f32 1.0, %v3090
      %v3092 = vrcp.pop %v2678
      %v3093 = vmul.f32 1.0, %v3092
      %v3094 = vrcp.pop %v2679
      %v3095 = vmul.f32 1.0, %v3094
      %v3096 = vrcp.pop %v2680
      %v3097 = vmul.f32 1.0, %v3096
      %v3098 = vrcp.pop %v2681
      %v3099 = vmul.f32 1.0, %v3098
      %v3100 = vrcp.pop %v2682
      %v3101 = vmul.f32 1.0, %v3100
      %v3102 = vrcp.pop %v2683
      %v3103 = vmul.f32 1.0, %v3102
      %v3104 = vrcp.pop %v2684
      %v3105 = vmul.f32 1.0, %v3104
      %v3106 = vrcp.pop %v2685
      %v3107 = vmul.f32 1.0, %v3106
      %v3108 = vrcp.pop %v2686
      %v3109 = vmul.f32 1.0, %v3108
      %v3110 = vrcp.pop %v2687
      %v3111 = vmul.f32 1.0, %v3110
      %v3112 = vrcp.pop %v2688
      %v3113 = vmul.f32 1.0, %v3112
      %v3114 = vrcp.pop %v2689
      %v3115 = vmul.f32 1.0, %v3114
      %v3116 = vrcp.pop %v2690
      %v3117 = vmul.f32 1.0, %v3116
      %v3118 = vrcp.pop %v2691
      %v3119 = vmul.f32 1.0, %v3118
      %v3120 = vrcp.pop %v2692
      %v3121 = vmul.f32 1.0, %v3120
      %v3122 = vrcp.pop %v2693
      %v3123 = vmul.f32 1.0, %v3122
      %v3124 = vrcp.pop %v2694
      %v3125 = vmul.f32 1.0, %v3124
      %v3126 = vrcp.pop %v2695
      %v3127 = vmul.f32 1.0, %v3126
      %v3128 = vrcp.pop %v2696
      %v3129 = vmul.f32 1.0, %v3128
      %v3130 = vrcp.pop %v2697
      %v3131 = vmul.f32 1.0, %v3130
      %v3132 = vrcp.pop %v2698
      %v3133 = vmul.f32 1.0, %v3132
      %v3134 = vrcp.pop %v2699
      %v3135 = vmul.f32 1.0, %v3134
      %v3136 = vrcp.pop %v2700
      %v3137 = vmul.f32 1.0, %v3136
      %v3138 = vrcp.pop %v2701
      %v3139 = vmul.f32 1.0, %v3138
      %v3140 = vrcp.pop %v2702
      %v3141 = vmul.f32 1.0, %v3140
      %v3142 = vrcp.pop %v2703
      %v3143 = vmul.f32 1.0, %v3142
      %v3144 = vrcp.pop %v2704
      %v3145 = vmul.f32 1.0, %v3144
      %v3146 = vrcp.pop %v2705
      %v3147 = vmul.f32 1.0, %v3146
      %v3148 = vrcp.pop %v2706
      %v3149 = vmul.f32 1.0, %v3148
      %v3150 = vrcp.pop %v2707
      %v3151 = vmul.f32 1.0, %v3150
      %v3152 = vrcp.pop %v2708
      %v3153 = vmul.f32 1.0, %v3152
      %v3154 = vrcp.pop %v2709
      %v3155 = vmul.f32 1.0, %v3154
      %v3156 = vrcp.pop %v2710
      %v3157 = vmul.f32 1.0, %v3156
      %v3158 = vrcp.pop %v2711
      %v3159 = vmul.f32 1.0, %v3158
      %v3160 = vrcp.pop %v2712
      %v3161 = vmul.f32 1.0, %v3160
      %v3162 = vrcp.pop %v2713
      %v3163 = vmul.f32 1.0, %v3162
      %v3164 = vrcp.pop %v2714
      %v3165 = vmul.f32 1.0, %v3164
      %v3166 = vrcp.pop %v2715
      %v3167 = vmul.f32 1.0, %v3166
      %v3168 = vrcp.pop %v2716
      %v3169 = vmul.f32 1.0, %v3168
      %v3170 = vrcp.pop %v2717
      %v3171 = vmul.f32 1.0, %v3170
      %v3172 = vrcp.pop %v2718
      %v3173 = vmul.f32 1.0, %v3172
      %v3174 = vrcp.pop %v2719
      %v3175 = vmul.f32 1.0, %v3174
      %v3176 = vrcp.pop %v2720
      %v3177 = vmul.f32 1.0, %v3176
      %v3178 = vrcp.pop %v2721
      %v3179 = vmul.f32 1.0, %v3178
      %v3180 = vrcp.pop %v2722
      %v3181 = vmul.f32 1.0, %v3180
      %v3182 = vrcp.pop %v2723
      %v3183 = vmul.f32 1.0, %v3182
      %v3184 = vrcp.pop %v2724
      %v3185 = vmul.f32 1.0, %v3184
      %v3186 = vrcp.pop %v2725
      %v3187 = vmul.f32 1.0, %v3186
      %v3188 = vrcp.pop %v2726
      %v3189 = vmul.f32 1.0, %v3188
      %v3190 = vrcp.pop %v2727
      %v3191 = vmul.f32 1.0, %v3190
      %v3192 = vrcp.pop %v2728
      %v3193 = vmul.f32 1.0, %v3192
      %v3194 = vrcp.pop %v2729
      %v3195 = vmul.f32 1.0, %v3194
      %v3196 = vrcp.pop %v2730
      %v3197 = vmul.f32 1.0, %v3196
      %v3198 = vrcp.pop %v2731
      %v3199 = vmul.f32 1.0, %v3198
      %v3200 = vrcp.pop %v2732
      %v3201 = vmul.f32 1.0, %v3200
      %v3202 = vrcp.pop %v2733
      %v3203 = vmul.f32 1.0, %v3202
      %v3204 = vrcp.pop %v2734
      %v3205 = vmul.f32 1.0, %v3204
      %v3206 = vrcp.pop %v2735
      %v3207 = vmul.f32 1.0, %v3206
      %v3208 = vrcp.pop %v2736
      %v3209 = vmul.f32 1.0, %v3208
      %v3210 = vrcp.pop %v2737
      %v3211 = vmul.f32 1.0, %v3210
      %v3212 = vrcp.pop %v2738
      %v3213 = vmul.f32 1.0, %v3212
      %v3214 = vrcp.pop %v2739
      %v3215 = vmul.f32 1.0, %v3214
      %v3216 = vrcp.pop %v2740
      %v3217 = vmul.f32 1.0, %v3216
      %v3218 = vrcp.pop %v2741
      %v3219 = vmul.f32 1.0, %v3218
      %v3220 = vrcp.pop %v2742
      %v3221 = vmul.f32 1.0, %v3220
      %v3222 = vrcp.pop %v2743
      %v3223 = vmul.f32 1.0, %v3222
      %v3224 = vrcp.pop %v2744
      %v3225 = vmul.f32 1.0, %v3224
      %v3226 = vrcp.pop %v2745
      %v3227 = vmul.f32 1.0, %v3226
      %v3228 = vrcp.pop %v2746
      %v3229 = vmul.f32 1.0, %v3228
      %v3230 = vrcp.pop %v2747
      %v3231 = vmul.f32 1.0, %v3230
      %v3232 = vrcp.pop %v2748
      %v3233 = vmul.f32 1.0, %v3232
      %v3234 = vrcp.pop %v2749
      %v3235 = vmul.f32 1.0, %v3234
      %v3236 = vrcp.pop %v2750
      %v3237 = vmul.f32 1.0, %v3236
      %v3238 = vrcp.pop %v2751
      %v3239 = vmul.f32 1.0, %v3238
      %v3240 = vrcp.pop %v2752
      %v3241 = vmul.f32 1.0, %v3240
      %v3242 = vrcp.pop %v2753
      %v3243 = vmul.f32 1.0, %v3242
      %v3244 = vrcp.pop %v2754
      %v3245 = vmul.f32 1.0, %v3244
      %v3246 = vrcp.pop %v2755
      %v3247 = vmul.f32 1.0, %v3246
      %v3248 = vrcp.pop %v2756
      %v3249 = vmul.f32 1.0, %v3248
      %v3250 = vrcp.pop %v2757
      %v3251 = vmul.f32 1.0, %v3250
      %v3252 = vrcp.pop %v2758
      %v3253 = vmul.f32 1.0, %v3252
      %v3254 = vrcp.pop %v2759
      %v3255 = vmul.f32 1.0, %v3254
      %v3256 = vrcp.pop %v2760
      %v3257 = vmul.f32 1.0, %v3256
      %v3258 = vrcp.pop %v2761
      %v3259 = vmul.f32 1.0, %v3258
      %v3260 = vrcp.pop %v2762
      %v3261 = vmul.f32 1.0, %v3260
      %v3262 = vrcp.pop %v2763
      %v3263 = vmul.f32 1.0, %v3262
      %v3264 = vrcp.pop %v2764
      %v3265 = vmul.f32 1.0, %v3264
      %v3266 = vrcp.pop %v2765
      %v3267 = vmul.f32 1.0, %v3266
      %v3268 = vrcp.pop %v2766
      %v3269 = vmul.f32 1.0, %v3268
      %v3270 = vrcp.pop %v2767
      %v3271 = vmul.f32 1.0, %v3270
      %v3272 = vrcp.pop %v2768
      %v3273 = vmul.f32 1.0, %v3272
      %v3274 = vrcp.pop %v2769
      %v3275 = vmul.f32 1.0, %v3274
      %v3276 = vrcp.pop %v2770
      %v3277 = vmul.f32 1.0, %v3276
      %v3278 = vrcp.pop %v2771
      %v3279 = vmul.f32 1.0, %v3278
      %v3280 = vrcp.pop %v2772
      %v3281 = vmul.f32 1.0, %v3280
      %v3282 = vrcp.pop %v2773
      %v3283 = vmul.f32 1.0, %v3282
      %v3284 = vrcp.pop %v2774
      %v3285 = vmul.f32 1.0, %v3284
      %v3286 = vrcp.pop %v2775
      %v3287 = vmul.f32 1.0, %v3286
      %v3288 = vrcp.pop %v2776
      %v3289 = vmul.f32 1.0, %v3288
      %v3290 = vrcp.pop %v2777
      %v3291 = vmul.f32 1.0, %v3290
      %v3292 = vrcp.pop %v2778
      %v3293 = vmul.f32 1.0, %v3292
      %v3294 = vrcp.pop %v2779
      %v3295 = vmul.f32 1.0, %v3294
      %v3296 = vrcp.pop %v2780
      %v3297 = vmul.f32 1.0, %v3296
      %v3298 = vrcp.pop %v2781
      %v3299 = vmul.f32 1.0, %v3298
      %v3300 = vrcp.pop %v2782
      %v3301 = vmul.f32 1.0, %v3300
      %v3302 = vrcp.pop %v2783
      %v3303 = vmul.f32 1.0, %v3302
      %v3304 = vrcp.pop %v2784
      %v3305 = vmul.f32 1.0, %v3304
      %v3306 = vrcp.pop %v2785
      %v3307 = vmul.f32 1.0, %v3306
      %v3308 = vrcp.pop %v2786
      %v3309 = vmul.f32 1.0, %v3308
      %v3310 = vrcp.pop %v2787
      %v3311 = vmul.f32 1.0, %v3310
      %v3312 = vrcp.pop %v2788
      %v3313 = vmul.f32 1.0, %v3312
      %v3314 = vrcp.pop %v2789
      %v3315 = vmul.f32 1.0, %v3314
      %v3316 = vrcp.pop %v2790
      %v3317 = vmul.f32 1.0, %v3316
      %v3318 = vrcp.pop %v2791
      %v3319 = vmul.f32 1.0, %v3318
      %v3320 = vrcp.pop %v2792
      %v3321 = vmul.f32 1.0, %v3320
      %v3322 = vrcp.pop %v2793
      %v3323 = vmul.f32 1.0, %v3322
      %v3324 = vrcp.pop %v2794
      %v3325 = vmul.f32 1.0, %v3324
      %v3326 = vrcp.pop %v2795
      %v3327 = vmul.f32 1.0, %v3326
      %v3328 = vrcp.pop %v2796
      %v3329 = vmul.f32 1.0, %v3328
      %v3330 = vrcp.pop %v2797
      %v3331 = vmul.f32 1.0, %v3330
      %v3332 = vrcp.pop %v2798
      %v3333 = vmul.f32 1.0, %v3332
      %v3334 = vrcp.pop %v2799
      %v3335 = vmul.f32 1.0, %v3334
      %v3336 = vrcp.pop %v2800
      %v3337 = vmul.f32 1.0, %v3336
      %v3338 = vrcp.pop %v2801
      %v3339 = vmul.f32 1.0, %v3338
      %v3340 = vrcp.pop %v2802
      %v3341 = vmul.f32 1.0, %v3340
      %v3342 = vrcp.pop %v2803
      %v3343 = vmul.f32 1.0, %v3342
      %v3344 = vrcp.pop %v2804
      %v3345 = vmul.f32 1.0, %v3344
      %v3346 = vrcp.pop %v2805
      %v3347 = vmul.f32 1.0, %v3346
      %v3348 = vrcp.pop %v2806
      %v3349 = vmul.f32 1.0, %v3348
      %v3350 = vrcp.pop %v2807
      %v3351 = vmul.f32 1.0, %v3350
      %v3352 = vrcp.pop %v2808
      %v3353 = vmul.f32 1.0, %v3352
      %v3354 = vrcp.pop %v2809
      %v3355 = vmul.f32 1.0, %v3354
      %v3356 = vrcp.pop %v2810
      %v3357 = vmul.f32 1.0, %v3356
      %v3358 = vrcp.pop %v2811
      %v3359 = vmul.f32 1.0, %v3358
      %v3360 = vrcp.pop %v2812
      %v3361 = vmul.f32 1.0, %v3360
      %v3362 = vrcp.pop %v2813
      %v3363 = vmul.f32 1.0, %v3362
      %v3364 = vrcp.pop %v2814
      %v3365 = vmul.f32 1.0, %v3364
      %v3366 = vrcp.pop %v2815
      %v3367 = vmul.f32 1.0, %v3366
      %v3368 = vrcp.pop %v2816
      %v3369 = vmul.f32 1.0, %v3368
      %v3370 = vrcp.pop %v2817
      %v3371 = vmul.f32 1.0, %v3370
      %v3372 = vrcp.pop %v2818
      %v3373 = vmul.f32 1.0, %v3372
      %v3374 = vrcp.pop %v2819
      %v3375 = vmul.f32 1.0, %v3374
      %v3376 = vrcp.pop %v2820
      %v3377 = vmul.f32 1.0, %v3376
      %v3378 = vrcp.pop %v2821
      %v3379 = vmul.f32 1.0, %v3378
      %v3380 = vrcp.pop %v2822
      %v3381 = vmul.f32 1.0, %v3380
      %v3382 = vrcp.pop %v2823
      %v3383 = vmul.f32 1.0, %v3382
      %v3384 = vrcp.pop %v2824
      %v3385 = vmul.f32 1.0, %v3384
      %v3386 = vrcp.pop %v2825
      %v3387 = vmul.f32 1.0, %v3386
      %v3388 = vrcp.pop %v2826
      %v3389 = vmul.f32 1.0, %v3388
      %v3390 = vrcp.pop %v2827
      %v3391 = vmul.f32 1.0, %v3390
      %v3392 = vrcp.pop %v2828
      %v3393 = vmul.f32 1.0, %v3392
      %v3394 = vrcp.pop %v2829
      %v3395 = vmul.f32 1.0, %v3394
      %v3396 = vrcp.pop %v2830
      %v3397 = vmul.f32 1.0, %v3396
      %v3398 = vrcp.pop %v2831
      %v3399 = vmul.f32 1.0, %v3398
      %v3400 = vrcp.pop %v2832
      %v3401 = vmul.f32 1.0, %v3400
      %v3402 = vrcp.pop %v2833
      %v3403 = vmul.f32 1.0, %v3402
      %v3404 = vrcp.pop %v2834
      %v3405 = vmul.f32 1.0, %v3404
      %v3406 = vrcp.pop %v2835
      %v3407 = vmul.f32 1.0, %v3406
      %v3408 = vrcp.pop %v2836
      %v3409 = vmul.f32 1.0, %v3408
      %v3410 = vrcp.pop %v2837
      %v3411 = vmul.f32 1.0, %v3410
      %v3412 = vrcp.pop %v2838
      %v3413 = vmul.f32 1.0, %v3412
      %v3414 = vrcp.pop %v2839
      %v3415 = vmul.f32 1.0, %v3414
      %3416 = vst [vmem:[%s170] sm:$0xff] %v2841
      %3417 = vst [vmem:[%s170 + $0x8] sm:$0xff] %v2843
      %3418 = vst [vmem:[%s170 + $0x10] sm:$0xff] %v2845
      %3419 = vst [vmem:[%s170 + $0x18] sm:$0xff] %v2847
      %3420 = vst [vmem:[%s170 + $0x20] sm:$0xff] %v2849
      %3421 = vst [vmem:[%s170 + $0x28] sm:$0xff] %v2851
      %3422 = vst [vmem:[%s170 + $0x30] sm:$0xff] %v2853
      %3423 = vst [vmem:[%s170 + $0x38] sm:$0xff] %v2855
      %3424 = vst [vmem:[%s170 + $0x40] sm:$0xff] %v2857
      %3425 = vst [vmem:[%s170 + $0x48] sm:$0xff] %v2859
      %3426 = vst [vmem:[%s170 + $0x50] sm:$0xff] %v2861
      %3427 = vst [vmem:[%s170 + $0x58] sm:$0xff] %v2863
      %3428 = vst [vmem:[%s170 + $0x60] sm:$0xff] %v2865
      %3429 = vst [vmem:[%s170 + $0x68] sm:$0xff] %v2867
      %3430 = vst [vmem:[%s170 + $0x70] sm:$0xff] %v2869
      %3431 = vst [vmem:[%s170 + $0x78] sm:$0xff] %v2871
      %3432 = vst [vmem:[%s170 + $0x80] sm:$0xff] %v2873
      %3433 = vst [vmem:[%s170 + $0x88] sm:$0xff] %v2875
      %3434 = vst [vmem:[%s170 + $0x90] sm:$0xff] %v2877
      %3435 = vst [vmem:[%s170 + $0x98] sm:$0xff] %v2879
      %3436 = vst [vmem:[%s170 + $0xa0] sm:$0xff] %v2881
      %3437 = vst [vmem:[%s170 + $0xa8] sm:$0xff] %v2883
      %3438 = vst [vmem:[%s170 + $0xb0] sm:$0xff] %v2885
      %3439 = vst [vmem:[%s170 + $0xb8] sm:$0xff] %v2887
      %3440 = vst [vmem:[%s170 + $0xc0] sm:$0xff] %v2889
      %3441 = vst [vmem:[%s170 + $0xc8] sm:$0xff] %v2891
      %3442 = vst [vmem:[%s170 + $0xd0] sm:$0xff] %v2893
      %3443 = vst [vmem:[%s170 + $0xd8] sm:$0xff] %v2895
      %3444 = vst [vmem:[%s170 + $0xe0] sm:$0xff] %v2897
      %3445 = vst [vmem:[%s170 + $0xe8] sm:$0xff] %v2899
      %3446 = vst [vmem:[%s170 + $0xf0] sm:$0xff] %v2901
      %3447 = vst [vmem:[%s170 + $0xf8] sm:$0xff] %v2903
      %3448 = vst [vmem:[%s170 + $0x100] sm:$0xff] %v2905
      %3449 = vst [vmem:[%s170 + $0x108] sm:$0xff] %v2907
      %3450 = vst [vmem:[%s170 + $0x110] sm:$0xff] %v2909
      %3451 = vst [vmem:[%s170 + $0x118] sm:$0xff] %v2911
      %3452 = vst [vmem:[%s170 + $0x120] sm:$0xff] %v2913
      %3453 = vst [vmem:[%s170 + $0x128] sm:$0xff] %v2915
      %3454 = vst [vmem:[%s170 + $0x130] sm:$0xff] %v2917
      %3455 = vst [vmem:[%s170 + $0x138] sm:$0xff] %v2919
      %3456 = vst [vmem:[%s170 + $0x140] sm:$0xff] %v2921
      %3457 = vst [vmem:[%s170 + $0x148] sm:$0xff] %v2923
      %3458 = vst [vmem:[%s170 + $0x150] sm:$0xff] %v2925
      %3459 = vst [vmem:[%s170 + $0x158] sm:$0xff] %v2927
      %3460 = vst [vmem:[%s170 + $0x160] sm:$0xff] %v2929
      %3461 = vst [vmem:[%s170 + $0x168] sm:$0xff] %v2931
      %3462 = vst [vmem:[%s170 + $0x170] sm:$0xff] %v2933
      %3463 = vst [vmem:[%s170 + $0x178] sm:$0xff] %v2935
      %3464 = vst [vmem:[%s170 + $0x180] sm:$0xff] %v2937
      %3465 = vst [vmem:[%s170 + $0x188] sm:$0xff] %v2939
      %3466 = vst [vmem:[%s170 + $0x190] sm:$0xff] %v2941
      %3467 = vst [vmem:[%s170 + $0x198] sm:$0xff] %v2943
      %3468 = vst [vmem:[%s170 + $0x1a0] sm:$0xff] %v2945
      %3469 = vst [vmem:[%s170 + $0x1a8] sm:$0xff] %v2947
      %3470 = vst [vmem:[%s170 + $0x1b0] sm:$0xff] %v2949
      %3471 = vst [vmem:[%s170 + $0x1b8] sm:$0xff] %v2951
      %3472 = vst [vmem:[%s170 + $0x1c0] sm:$0xff] %v2953
      %3473 = vst [vmem:[%s170 + $0x1c8] sm:$0xff] %v2955
      %3474 = vst [vmem:[%s170 + $0x1d0] sm:$0xff] %v2957
      %3475 = vst [vmem:[%s170 + $0x1d8] sm:$0xff] %v2959
      %3476 = vst [vmem:[%s170 + $0x1e0] sm:$0xff] %v2961
      %3477 = vst [vmem:[%s170 + $0x1e8] sm:$0xff] %v2963
      %3478 = vst [vmem:[%s170 + $0x1f0] sm:$0xff] %v2965
      %3479 = vst [vmem:[%s170 + $0x1f8] sm:$0xff] %v2967
      %3480 = vst [vmem:[%s170 + $0x200] sm:$0xff] %v2969
      %3481 = vst [vmem:[%s170 + $0x208] sm:$0xff] %v2971
      %3482 = vst [vmem:[%s170 + $0x210] sm:$0xff] %v2973
      %3483 = vst [vmem:[%s170 + $0x218] sm:$0xff] %v2975
      %3484 = vst [vmem:[%s170 + $0x220] sm:$0xff] %v2977
      %3485 = vst [vmem:[%s170 + $0x228] sm:$0xff] %v2979
      %3486 = vst [vmem:[%s170 + $0x230] sm:$0xff] %v2981
      %3487 = vst [vmem:[%s170 + $0x238] sm:$0xff] %v2983
      %3488 = vst [vmem:[%s170 + $0x240] sm:$0xff] %v2985
      %3489 = vst [vmem:[%s170 + $0x248] sm:$0xff] %v2987
      %3490 = vst [vmem:[%s170 + $0x250] sm:$0xff] %v2989
      %3491 = vst [vmem:[%s170 + $0x258] sm:$0xff] %v2991
      %3492 = vst [vmem:[%s170 + $0x260] sm:$0xff] %v2993
      %3493 = vst [vmem:[%s170 + $0x268] sm:$0xff] %v2995
      %3494 = vst [vmem:[%s170 + $0x270] sm:$0xff] %v2997
      %3495 = vst [vmem:[%s170 + $0x278] sm:$0xff] %v2999
      %3496 = vst [vmem:[%s170 + $0x280] sm:$0xff] %v3001
      %3497 = vst [vmem:[%s170 + $0x288] sm:$0xff] %v3003
      %3498 = vst [vmem:[%s170 + $0x290] sm:$0xff] %v3005
      %3499 = vst [vmem:[%s170 + $0x298] sm:$0xff] %v3007
      %3500 = vst [vmem:[%s170 + $0x2a0] sm:$0xff] %v3009
      %3501 = vst [vmem:[%s170 + $0x2a8] sm:$0xff] %v3011
      %3502 = vst [vmem:[%s170 + $0x2b0] sm:$0xff] %v3013
      %3503 = vst [vmem:[%s170 + $0x2b8] sm:$0xff] %v3015
      %3504 = vst [vmem:[%s170 + $0x2c0] sm:$0xff] %v3017
      %3505 = vst [vmem:[%s170 + $0x2c8] sm:$0xff] %v3019
      %3506 = vst [vmem:[%s170 + $0x2d0] sm:$0xff] %v3021
      %3507 = vst [vmem:[%s170 + $0x2d8] sm:$0xff] %v3023
      %3508 = vst [vmem:[%s170 + $0x2e0] sm:$0xff] %v3025
      %3509 = vst [vmem:[%s170 + $0x2e8] sm:$0xff] %v3027
      %3510 = vst [vmem:[%s170 + $0x2f0] sm:$0xff] %v3029
      %3511 = vst [vmem:[%s170 + $0x2f8] sm:$0xff] %v3031
      %3512 = vst [vmem:[%s170 + $0x300] sm:$0xff] %v3033
      %3513 = vst [vmem:[%s170 + $0x308] sm:$0xff] %v3035
      %3514 = vst [vmem:[%s170 + $0x310] sm:$0xff] %v3037
      %3515 = vst [vmem:[%s170 + $0x318] sm:$0xff] %v3039
      %3516 = vst [vmem:[%s170 + $0x320] sm:$0xff] %v3041
      %3517 = vst [vmem:[%s170 + $0x328] sm:$0xff] %v3043
      %3518 = vst [vmem:[%s170 + $0x330] sm:$0xff] %v3045
      %3519 = vst [vmem:[%s170 + $0x338] sm:$0xff] %v3047
      %3520 = vst [vmem:[%s170 + $0x340] sm:$0xff] %v3049
      %3521 = vst [vmem:[%s170 + $0x348] sm:$0xff] %v3051
      %3522 = vst [vmem:[%s170 + $0x350] sm:$0xff] %v3053
      %3523 = vst [vmem:[%s170 + $0x358] sm:$0xff] %v3055
      %3524 = vst [vmem:[%s170 + $0x360] sm:$0xff] %v3057
      %3525 = vst [vmem:[%s170 + $0x368] sm:$0xff] %v3059
      %3526 = vst [vmem:[%s170 + $0x370] sm:$0xff] %v3061
      %3527 = vst [vmem:[%s170 + $0x378] sm:$0xff] %v3063
      %3528 = vst [vmem:[%s170 + $0x380] sm:$0xff] %v3065
      %3529 = vst [vmem:[%s170 + $0x388] sm:$0xff] %v3067
      %3530 = vst [vmem:[%s170 + $0x390] sm:$0xff] %v3069
      %3531 = vst [vmem:[%s170 + $0x398] sm:$0xff] %v3071
      %3532 = vst [vmem:[%s170 + $0x3a0] sm:$0xff] %v3073
      %3533 = vst [vmem:[%s170 + $0x3a8] sm:$0xff] %v3075
      %3534 = vst [vmem:[%s170 + $0x3b0] sm:$0xff] %v3077
      %3535 = vst [vmem:[%s170 + $0x3b8] sm:$0xff] %v3079
      %3536 = vst [vmem:[%s170 + $0x3c0] sm:$0xff] %v3081
      %3537 = vst [vmem:[%s170 + $0x3c8] sm:$0xff] %v3083
      %3538 = vst [vmem:[%s170 + $0x3d0] sm:$0xff] %v3085
      %3539 = vst [vmem:[%s170 + $0x3d8] sm:$0xff] %v3087
      %3540 = vst [vmem:[%s170 + $0x3e0] sm:$0xff] %v3089
      %3541 = vst [vmem:[%s170 + $0x3e8] sm:$0xff] %v3091
      %3542 = vst [vmem:[%s170 + $0x3f0] sm:$0xff] %v3093
      %3543 = vst [vmem:[%s170 + $0x3f8] sm:$0xff] %v3095
      %3544 = vst [vmem:[%s170 + $0x400] sm:$0xff] %v3097
      %3545 = vst [vmem:[%s170 + $0x408] sm:$0xff] %v3099
      %3546 = vst [vmem:[%s170 + $0x410] sm:$0xff] %v3101
      %3547 = vst [vmem:[%s170 + $0x418] sm:$0xff] %v3103
      %3548 = vst [vmem:[%s170 + $0x420] sm:$0xff] %v3105
      %3549 = vst [vmem:[%s170 + $0x428] sm:$0xff] %v3107
      %3550 = vst [vmem:[%s170 + $0x430] sm:$0xff] %v3109
      %3551 = vst [vmem:[%s170 + $0x438] sm:$0xff] %v3111
      %3552 = vst [vmem:[%s170 + $0x440] sm:$0xff] %v3113
      %3553 = vst [vmem:[%s170 + $0x448] sm:$0xff] %v3115
      %3554 = vst [vmem:[%s170 + $0x450] sm:$0xff] %v3117
      %3555 = vst [vmem:[%s170 + $0x458] sm:$0xff] %v3119
      %3556 = vst [vmem:[%s170 + $0x460] sm:$0xff] %v3121
      %3557 = vst [vmem:[%s170 + $0x468] sm:$0xff] %v3123
      %3558 = vst [vmem:[%s170 + $0x470] sm:$0xff] %v3125
      %3559 = vst [vmem:[%s170 + $0x478] sm:$0xff] %v3127
      %3560 = vst [vmem:[%s170 + $0x480] sm:$0xff] %v3129
      %3561 = vst [vmem:[%s170 + $0x488] sm:$0xff] %v3131
      %3562 = vst [vmem:[%s170 + $0x490] sm:$0xff] %v3133
      %3563 = vst [vmem:[%s170 + $0x498] sm:$0xff] %v3135
      %3564 = vst [vmem:[%s170 + $0x4a0] sm:$0xff] %v3137
      %3565 = vst [vmem:[%s170 + $0x4a8] sm:$0xff] %v3139
      %3566 = vst [vmem:[%s170 + $0x4b0] sm:$0xff] %v3141
      %3567 = vst [vmem:[%s170 + $0x4b8] sm:$0xff] %v3143
      %3568 = vst [vmem:[%s170 + $0x4c0] sm:$0xff] %v3145
      %3569 = vst [vmem:[%s170 + $0x4c8] sm:$0xff] %v3147
      %3570 = vst [vmem:[%s170 + $0x4d0] sm:$0xff] %v3149
      %3571 = vst [vmem:[%s170 + $0x4d8] sm:$0xff] %v3151
      %3572 = vst [vmem:[%s170 + $0x4e0] sm:$0xff] %v3153
      %3573 = vst [vmem:[%s170 + $0x4e8] sm:$0xff] %v3155
      %3574 = vst [vmem:[%s170 + $0x4f0] sm:$0xff] %v3157
      %3575 = vst [vmem:[%s170 + $0x4f8] sm:$0xff] %v3159
      %3576 = vst [vmem:[%s170 + $0x500] sm:$0xff] %v3161
      %3577 = vst [vmem:[%s170 + $0x508] sm:$0xff] %v3163
      %3578 = vst [vmem:[%s170 + $0x510] sm:$0xff] %v3165
      %3579 = vst [vmem:[%s170 + $0x518] sm:$0xff] %v3167
      %3580 = vst [vmem:[%s170 + $0x520] sm:$0xff] %v3169
      %3581 = vst [vmem:[%s170 + $0x528] sm:$0xff] %v3171
      %3582 = vst [vmem:[%s170 + $0x530] sm:$0xff] %v3173
      %3583 = vst [vmem:[%s170 + $0x538] sm:$0xff] %v3175
      %3584 = vst [vmem:[%s170 + $0x540] sm:$0xff] %v3177
      %3585 = vst [vmem:[%s170 + $0x548] sm:$0xff] %v3179
      %3586 = vst [vmem:[%s170 + $0x550] sm:$0xff] %v3181
      %3587 = vst [vmem:[%s170 + $0x558] sm:$0xff] %v3183
      %3588 = vst [vmem:[%s170 + $0x560] sm:$0xff] %v3185
      %3589 = vst [vmem:[%s170 + $0x568] sm:$0xff] %v3187
      %3590 = vst [vmem:[%s170 + $0x570] sm:$0xff] %v3189
      %3591 = vst [vmem:[%s170 + $0x578] sm:$0xff] %v3191
      %3592 = vst [vmem:[%s170 + $0x580] sm:$0xff] %v3193
      %3593 = vst [vmem:[%s170 + $0x588] sm:$0xff] %v3195
      %3594 = vst [vmem:[%s170 + $0x590] sm:$0xff] %v3197
      %3595 = vst [vmem:[%s170 + $0x598] sm:$0xff] %v3199
      %3596 = vst [vmem:[%s170 + $0x5a0] sm:$0xff] %v3201
      %3597 = vst [vmem:[%s170 + $0x5a8] sm:$0xff] %v3203
      %3598 = vst [vmem:[%s170 + $0x5b0] sm:$0xff] %v3205
      %3599 = vst [vmem:[%s170 + $0x5b8] sm:$0xff] %v3207
      %3600 = vst [vmem:[%s170 + $0x5c0] sm:$0xff] %v3209
      %3601 = vst [vmem:[%s170 + $0x5c8] sm:$0xff] %v3211
      %3602 = vst [vmem:[%s170 + $0x5d0] sm:$0xff] %v3213
      %3603 = vst [vmem:[%s170 + $0x5d8] sm:$0xff] %v3215
      %3604 = vst [vmem:[%s170 + $0x5e0] sm:$0xff] %v3217
      %3605 = vst [vmem:[%s170 + $0x5e8] sm:$0xff] %v3219
      %3606 = vst [vmem:[%s170 + $0x5f0] sm:$0xff] %v3221
      %3607 = vst [vmem:[%s170 + $0x5f8] sm:$0xff] %v3223
      %3608 = vst [vmem:[%s170 + $0x600] sm:$0xff] %v3225
      %3609 = vst [vmem:[%s170 + $0x608] sm:$0xff] %v3227
      %3610 = vst [vmem:[%s170 + $0x610] sm:$0xff] %v3229
      %3611 = vst [vmem:[%s170 + $0x618] sm:$0xff] %v3231
      %3612 = vst [vmem:[%s170 + $0x620] sm:$0xff] %v3233
      %3613 = vst [vmem:[%s170 + $0x628] sm:$0xff] %v3235
      %3614 = vst [vmem:[%s170 + $0x630] sm:$0xff] %v3237
      %3615 = vst [vmem:[%s170 + $0x638] sm:$0xff] %v3239
      %3616 = vst [vmem:[%s170 + $0x640] sm:$0xff] %v3241
      %3617 = vst [vmem:[%s170 + $0x648] sm:$0xff] %v3243
      %3618 = vst [vmem:[%s170 + $0x650] sm:$0xff] %v3245
      %3619 = vst [vmem:[%s170 + $0x658] sm:$0xff] %v3247
      %3620 = vst [vmem:[%s170 + $0x660] sm:$0xff] %v3249
      %3621 = vst [vmem:[%s170 + $0x668] sm:$0xff] %v3251
      %3622 = vst [vmem:[%s170 + $0x670] sm:$0xff] %v3253
      %3623 = vst [vmem:[%s170 + $0x678] sm:$0xff] %v3255
      %3624 = vst [vmem:[%s170 + $0x680] sm:$0xff] %v3257
      %3625 = vst [vmem:[%s170 + $0x688] sm:$0xff] %v3259
      %3626 = vst [vmem:[%s170 + $0x690] sm:$0xff] %v3261
      %3627 = vst [vmem:[%s170 + $0x698] sm:$0xff] %v3263
      %3628 = vst [vmem:[%s170 + $0x6a0] sm:$0xff] %v3265
      %3629 = vst [vmem:[%s170 + $0x6a8] sm:$0xff] %v3267
      %3630 = vst [vmem:[%s170 + $0x6b0] sm:$0xff] %v3269
      %3631 = vst [vmem:[%s170 + $0x6b8] sm:$0xff] %v3271
      %3632 = vst [vmem:[%s170 + $0x6c0] sm:$0xff] %v3273
      %3633 = vst [vmem:[%s170 + $0x6c8] sm:$0xff] %v3275
      %3634 = vst [vmem:[%s170 + $0x6d0] sm:$0xff] %v3277
      %3635 = vst [vmem:[%s170 + $0x6d8] sm:$0xff] %v3279
      %3636 = vst [vmem:[%s170 + $0x6e0] sm:$0xff] %v3281
      %3637 = vst [vmem:[%s170 + $0x6e8] sm:$0xff] %v3283
      %3638 = vst [vmem:[%s170 + $0x6f0] sm:$0xff] %v3285
      %3639 = vst [vmem:[%s170 + $0x6f8] sm:$0xff] %v3287
      %3640 = vst [vmem:[%s170 + $0x700] sm:$0xff] %v3289
      %3641 = vst [vmem:[%s170 + $0x708] sm:$0xff] %v3291
      %3642 = vst [vmem:[%s170 + $0x710] sm:$0xff] %v3293
      %3643 = vst [vmem:[%s170 + $0x718] sm:$0xff] %v3295
      %3644 = vst [vmem:[%s170 + $0x720] sm:$0xff] %v3297
      %3645 = vst [vmem:[%s170 + $0x728] sm:$0xff] %v3299
      %3646 = vst [vmem:[%s170 + $0x730] sm:$0xff] %v3301
      %3647 = vst [vmem:[%s170 + $0x738] sm:$0xff] %v3303
      %3648 = vst [vmem:[%s170 + $0x740] sm:$0xff] %v3305
      %3649 = vst [vmem:[%s170 + $0x748] sm:$0xff] %v3307
      %3650 = vst [vmem:[%s170 + $0x750] sm:$0xff] %v3309
      %3651 = vst [vmem:[%s170 + $0x758] sm:$0xff] %v3311
      %3652 = vst [vmem:[%s170 + $0x760] sm:$0xff] %v3313
      %3653 = vst [vmem:[%s170 + $0x768] sm:$0xff] %v3315
      %3654 = vst [vmem:[%s170 + $0x770] sm:$0xff] %v3317
      %3655 = vst [vmem:[%s170 + $0x778] sm:$0xff] %v3319
      %3656 = vst [vmem:[%s170 + $0x780] sm:$0xff] %v3321
      %3657 = vst [vmem:[%s170 + $0x788] sm:$0xff] %v3323
      %3658 = vst [vmem:[%s170 + $0x790] sm:$0xff] %v3325
      %3659 = vst [vmem:[%s170 + $0x798] sm:$0xff] %v3327
      %3660 = vst [vmem:[%s170 + $0x7a0] sm:$0xff] %v3329
      %3661 = vst [vmem:[%s170 + $0x7a8] sm:$0xff] %v3331
      %3662 = vst [vmem:[%s170 + $0x7b0] sm:$0xff] %v3333
      %3663 = vst [vmem:[%s170 + $0x7b8] sm:$0xff] %v3335
      %3664 = vst [vmem:[%s170 + $0x7c0] sm:$0xff] %v3337
      %3665 = vst [vmem:[%s170 + $0x7c8] sm:$0xff] %v3339
      %3666 = vst [vmem:[%s170 + $0x7d0] sm:$0xff] %v3341
      %3667 = vst [vmem:[%s170 + $0x7d8] sm:$0xff] %v3343
      %3668 = vst [vmem:[%s170 + $0x7e0] sm:$0xff] %v3345
      %3669 = vst [vmem:[%s170 + $0x7e8] sm:$0xff] %v3347
      %3670 = vst [vmem:[%s170 + $0x7f0] sm:$0xff] %v3349
      %3671 = vst [vmem:[%s170 + $0x7f8] sm:$0xff] %v3351
      %3672 = vst [vmem:[%s170 + $0x800] sm:$0xff] %v3353
      %3673 = vst [vmem:[%s170 + $0x808] sm:$0xff] %v3355
      %3674 = vst [vmem:[%s170 + $0x810] sm:$0xff] %v3357
      %3675 = vst [vmem:[%s170 + $0x818] sm:$0xff] %v3359
      %3676 = vst [vmem:[%s170 + $0x820] sm:$0xff] %v3361
      %3677 = vst [vmem:[%s170 + $0x828] sm:$0xff] %v3363
      %3678 = vst [vmem:[%s170 + $0x830] sm:$0xff] %v3365
      %3679 = vst [vmem:[%s170 + $0x838] sm:$0xff] %v3367
      %3680 = vst [vmem:[%s170 + $0x840] sm:$0xff] %v3369
      %3681 = vst [vmem:[%s170 + $0x848] sm:$0xff] %v3371
      %3682 = vst [vmem:[%s170 + $0x850] sm:$0xff] %v3373
      %3683 = vst [vmem:[%s170 + $0x858] sm:$0xff] %v3375
      %3684 = vst [vmem:[%s170 + $0x860] sm:$0xff] %v3377
      %3685 = vst [vmem:[%s170 + $0x868] sm:$0xff] %v3379
      %3686 = vst [vmem:[%s170 + $0x870] sm:$0xff] %v3381
      %3687 = vst [vmem:[%s170 + $0x878] sm:$0xff] %v3383
      %3688 = vst [vmem:[%s170 + $0x880] sm:$0xff] %v3385
      %3689 = vst [vmem:[%s170 + $0x888] sm:$0xff] %v3387
      %3690 = vst [vmem:[%s170 + $0x890] sm:$0xff] %v3389
      %3691 = vst [vmem:[%s170 + $0x898] sm:$0xff] %v3391
      %3692 = vst [vmem:[%s170 + $0x8a0] sm:$0xff] %v3393
      %3693 = vst [vmem:[%s170 + $0x8a8] sm:$0xff] %v3395
      %3694 = vst [vmem:[%s170 + $0x8b0] sm:$0xff] %v3397
      %3695 = vst [vmem:[%s170 + $0x8b8] sm:$0xff] %v3399
      %3696 = vst [vmem:[%s170 + $0x8c0] sm:$0xff] %v3401
      %3697 = vst [vmem:[%s170 + $0x8c8] sm:$0xff] %v3403
      %3698 = vst [vmem:[%s170 + $0x8d0] sm:$0xff] %v3405
      %3699 = vst [vmem:[%s170 + $0x8d8] sm:$0xff] %v3407
      %3700 = vst [vmem:[%s170 + $0x8e0] sm:$0xff] %v3409
      %3701 = vst [vmem:[%s170 + $0x8e8] sm:$0xff] %v3411
      %3702 = vst [vmem:[%s170 + $0x8f0] sm:$0xff] %v3413
      %3703 = vst [vmem:[%s170 + $0x8f8] sm:$0xff] %v3415
      %p3704 = scmp.lt.s32.totalorder %s14, 1
      %s3705 = scalar_select %p3704, %s14, 1
      %s3706 = smul.addr %s3705, 288
      %s3707 = smul.addr %s3706, 8
      %s3708 = scalar_lea.vmem %s3, %s3707
      // Predicated region
      $region33: #{model_forward.1} parent=31 // pred_check
        %p3709 = pneg %p100
      $region34: #{model_forward.1} parent=31 // pred_check_branch
        %3711 = sbr.rel (%p3709) target = $region36
      $region35: #{model_forward.1} parent=31 // pred_region
        _
      $region36: #{model_forward.1} parent=31 // pred_fallthru
        _
    $region32: #{model_forward.1} parent=5 // pred_fallthru
      _
    %p3712 = scmp.le.s32.totalorder 2, %s9
    // Predicated region
    $region37: #{model_forward.1} parent=5 // pred_check
      %p3713 = pneg %p3712
    $region38: #{model_forward.1} parent=5 // pred_check_branch
      %3715 = sbr.rel (%p3713) target = $region40
    $region39: #{model_forward.1} parent=5 // pred_region
      %s3716 = ssub.s32 %s9, 2
      // Predicated region
      $region41: #{model_forward.1} parent=39 // pred_check
        %p3717 = pneg %p106
      $region42: #{model_forward.1} parent=39 // pred_check_branch
        %3719 = sbr.rel (%p3717) target = $region44
      $region43: #{model_forward.1} parent=39 // pred_region
        %p3720 = scmp.lt.s32.totalorder %s15, 1
        %s3721 = scalar_select %p3720, %s15, 1
        %s3722 = smul.addr %s3721, 288
        %s3723 = smul.addr %s3722, 8
        %s3724 = scalar_lea.vmem %s3, %s3723
      $region44: #{model_forward.1} parent=39 // pred_fallthru
        _
    $region40: #{model_forward.1} parent=5 // pred_fallthru
      _
  $region6: #{model_forward.1} parent=0 // loop_footer
    %s13 = sadd.s32 1, %s9
  $region7: #{model_forward.1} parent=0 // loop_footer_branch
    %8 = sbr.rel target = $region3
  $region8: #{model_forward.1} parent=0 // loop_exit
    _

</llo_original>
